<compile_context>
chip_gen: v5e
topology: v5e:2x2
jax: 0.10.0
libtpu: 0.0.40
codegen_flags: <defaults>
</compile_context>

<pallas_src>
import math

import jax
import jax.numpy as jnp
from jax.experimental import pallas as pl
from jax.experimental.pallas import tpu as pltpu

O_INDEX = 0
PAD_INDEX = -1

MATMUL_DTYPE = jnp.bfloat16  # MXU input dtype; accumulation stays f32


class Config:
    hidden_size = 32
    num_layers = 2
    num_heads = 2
    intermediate_size = 64
    vocab_size = 100
    max_position = 64
    type_vocab_size = 2
    dropout = 0.1


# ----------------------------------------------------------------------------
# in-kernel helpers (traced jnp code, only used inside Pallas kernels)
# ----------------------------------------------------------------------------
def _layernorm(x, g, b, eps=1e-12):
    mu = jnp.mean(x, axis=-1, keepdims=True)
    var = jnp.mean((x - mu) * (x - mu), axis=-1, keepdims=True)
    return (x - mu) * jax.lax.rsqrt(var + eps) * g + b


def _gelu(x):
    # TODO(synk): tanh approximation; torch nn.GELU default is the exact erf form.
    return 0.5 * x * (1.0 + jnp.tanh(0.7978845608028654 * (x + 0.044715 * x * x * x)))


def _softmax_lastdim(s):
    smax = jnp.max(s, axis=-1, keepdims=True)
    e = jnp.exp(s - smax)
    return e * pl.reciprocal(jnp.sum(e, axis=-1, keepdims=True), approx=True)


# ----------------------------------------------------------------------------
# Kernel 1: fused BERT encoder stack (per batch element)
# ----------------------------------------------------------------------------
def _make_bert_kernel(num_layers, num_heads, seq_len, hidden):
    dh = hidden // num_heads
    scale = 1.0 / math.sqrt(dh)

    def kernel(x_ref, mask_ref, eg_ref, eb_ref,
               wqkv_ref, bqkv_ref, wo_ref, bo_ref, g1_ref, b1_ref,
               w1_ref, c1_ref, w2_ref, c2_ref, g2_ref, b2_ref,
               wp_ref, bp_ref,
               seq_ref, pool_ref):
        x = x_ref[0]                          # [S, H]  f32
        m = mask_ref[0]                       # [1, S]  additive mask
        x = _layernorm(x, eg_ref[...], eb_ref[...])

        for l in range(num_layers):
            # ---- fused QKV projection: [S, H] @ [H, 3H] ----
            wqkv = wqkv_ref[l]
            wo = wo_ref[l]
            qkv = (jnp.dot(x.astype(MATMUL_DTYPE), wqkv,
                           preferred_element_type=jnp.float32)
                   + bqkv_ref[l])             # [S, 3H]

            # ---- multi-head self-attention, heads folded into O-projection ----
            attn = jnp.zeros((seq_len, hidden), jnp.float32)
            for h in range(num_heads):
                lo = h * dh
                qh = qkv[:, lo:lo + dh]
                kh = qkv[:, hidden + lo:hidden + lo + dh]
                vh = qkv[:, 2 * hidden + lo:2 * hidden + lo + dh]
                s = jax.lax.dot_general(
                    qh, kh, (((1,), (1,)), ((), ())),
                    preferred_element_type=jnp.float32) * scale + m   # [S, S]
                p = _softmax_lastdim(s)
                ch = jnp.dot(p, vh, preferred_element_type=jnp.float32)  # [S, dh]
                attn = attn + jnp.dot(
                    ch.astype(MATMUL_DTYPE), wo[lo:lo + dh, :],
                    preferred_element_type=jnp.float32)               # [S, H]
            attn = attn + bo_ref[l]

            # ---- residual + LN ----
            x = _layernorm(x + attn, g1_ref[l], b1_ref[l])

            # ---- FFN (gelu) + residual + LN, intermediate stays in VMEM ----
            hdn = (jnp.dot(x.astype(MATMUL_DTYPE), w1_ref[l],
                           preferred_element_type=jnp.float32) + c1_ref[l])
            hdn = _gelu(hdn)
            ffo = (jnp.dot(hdn.astype(MATMUL_DTYPE), w2_ref[l],
                           preferred_element_type=jnp.float32) + c2_ref[l])
            x = _layernorm(x + ffo, g2_ref[l], b2_ref[l])

        seq_ref[0] = x.astype(seq_ref.dtype)

        # ---- pooler (CLS token) ----
        cls = x[0:1, :]
        pooled = jnp.tanh(
            jnp.dot(cls.astype(MATMUL_DTYPE), wp_ref[...],
                    preferred_element_type=jnp.float32) + bp_ref[...])
        pool_ref[0] = pooled.astype(pool_ref.dtype)

    return kernel


def bert_forward(params, cfg, input_ids, token_type_ids, attention_mask):
    B, S = input_ids.shape
    H = cfg.hidden_size
    I = cfg.intermediate_size
    L = cfg.num_layers

    # embedding gathers (data-dependent) stay in XLA
    pos_ids = jnp.arange(S)[None, :]
    x_emb = (params["word_emb"][input_ids]
             + params["pos_emb"][pos_ids]
             + params["type_emb"][token_type_ids])            # [B, S, H]
    add_mask = (1.0 - attention_mask.astype(jnp.float32))[:, None, :] * -10000.0

    def full(shape):
        return pl.BlockSpec(shape, lambda b, _n=len(shape): (0,) * _n)

    kernel = _make_bert_kernel(L, cfg.num_heads, S, H)
    seq_out, pooled = pl.pallas_call(
        kernel,
        out_shape=(
            jax.ShapeDtypeStruct((B, S, H), jnp.float32),
            jax.ShapeDtypeStruct((B, 1, H), jnp.float32),
        ),
        grid=(B,),
        in_specs=[
            pl.BlockSpec((1, S, H), lambda b: (b, 0, 0)),
            pl.BlockSpec((1, 1, S), lambda b: (b, 0, 0)),
            full((1, H)), full((1, H)),
            full((L, H, 3 * H)), full((L, 1, 3 * H)),
            full((L, H, H)), full((L, 1, H)),
            full((L, 1, H)), full((L, 1, H)),
            full((L, H, I)), full((L, 1, I)),
            full((L, I, H)), full((L, 1, H)),
            full((L, 1, H)), full((L, 1, H)),
            full((H, H)), full((1, H)),
        ],
        out_specs=(
            pl.BlockSpec((1, S, H), lambda b: (b, 0, 0)),
            pl.BlockSpec((1, 1, H), lambda b: (b, 0, 0)),
        ),
        compiler_params=pltpu.CompilerParams(dimension_semantics=("parallel",)),
    )(
        x_emb, add_mask,
        params["emb_ln_g"], params["emb_ln_b"],
        params["w_qkv"], params["b_qkv"],
        params["w_o"], params["b_o"],
        params["ln1_g"], params["ln1_b"],
        params["w_ffn1"], params["b_ffn1"],
        params["w_ffn2"], params["b_ffn2"],
        params["ln2_g"], params["ln2_b"],
        params["w_pool"], params["b_pool"],
    )
    return seq_out, pooled[:, 0, :]


# ----------------------------------------------------------------------------
# Kernel 2: fused heads (slot cls + slot/state cross-attention + action cls +
#           domain cls), per batch element
# ----------------------------------------------------------------------------
def _head_kernel(state_ref, slot_ref, ent_ref, mk_ref, pool_ref,
                 ws_ref, bs_ref, wa_ref, ba_ref, wd_ref, bd_ref,
                 slot_sc_ref, state_sc_ref, dom_ref, state_new_ref):
    st = state_ref[0]      # [Ns, H]
    so = slot_ref[0]       # [J, H]   (raw slot rows -> slot classifier)
    en = ent_ref[0]        # [J, H]   (invalid rows zeroed -> attention values)
    mk = mk_ref[0]         # [1, J]   1.0 valid / 0.0 invalid
    pooled = pool_ref[0]   # [1, H]

    slot_sc_ref[0] = (jnp.dot(so, ws_ref[...], preferred_element_type=jnp.float32)
                      + bs_ref[...]).astype(slot_sc_ref.dtype)

    # state <-> entity-slot attention (bmm + masked_fill + softmax + bmm + residual)
    s = jax.lax.dot_general(st, en, (((1,), (1,)), ((), ())),
                            preferred_element_type=jnp.float32)        # [Ns, J]
    s = jnp.where(mk == 0.0, -1e9, s)
    p = _softmax_lastdim(s)
    st_new = st + jnp.dot(p, en, preferred_element_type=jnp.float32)
    state_new_ref[0] = st_new.astype(state_new_ref.dtype)

    state_sc_ref[0] = (jnp.dot(st_new, wa_ref[...], preferred_element_type=jnp.float32)
                       + ba_ref[...]).astype(state_sc_ref.dtype)
    dom_ref[0] = (jnp.dot(pooled, wd_ref[...], preferred_element_type=jnp.float32)
                  + bd_ref[...]).astype(dom_ref.dtype)


def heads_forward(params, state_output, slot_output, slot_valid, pooled,
                  n_op, n_slot, n_domain):
    B, Ns, H = state_output.shape
    J = slot_output.shape[1]
    valid_f = slot_valid.astype(jnp.float32)
    # zeroing invalid entity rows + masked-fill of scores is mathematically
    # identical to torch's per-example masked_select packing (incl. the
    # zero-valid-slot case), without any data-dependent shapes.
    entity = slot_output * valid_f[:, :, None]
    mask = valid_f[:, None, :]
    pooled3 = pooled[:, None, :]

    def full(shape):
        return pl.BlockSpec(shape, lambda b, _n=len(shape): (0,) * _n)

    slot_scores, state_scores, domain_scores, state_new = pl.pallas_call(
        _head_kernel,
        out_shape=(
            jax.ShapeDtypeStruct((B, J, n_slot), jnp.float32),
            jax.ShapeDtypeStruct((B, Ns, n_op), jnp.float32),
            jax.ShapeDtypeStruct((B, 1, n_domain), jnp.float32),
            jax.ShapeDtypeStruct((B, Ns, H), jnp.float32),
        ),
        grid=(B,),
        in_specs=[
            pl.BlockSpec((1, Ns, H), lambda b: (b, 0, 0)),
            pl.BlockSpec((1, J, H), lambda b: (b, 0, 0)),
            pl.BlockSpec((1, J, H), lambda b: (b, 0, 0)),
            pl.BlockSpec((1, 1, J), lambda b: (b, 0, 0)),
            pl.BlockSpec((1, 1, H), lambda b: (b, 0, 0)),
            full((H, n_slot)), full((1, n_slot)),
            full((H, n_op)), full((1, n_op)),
            full((H, n_domain)), full((1, n_domain)),
        ],
        out_specs=(
            pl.BlockSpec((1, J, n_slot), lambda b: (b, 0, 0)),
            pl.BlockSpec((1, Ns, n_op), lambda b: (b, 0, 0)),
            pl.BlockSpec((1, 1, n_domain), lambda b: (b, 0, 0)),
            pl.BlockSpec((1, Ns, H), lambda b: (b, 0, 0)),
        ),
        compiler_params=pltpu.CompilerParams(dimension_semantics=("parallel",)),
    )(state_output, slot_output, entity, mask, pooled3,
      params["w_slot"], params["b_slot"],
      params["w_act"], params["b_act"],
      params["w_dom"], params["b_dom"])
    return slot_scores, state_scores, domain_scores[:, 0, :], state_new


# ----------------------------------------------------------------------------
# glue
# ----------------------------------------------------------------------------
def pack_valid(rows, valid, max_n):
    """Per-example masked_select + zero padding to max_n (order preserved)."""
    order = jnp.argsort((~valid).astype(jnp.int32), axis=1, stable=True)
    packed = jnp.take_along_axis(rows, order[:, :, None], axis=1)
    pmask = jnp.take_along_axis(valid, order, axis=1).astype(rows.dtype)
    return packed * pmask[:, :, None], pmask


def encoder_forward(params, cfg, n_op, n_slot, n_domain, update_id,
                    input_ids, token_type_ids, state_positions, attention_mask,
                    slot_labels_id, slot_labels_pos):
    seq_out, pooled = bert_forward(params, cfg, input_ids, token_type_ids,
                                   attention_mask)

    # torch.gather along dim 1 (data-dependent gathers stay in XLA)
    state_output = jnp.take_along_axis(seq_out, state_positions[:, :, None], axis=1)
    slot_output = jnp.take_along_axis(seq_out, slot_labels_pos[:, :, None], axis=1)

    slot_valid = (slot_labels_id != O_INDEX) & (slot_labels_id != PAD_INDEX)

    slot_scores, state_scores, domain_scores, state_new = heads_forward(
        params, state_output, slot_output, slot_valid, pooled,
        n_op, n_slot, n_domain)

    B = state_scores.shape[0]
    op_ids = jnp.argmax(state_scores.reshape(-1, n_op), axis=-1).reshape(B, -1)
    upd = op_ids == update_id
    # TODO(synk): torch trims decoder_inputs to the data-dependent max_update via
    # .item(); we pad to the static maximum (Ns) so the forward stays jittable
    # and sync-free (valid rows come first, remainder is zero).
    Ns = state_new.shape[1]
    decoder_inputs, _ = pack_valid(state_new, upd, Ns)

    return (domain_scores, slot_scores, state_scores, decoder_inputs,
            seq_out, pooled[None, :, :])


# ----------------------------------------------------------------------------
# params (deterministic synthetic init)
# ----------------------------------------------------------------------------
def init_encoder_params(key, cfg, n_op, n_slot, n_domain):
    H, I, L = cfg.hidden_size, cfg.intermediate_size, cfg.num_layers
    keys = iter(jax.random.split(key, 32))

    def w(k, *shape, dtype=jnp.float32):
        return (jax.random.normal(k, shape, jnp.float32) * 0.02).astype(dtype)

    return {
        "word_emb": w(next(keys), cfg.vocab_size, H),
        "pos_emb": w(next(keys), cfg.max_position, H),
        "type_emb": w(next(keys), cfg.type_vocab_size, H),
        "emb_ln_g": jnp.ones((1, H), jnp.float32),
        "emb_ln_b": jnp.zeros((1, H), jnp.float32),
        # per-layer weights stacked on a leading layer axis; matmul weights in
        # bf16 (MXU inputs, f32 accumulation), biases / LN params in f32.
        "w_qkv": w(next(keys), L, H, 3 * H, dtype=MATMUL_DTYPE),
        "b_qkv": jnp.zeros((L, 1, 3 * H), jnp.float32),
        "w_o": w(next(keys), L, H, H, dtype=MATMUL_DTYPE),
        "b_o": jnp.zeros((L, 1, H), jnp.float32),
        "ln1_g": jnp.ones((L, 1, H), jnp.float32),
        "ln1_b": jnp.zeros((L, 1, H), jnp.float32),
        "w_ffn1": w(next(keys), L, H, I, dtype=MATMUL_DTYPE),
        "b_ffn1": jnp.zeros((L, 1, I), jnp.float32),
        "w_ffn2": w(next(keys), L, I, H, dtype=MATMUL_DTYPE),
        "b_ffn2": jnp.zeros((L, 1, H), jnp.float32),
        "ln2_g": jnp.ones((L, 1, H), jnp.float32),
        "ln2_b": jnp.zeros((L, 1, H), jnp.float32),
        "w_pool": w(next(keys), H, H, dtype=MATMUL_DTYPE),
        "b_pool": jnp.zeros((1, H), jnp.float32),
        "w_slot": w(next(keys), H, n_slot),
        "b_slot": jnp.zeros((1, n_slot), jnp.float32),
        "w_act": w(next(keys), H, n_op),
        "b_act": jnp.zeros((1, n_op), jnp.float32),
        "w_dom": w(next(keys), H, n_domain),
        "b_dom": jnp.zeros((1, n_domain), jnp.float32),
    }


# ----------------------------------------------------------------------------
if __name__ == "__main__":
    cfg = Config()
    n_op, n_slot, n_domain, update_id = 4, 6, 5, 1

    key = jax.random.PRNGKey(0)
    kp, k1, k2, k3 = jax.random.split(key, 4)
    params = init_encoder_params(kp, cfg, n_op, n_slot, n_domain)

    B, S, J = 2, 32, 8
    input_ids = jax.random.randint(k1, (B, S), 0, cfg.vocab_size, dtype=jnp.int32)
    token_type_ids = jnp.zeros((B, S), jnp.int32)
    attention_mask = jnp.ones((B, S), jnp.int32).at[1, 28:].set(0)
    state_positions = jax.random.randint(k2, (B, 30), 0, S, dtype=jnp.int32)
    slot_labels_pos = jax.random.randint(k3, (B, J), 0, S, dtype=jnp.int32)
    slot_labels_id = jnp.array(
        [[2, 3, 0, 0, -1, 4, 0, -1], [0, 5, 2, 0, -1, -1, 3, 1]], dtype=jnp.int32
    )

    fwd = jax.jit(lambda p, *args: encoder_forward(
        p, cfg, n_op, n_slot, n_domain, update_id, *args))

    outs = fwd(params, input_ids, token_type_ids, state_positions,
               attention_mask, slot_labels_id, slot_labels_pos)
    jax.block_until_ready(outs)
    print("KERNEL_OK")
</pallas_src>

<mosaic_0001>
module attributes {stable_mosaic.version = 11 : i64} {
  func.func @kernel(%arg0: i32, %arg1: memref<1x32x32xf32, #tpu.memory_space<vmem>>, %arg2: memref<1x1x32xf32, #tpu.memory_space<vmem>>, %arg3: memref<1x32xf32, #tpu.memory_space<vmem>>, %arg4: memref<1x32xf32, #tpu.memory_space<vmem>>, %arg5: memref<2x32x96xbf16, #tpu.memory_space<vmem>>, %arg6: memref<2x1x96xf32, #tpu.memory_space<vmem>>, %arg7: memref<2x32x32xbf16, #tpu.memory_space<vmem>>, %arg8: memref<2x1x32xf32, #tpu.memory_space<vmem>>, %arg9: memref<2x1x32xf32, #tpu.memory_space<vmem>>, %arg10: memref<2x1x32xf32, #tpu.memory_space<vmem>>, %arg11: memref<2x32x64xbf16, #tpu.memory_space<vmem>>, %arg12: memref<2x1x64xf32, #tpu.memory_space<vmem>>, %arg13: memref<2x64x32xbf16, #tpu.memory_space<vmem>>, %arg14: memref<2x1x32xf32, #tpu.memory_space<vmem>>, %arg15: memref<2x1x32xf32, #tpu.memory_space<vmem>>, %arg16: memref<2x1x32xf32, #tpu.memory_space<vmem>>, %arg17: memref<32x32xbf16, #tpu.memory_space<vmem>>, %arg18: memref<1x32xf32, #tpu.memory_space<vmem>>, %arg19: memref<1x32x32xf32, #tpu.memory_space<vmem>>, %arg20: memref<1x1x32xf32, #tpu.memory_space<vmem>>) attributes {dimension_semantics = [#tpu.dimension_semantics<parallel>], iteration_bounds = array<i64: 2>, scalar_prefetch = 0 : i64, scratch_operands = 0 : i64, tpu.core_type = #tpu.core_type<tc>, window_params = [{transform_indices = @transform_0, window_bounds = array<i64: 1, 32, 32>}, {transform_indices = @transform_1, window_bounds = array<i64: 1, 1, 32>}, {pipeline_mode = #tpu.pipeline_mode<synchronous>, transform_indices = @transform_2, window_bounds = array<i64: 1, 32>}, {pipeline_mode = #tpu.pipeline_mode<synchronous>, transform_indices = @transform_3, window_bounds = array<i64: 1, 32>}, {pipeline_mode = #tpu.pipeline_mode<synchronous>, transform_indices = @transform_4, window_bounds = array<i64: 2, 32, 96>}, {pipeline_mode = #tpu.pipeline_mode<synchronous>, transform_indices = @transform_5, window_bounds = array<i64: 2, 1, 96>}, {pipeline_mode = #tpu.pipeline_mode<synchronous>, transform_indices = @transform_6, window_bounds = array<i64: 2, 32, 32>}, {pipeline_mode = #tpu.pipeline_mode<synchronous>, transform_indices = @transform_7, window_bounds = array<i64: 2, 1, 32>}, {pipeline_mode = #tpu.pipeline_mode<synchronous>, transform_indices = @transform_8, window_bounds = array<i64: 2, 1, 32>}, {pipeline_mode = #tpu.pipeline_mode<synchronous>, transform_indices = @transform_9, window_bounds = array<i64: 2, 1, 32>}, {pipeline_mode = #tpu.pipeline_mode<synchronous>, transform_indices = @transform_10, window_bounds = array<i64: 2, 32, 64>}, {pipeline_mode = #tpu.pipeline_mode<synchronous>, transform_indices = @transform_11, window_bounds = array<i64: 2, 1, 64>}, {pipeline_mode = #tpu.pipeline_mode<synchronous>, transform_indices = @transform_12, window_bounds = array<i64: 2, 64, 32>}, {pipeline_mode = #tpu.pipeline_mode<synchronous>, transform_indices = @transform_13, window_bounds = array<i64: 2, 1, 32>}, {pipeline_mode = #tpu.pipeline_mode<synchronous>, transform_indices = @transform_14, window_bounds = array<i64: 2, 1, 32>}, {pipeline_mode = #tpu.pipeline_mode<synchronous>, transform_indices = @transform_15, window_bounds = array<i64: 2, 1, 32>}, {pipeline_mode = #tpu.pipeline_mode<synchronous>, transform_indices = @transform_16, window_bounds = array<i64: 32, 32>}, {pipeline_mode = #tpu.pipeline_mode<synchronous>, transform_indices = @transform_17, window_bounds = array<i64: 1, 32>}, {transform_indices = @transform_18, window_bounds = array<i64: 1, 32, 32>}, {transform_indices = @transform_19, window_bounds = array<i64: 1, 1, 32>}]} {
    %c0 = arith.constant 0 : index
    %c0_0 = arith.constant 0 : index
    %c0_1 = arith.constant 0 : index
    %0 = vector.load %arg1[%c0, %c0_0, %c0_1] : memref<1x32x32xf32, #tpu.memory_space<vmem>>, vector<1x32x32xf32>
    %1 = vector.shape_cast %0 : vector<1x32x32xf32> to vector<32x32xf32>
    %c0_2 = arith.constant 0 : index
    %c0_3 = arith.constant 0 : index
    %c0_4 = arith.constant 0 : index
    %2 = vector.load %arg2[%c0_2, %c0_3, %c0_4] : memref<1x1x32xf32, #tpu.memory_space<vmem>>, vector<1x1x32xf32>
    %3 = vector.shape_cast %2 : vector<1x1x32xf32> to vector<1x32xf32>
    %c0_5 = arith.constant 0 : index
    %c0_6 = arith.constant 0 : index
    %4 = vector.load %arg3[%c0_5, %c0_6] : memref<1x32xf32, #tpu.memory_space<vmem>>, vector<1x32xf32>
    %c0_7 = arith.constant 0 : index
    %c0_8 = arith.constant 0 : index
    %5 = vector.load %arg4[%c0_7, %c0_8] : memref<1x32xf32, #tpu.memory_space<vmem>>, vector<1x32xf32>
    %cst = arith.constant dense<0.000000e+00> : vector<32xf32>
    %6 = vector.multi_reduction <add>, %1, %cst [1] : vector<32x32xf32> to vector<32xf32>
    %7 = vector.shape_cast %6 : vector<32xf32> to vector<32x1xf32>
    %cst_9 = arith.constant 3.200000e+01 : f32
    %8 = vector.broadcast %cst_9 : f32 to vector<32x1xf32>
    %9 = arith.divf %7, %8 : vector<32x1xf32>
    %10 = vector.broadcast %9 : vector<32x1xf32> to vector<32x32xf32>
    %11 = arith.subf %1, %10 : vector<32x32xf32>
    %12 = vector.broadcast %9 : vector<32x1xf32> to vector<32x32xf32>
    %13 = arith.subf %1, %12 : vector<32x32xf32>
    %14 = arith.mulf %11, %13 : vector<32x32xf32>
    %cst_10 = arith.constant dense<0.000000e+00> : vector<32xf32>
    %15 = vector.multi_reduction <add>, %14, %cst_10 [1] : vector<32x32xf32> to vector<32xf32>
    %16 = vector.shape_cast %15 : vector<32xf32> to vector<32x1xf32>
    %cst_11 = arith.constant 3.200000e+01 : f32
    %17 = vector.broadcast %cst_11 : f32 to vector<32x1xf32>
    %18 = arith.divf %16, %17 : vector<32x1xf32>
    %19 = vector.broadcast %9 : vector<32x1xf32> to vector<32x32xf32>
    %20 = arith.subf %1, %19 : vector<32x32xf32>
    %cst_12 = arith.constant 9.99999996E-13 : f32
    %21 = vector.broadcast %cst_12 : f32 to vector<32x1xf32>
    %22 = arith.addf %18, %21 : vector<32x1xf32>
    %23 = math.rsqrt %22 : vector<32x1xf32>
    %24 = vector.broadcast %23 : vector<32x1xf32> to vector<32x32xf32>
    %25 = arith.mulf %20, %24 : vector<32x32xf32>
    %26 = vector.broadcast %4 : vector<1x32xf32> to vector<32x32xf32>
    %27 = arith.mulf %25, %26 : vector<32x32xf32>
    %28 = vector.broadcast %5 : vector<1x32xf32> to vector<32x32xf32>
    %29 = arith.addf %27, %28 : vector<32x32xf32>
    %c0_13 = arith.constant 0 : index
    %c0_14 = arith.constant 0 : index
    %c0_15 = arith.constant 0 : index
    %30 = vector.load %arg5[%c0_13, %c0_14, %c0_15] : memref<2x32x96xbf16, #tpu.memory_space<vmem>>, vector<1x32x96xbf16>
    %31 = vector.shape_cast %30 : vector<1x32x96xbf16> to vector<32x96xbf16>
    %c0_16 = arith.constant 0 : index
    %c0_17 = arith.constant 0 : index
    %c0_18 = arith.constant 0 : index
    %32 = vector.load %arg7[%c0_16, %c0_17, %c0_18] : memref<2x32x32xbf16, #tpu.memory_space<vmem>>, vector<1x32x32xbf16>
    %33 = vector.shape_cast %32 : vector<1x32x32xbf16> to vector<32x32xbf16>
    %34 = arith.truncf %29 : vector<32x32xf32> to vector<32x32xbf16>
    %cst_19 = arith.constant dense<0.000000e+00> : vector<32x96xf32>
    %35 = tpu.matmul %34, %31, %cst_19 {dimension_numbers = #tpu.dot_dimension_numbers<[1], [0], [0], [1], [0, 0, 1, 1], [], []>} : vector<32x32xbf16>, vector<32x96xbf16>, vector<32x96xf32> -> vector<32x96xf32>
    %c0_20 = arith.constant 0 : index
    %c0_21 = arith.constant 0 : index
    %c0_22 = arith.constant 0 : index
    %36 = vector.load %arg6[%c0_20, %c0_21, %c0_22] : memref<2x1x96xf32, #tpu.memory_space<vmem>>, vector<1x1x96xf32>
    %37 = vector.shape_cast %36 : vector<1x1x96xf32> to vector<1x96xf32>
    %38 = vector.broadcast %37 : vector<1x96xf32> to vector<32x96xf32>
    %39 = arith.addf %35, %38 : vector<32x96xf32>
    %cst_23 = arith.constant 0.000000e+00 : f32
    %40 = vector.broadcast %cst_23 : f32 to vector<32x32xf32>
    %41 = vector.extract_strided_slice %39 {offsets = [0, 0], sizes = [32, 16], strides = [1, 1]} : vector<32x96xf32> to vector<32x16xf32>
    %42 = vector.extract_strided_slice %39 {offsets = [0, 32], sizes = [32, 16], strides = [1, 1]} : vector<32x96xf32> to vector<32x16xf32>
    %43 = vector.extract_strided_slice %39 {offsets = [0, 64], sizes = [32, 16], strides = [1, 1]} : vector<32x96xf32> to vector<32x16xf32>
    %cst_24 = arith.constant dense<0.000000e+00> : vector<32x32xf32>
    %44 = tpu.matmul %41, %42, %cst_24 {dimension_numbers = #tpu.dot_dimension_numbers<[1], [1], [0], [0], [0, 0, 1, 0], [], []>} : vector<32x16xf32>, vector<32x16xf32>, vector<32x32xf32> -> vector<32x32xf32>
    %cst_25 = arith.constant 2.500000e-01 : f32
    %45 = vector.broadcast %cst_25 : f32 to vector<32x32xf32>
    %46 = arith.mulf %44, %45 : vector<32x32xf32>
    %47 = vector.broadcast %3 : vector<1x32xf32> to vector<32x32xf32>
    %48 = arith.addf %46, %47 : vector<32x32xf32>
    %cst_26 = arith.constant dense<0xFF800000> : vector<32xf32>
    %49 = vector.multi_reduction <maximumf>, %48, %cst_26 [1] : vector<32x32xf32> to vector<32xf32>
    %50 = vector.shape_cast %49 : vector<32xf32> to vector<32x1xf32>
    %51 = vector.broadcast %50 : vector<32x1xf32> to vector<32x32xf32>
    %52 = arith.subf %48, %51 : vector<32x32xf32>
    %53 = math.exp %52 : vector<32x32xf32>
    %cst_27 = arith.constant dense<0.000000e+00> : vector<32xf32>
    %54 = vector.multi_reduction <add>, %53, %cst_27 [1] : vector<32x32xf32> to vector<32xf32>
    %55 = vector.shape_cast %54 : vector<32xf32> to vector<32x1xf32>
    %56 = tpu.reciprocal %55 {approx = true} : vector<32x1xf32> -> vector<32x1xf32>
    %57 = vector.broadcast %56 : vector<32x1xf32> to vector<32x32xf32>
    %58 = arith.mulf %53, %57 : vector<32x32xf32>
    %cst_28 = arith.constant dense<0.000000e+00> : vector<32x16xf32>
    %59 = tpu.matmul %58, %43, %cst_28 {dimension_numbers = #tpu.dot_dimension_numbers<[1], [0], [0], [1], [0, 0, 1, 1], [], []>} : vector<32x32xf32>, vector<32x16xf32>, vector<32x16xf32> -> vector<32x16xf32>
    %60 = arith.truncf %59 : vector<32x16xf32> to vector<32x16xbf16>
    %61 = vector.extract_strided_slice %33 {offsets = [0, 0], sizes = [16, 32], strides = [1, 1]} : vector<32x32xbf16> to vector<16x32xbf16>
    %cst_29 = arith.constant dense<0.000000e+00> : vector<32x32xf32>
    %62 = tpu.matmul %60, %61, %cst_29 {dimension_numbers = #tpu.dot_dimension_numbers<[1], [0], [0], [1], [0, 0, 1, 1], [], []>} : vector<32x16xbf16>, vector<16x32xbf16>, vector<32x32xf32> -> vector<32x32xf32>
    %63 = arith.addf %40, %62 : vector<32x32xf32>
    %64 = vector.extract_strided_slice %39 {offsets = [0, 16], sizes = [32, 16], strides = [1, 1]} : vector<32x96xf32> to vector<32x16xf32>
    %65 = vector.extract_strided_slice %39 {offsets = [0, 48], sizes = [32, 16], strides = [1, 1]} : vector<32x96xf32> to vector<32x16xf32>
    %66 = vector.extract_strided_slice %39 {offsets = [0, 80], sizes = [32, 16], strides = [1, 1]} : vector<32x96xf32> to vector<32x16xf32>
    %cst_30 = arith.constant dense<0.000000e+00> : vector<32x32xf32>
    %67 = tpu.matmul %64, %65, %cst_30 {dimension_numbers = #tpu.dot_dimension_numbers<[1], [1], [0], [0], [0, 0, 1, 0], [], []>} : vector<32x16xf32>, vector<32x16xf32>, vector<32x32xf32> -> vector<32x32xf32>
    %cst_31 = arith.constant 2.500000e-01 : f32
    %68 = vector.broadcast %cst_31 : f32 to vector<32x32xf32>
    %69 = arith.mulf %67, %68 : vector<32x32xf32>
    %70 = vector.broadcast %3 : vector<1x32xf32> to vector<32x32xf32>
    %71 = arith.addf %69, %70 : vector<32x32xf32>
    %cst_32 = arith.constant dense<0xFF800000> : vector<32xf32>
    %72 = vector.multi_reduction <maximumf>, %71, %cst_32 [1] : vector<32x32xf32> to vector<32xf32>
    %73 = vector.shape_cast %72 : vector<32xf32> to vector<32x1xf32>
    %74 = vector.broadcast %73 : vector<32x1xf32> to vector<32x32xf32>
    %75 = arith.subf %71, %74 : vector<32x32xf32>
    %76 = math.exp %75 : vector<32x32xf32>
    %cst_33 = arith.constant dense<0.000000e+00> : vector<32xf32>
    %77 = vector.multi_reduction <add>, %76, %cst_33 [1] : vector<32x32xf32> to vector<32xf32>
    %78 = vector.shape_cast %77 : vector<32xf32> to vector<32x1xf32>
    %79 = tpu.reciprocal %78 {approx = true} : vector<32x1xf32> -> vector<32x1xf32>
    %80 = vector.broadcast %79 : vector<32x1xf32> to vector<32x32xf32>
    %81 = arith.mulf %76, %80 : vector<32x32xf32>
    %cst_34 = arith.constant dense<0.000000e+00> : vector<32x16xf32>
    %82 = tpu.matmul %81, %66, %cst_34 {dimension_numbers = #tpu.dot_dimension_numbers<[1], [0], [0], [1], [0, 0, 1, 1], [], []>} : vector<32x32xf32>, vector<32x16xf32>, vector<32x16xf32> -> vector<32x16xf32>
    %83 = arith.truncf %82 : vector<32x16xf32> to vector<32x16xbf16>
    %84 = vector.extract_strided_slice %33 {offsets = [16, 0], sizes = [16, 32], strides = [1, 1]} : vector<32x32xbf16> to vector<16x32xbf16>
    %cst_35 = arith.constant dense<0.000000e+00> : vector<32x32xf32>
    %85 = tpu.matmul %83, %84, %cst_35 {dimension_numbers = #tpu.dot_dimension_numbers<[1], [0], [0], [1], [0, 0, 1, 1], [], []>} : vector<32x16xbf16>, vector<16x32xbf16>, vector<32x32xf32> -> vector<32x32xf32>
    %86 = arith.addf %63, %85 : vector<32x32xf32>
    %c0_36 = arith.constant 0 : index
    %c0_37 = arith.constant 0 : index
    %c0_38 = arith.constant 0 : index
    %87 = vector.load %arg8[%c0_36, %c0_37, %c0_38] : memref<2x1x32xf32, #tpu.memory_space<vmem>>, vector<1x1x32xf32>
    %88 = vector.shape_cast %87 : vector<1x1x32xf32> to vector<1x32xf32>
    %89 = vector.broadcast %88 : vector<1x32xf32> to vector<32x32xf32>
    %90 = arith.addf %86, %89 : vector<32x32xf32>
    %91 = arith.addf %29, %90 : vector<32x32xf32>
    %c0_39 = arith.constant 0 : index
    %c0_40 = arith.constant 0 : index
    %c0_41 = arith.constant 0 : index
    %92 = vector.load %arg9[%c0_39, %c0_40, %c0_41] : memref<2x1x32xf32, #tpu.memory_space<vmem>>, vector<1x1x32xf32>
    %93 = vector.shape_cast %92 : vector<1x1x32xf32> to vector<1x32xf32>
    %c0_42 = arith.constant 0 : index
    %c0_43 = arith.constant 0 : index
    %c0_44 = arith.constant 0 : index
    %94 = vector.load %arg10[%c0_42, %c0_43, %c0_44] : memref<2x1x32xf32, #tpu.memory_space<vmem>>, vector<1x1x32xf32>
    %95 = vector.shape_cast %94 : vector<1x1x32xf32> to vector<1x32xf32>
    %cst_45 = arith.constant dense<0.000000e+00> : vector<32xf32>
    %96 = vector.multi_reduction <add>, %91, %cst_45 [1] : vector<32x32xf32> to vector<32xf32>
    %97 = vector.shape_cast %96 : vector<32xf32> to vector<32x1xf32>
    %cst_46 = arith.constant 3.200000e+01 : f32
    %98 = vector.broadcast %cst_46 : f32 to vector<32x1xf32>
    %99 = arith.divf %97, %98 : vector<32x1xf32>
    %100 = vector.broadcast %99 : vector<32x1xf32> to vector<32x32xf32>
    %101 = arith.subf %91, %100 : vector<32x32xf32>
    %102 = vector.broadcast %99 : vector<32x1xf32> to vector<32x32xf32>
    %103 = arith.subf %91, %102 : vector<32x32xf32>
    %104 = arith.mulf %101, %103 : vector<32x32xf32>
    %cst_47 = arith.constant dense<0.000000e+00> : vector<32xf32>
    %105 = vector.multi_reduction <add>, %104, %cst_47 [1] : vector<32x32xf32> to vector<32xf32>
    %106 = vector.shape_cast %105 : vector<32xf32> to vector<32x1xf32>
    %cst_48 = arith.constant 3.200000e+01 : f32
    %107 = vector.broadcast %cst_48 : f32 to vector<32x1xf32>
    %108 = arith.divf %106, %107 : vector<32x1xf32>
    %109 = vector.broadcast %99 : vector<32x1xf32> to vector<32x32xf32>
    %110 = arith.subf %91, %109 : vector<32x32xf32>
    %cst_49 = arith.constant 9.99999996E-13 : f32
    %111 = vector.broadcast %cst_49 : f32 to vector<32x1xf32>
    %112 = arith.addf %108, %111 : vector<32x1xf32>
    %113 = math.rsqrt %112 : vector<32x1xf32>
    %114 = vector.broadcast %113 : vector<32x1xf32> to vector<32x32xf32>
    %115 = arith.mulf %110, %114 : vector<32x32xf32>
    %116 = vector.broadcast %93 : vector<1x32xf32> to vector<32x32xf32>
    %117 = arith.mulf %115, %116 : vector<32x32xf32>
    %118 = vector.broadcast %95 : vector<1x32xf32> to vector<32x32xf32>
    %119 = arith.addf %117, %118 : vector<32x32xf32>
    %120 = arith.truncf %119 : vector<32x32xf32> to vector<32x32xbf16>
    %c0_50 = arith.constant 0 : index
    %c0_51 = arith.constant 0 : index
    %c0_52 = arith.constant 0 : index
    %121 = vector.load %arg11[%c0_50, %c0_51, %c0_52] : memref<2x32x64xbf16, #tpu.memory_space<vmem>>, vector<1x32x64xbf16>
    %122 = vector.shape_cast %121 : vector<1x32x64xbf16> to vector<32x64xbf16>
    %cst_53 = arith.constant dense<0.000000e+00> : vector<32x64xf32>
    %123 = tpu.matmul %120, %122, %cst_53 {dimension_numbers = #tpu.dot_dimension_numbers<[1], [0], [0], [1], [0, 0, 1, 1], [], []>} : vector<32x32xbf16>, vector<32x64xbf16>, vector<32x64xf32> -> vector<32x64xf32>
    %c0_54 = arith.constant 0 : index
    %c0_55 = arith.constant 0 : index
    %c0_56 = arith.constant 0 : index
    %124 = vector.load %arg12[%c0_54, %c0_55, %c0_56] : memref<2x1x64xf32, #tpu.memory_space<vmem>>, vector<1x1x64xf32>
    %125 = vector.shape_cast %124 : vector<1x1x64xf32> to vector<1x64xf32>
    %126 = vector.broadcast %125 : vector<1x64xf32> to vector<32x64xf32>
    %127 = arith.addf %123, %126 : vector<32x64xf32>
    %cst_57 = arith.constant 5.000000e-01 : f32
    %128 = vector.broadcast %cst_57 : f32 to vector<32x64xf32>
    %129 = arith.mulf %128, %127 : vector<32x64xf32>
    %cst_58 = arith.constant 4.471500e-02 : f32
    %130 = vector.broadcast %cst_58 : f32 to vector<32x64xf32>
    %131 = arith.mulf %130, %127 : vector<32x64xf32>
    %132 = arith.mulf %131, %127 : vector<32x64xf32>
    %133 = arith.mulf %132, %127 : vector<32x64xf32>
    %134 = arith.addf %127, %133 : vector<32x64xf32>
    %cst_59 = arith.constant 0.797884583 : f32
    %135 = vector.broadcast %cst_59 : f32 to vector<32x64xf32>
    %136 = arith.mulf %135, %134 : vector<32x64xf32>
    %137 = math.tanh %136 : vector<32x64xf32>
    %cst_60 = arith.constant 1.000000e+00 : f32
    %138 = vector.broadcast %cst_60 : f32 to vector<32x64xf32>
    %139 = arith.addf %138, %137 : vector<32x64xf32>
    %140 = arith.mulf %129, %139 : vector<32x64xf32>
    %141 = arith.truncf %140 : vector<32x64xf32> to vector<32x64xbf16>
    %c0_61 = arith.constant 0 : index
    %c0_62 = arith.constant 0 : index
    %c0_63 = arith.constant 0 : index
    %142 = vector.load %arg13[%c0_61, %c0_62, %c0_63] : memref<2x64x32xbf16, #tpu.memory_space<vmem>>, vector<1x64x32xbf16>
    %143 = vector.shape_cast %142 : vector<1x64x32xbf16> to vector<64x32xbf16>
    %cst_64 = arith.constant dense<0.000000e+00> : vector<32x32xf32>
    %144 = tpu.matmul %141, %143, %cst_64 {dimension_numbers = #tpu.dot_dimension_numbers<[1], [0], [0], [1], [0, 0, 1, 1], [], []>} : vector<32x64xbf16>, vector<64x32xbf16>, vector<32x32xf32> -> vector<32x32xf32>
    %c0_65 = arith.constant 0 : index
    %c0_66 = arith.constant 0 : index
    %c0_67 = arith.constant 0 : index
    %145 = vector.load %arg14[%c0_65, %c0_66, %c0_67] : memref<2x1x32xf32, #tpu.memory_space<vmem>>, vector<1x1x32xf32>
    %146 = vector.shape_cast %145 : vector<1x1x32xf32> to vector<1x32xf32>
    %147 = vector.broadcast %146 : vector<1x32xf32> to vector<32x32xf32>
    %148 = arith.addf %144, %147 : vector<32x32xf32>
    %149 = arith.addf %119, %148 : vector<32x32xf32>
    %c0_68 = arith.constant 0 : index
    %c0_69 = arith.constant 0 : index
    %c0_70 = arith.constant 0 : index
    %150 = vector.load %arg15[%c0_68, %c0_69, %c0_70] : memref<2x1x32xf32, #tpu.memory_space<vmem>>, vector<1x1x32xf32>
    %151 = vector.shape_cast %150 : vector<1x1x32xf32> to vector<1x32xf32>
    %c0_71 = arith.constant 0 : index
    %c0_72 = arith.constant 0 : index
    %c0_73 = arith.constant 0 : index
    %152 = vector.load %arg16[%c0_71, %c0_72, %c0_73] : memref<2x1x32xf32, #tpu.memory_space<vmem>>, vector<1x1x32xf32>
    %153 = vector.shape_cast %152 : vector<1x1x32xf32> to vector<1x32xf32>
    %cst_74 = arith.constant dense<0.000000e+00> : vector<32xf32>
    %154 = vector.multi_reduction <add>, %149, %cst_74 [1] : vector<32x32xf32> to vector<32xf32>
    %155 = vector.shape_cast %154 : vector<32xf32> to vector<32x1xf32>
    %cst_75 = arith.constant 3.200000e+01 : f32
    %156 = vector.broadcast %cst_75 : f32 to vector<32x1xf32>
    %157 = arith.divf %155, %156 : vector<32x1xf32>
    %158 = vector.broadcast %157 : vector<32x1xf32> to vector<32x32xf32>
    %159 = arith.subf %149, %158 : vector<32x32xf32>
    %160 = vector.broadcast %157 : vector<32x1xf32> to vector<32x32xf32>
    %161 = arith.subf %149, %160 : vector<32x32xf32>
    %162 = arith.mulf %159, %161 : vector<32x32xf32>
    %cst_76 = arith.constant dense<0.000000e+00> : vector<32xf32>
    %163 = vector.multi_reduction <add>, %162, %cst_76 [1] : vector<32x32xf32> to vector<32xf32>
    %164 = vector.shape_cast %163 : vector<32xf32> to vector<32x1xf32>
    %cst_77 = arith.constant 3.200000e+01 : f32
    %165 = vector.broadcast %cst_77 : f32 to vector<32x1xf32>
    %166 = arith.divf %164, %165 : vector<32x1xf32>
    %167 = vector.broadcast %157 : vector<32x1xf32> to vector<32x32xf32>
    %168 = arith.subf %149, %167 : vector<32x32xf32>
    %cst_78 = arith.constant 9.99999996E-13 : f32
    %169 = vector.broadcast %cst_78 : f32 to vector<32x1xf32>
    %170 = arith.addf %166, %169 : vector<32x1xf32>
    %171 = math.rsqrt %170 : vector<32x1xf32>
    %172 = vector.broadcast %171 : vector<32x1xf32> to vector<32x32xf32>
    %173 = arith.mulf %168, %172 : vector<32x32xf32>
    %174 = vector.broadcast %151 : vector<1x32xf32> to vector<32x32xf32>
    %175 = arith.mulf %173, %174 : vector<32x32xf32>
    %176 = vector.broadcast %153 : vector<1x32xf32> to vector<32x32xf32>
    %177 = arith.addf %175, %176 : vector<32x32xf32>
    %c1 = arith.constant 1 : index
    %c0_79 = arith.constant 0 : index
    %c0_80 = arith.constant 0 : index
    %178 = vector.load %arg5[%c1, %c0_79, %c0_80] : memref<2x32x96xbf16, #tpu.memory_space<vmem>>, vector<1x32x96xbf16>
    %179 = vector.shape_cast %178 : vector<1x32x96xbf16> to vector<32x96xbf16>
    %c1_81 = arith.constant 1 : index
    %c0_82 = arith.constant 0 : index
    %c0_83 = arith.constant 0 : index
    %180 = vector.load %arg7[%c1_81, %c0_82, %c0_83] : memref<2x32x32xbf16, #tpu.memory_space<vmem>>, vector<1x32x32xbf16>
    %181 = vector.shape_cast %180 : vector<1x32x32xbf16> to vector<32x32xbf16>
    %182 = arith.truncf %177 : vector<32x32xf32> to vector<32x32xbf16>
    %cst_84 = arith.constant dense<0.000000e+00> : vector<32x96xf32>
    %183 = tpu.matmul %182, %179, %cst_84 {dimension_numbers = #tpu.dot_dimension_numbers<[1], [0], [0], [1], [0, 0, 1, 1], [], []>} : vector<32x32xbf16>, vector<32x96xbf16>, vector<32x96xf32> -> vector<32x96xf32>
    %c1_85 = arith.constant 1 : index
    %c0_86 = arith.constant 0 : index
    %c0_87 = arith.constant 0 : index
    %184 = vector.load %arg6[%c1_85, %c0_86, %c0_87] : memref<2x1x96xf32, #tpu.memory_space<vmem>>, vector<1x1x96xf32>
    %185 = vector.shape_cast %184 : vector<1x1x96xf32> to vector<1x96xf32>
    %186 = vector.broadcast %185 : vector<1x96xf32> to vector<32x96xf32>
    %187 = arith.addf %183, %186 : vector<32x96xf32>
    %cst_88 = arith.constant 0.000000e+00 : f32
    %188 = vector.broadcast %cst_88 : f32 to vector<32x32xf32>
    %189 = vector.extract_strided_slice %187 {offsets = [0, 0], sizes = [32, 16], strides = [1, 1]} : vector<32x96xf32> to vector<32x16xf32>
    %190 = vector.extract_strided_slice %187 {offsets = [0, 32], sizes = [32, 16], strides = [1, 1]} : vector<32x96xf32> to vector<32x16xf32>
    %191 = vector.extract_strided_slice %187 {offsets = [0, 64], sizes = [32, 16], strides = [1, 1]} : vector<32x96xf32> to vector<32x16xf32>
    %cst_89 = arith.constant dense<0.000000e+00> : vector<32x32xf32>
    %192 = tpu.matmul %189, %190, %cst_89 {dimension_numbers = #tpu.dot_dimension_numbers<[1], [1], [0], [0], [0, 0, 1, 0], [], []>} : vector<32x16xf32>, vector<32x16xf32>, vector<32x32xf32> -> vector<32x32xf32>
    %cst_90 = arith.constant 2.500000e-01 : f32
    %193 = vector.broadcast %cst_90 : f32 to vector<32x32xf32>
    %194 = arith.mulf %192, %193 : vector<32x32xf32>
    %195 = vector.broadcast %3 : vector<1x32xf32> to vector<32x32xf32>
    %196 = arith.addf %194, %195 : vector<32x32xf32>
    %cst_91 = arith.constant dense<0xFF800000> : vector<32xf32>
    %197 = vector.multi_reduction <maximumf>, %196, %cst_91 [1] : vector<32x32xf32> to vector<32xf32>
    %198 = vector.shape_cast %197 : vector<32xf32> to vector<32x1xf32>
    %199 = vector.broadcast %198 : vector<32x1xf32> to vector<32x32xf32>
    %200 = arith.subf %196, %199 : vector<32x32xf32>
    %201 = math.exp %200 : vector<32x32xf32>
    %cst_92 = arith.constant dense<0.000000e+00> : vector<32xf32>
    %202 = vector.multi_reduction <add>, %201, %cst_92 [1] : vector<32x32xf32> to vector<32xf32>
    %203 = vector.shape_cast %202 : vector<32xf32> to vector<32x1xf32>
    %204 = tpu.reciprocal %203 {approx = true} : vector<32x1xf32> -> vector<32x1xf32>
    %205 = vector.broadcast %204 : vector<32x1xf32> to vector<32x32xf32>
    %206 = arith.mulf %201, %205 : vector<32x32xf32>
    %cst_93 = arith.constant dense<0.000000e+00> : vector<32x16xf32>
    %207 = tpu.matmul %206, %191, %cst_93 {dimension_numbers = #tpu.dot_dimension_numbers<[1], [0], [0], [1], [0, 0, 1, 1], [], []>} : vector<32x32xf32>, vector<32x16xf32>, vector<32x16xf32> -> vector<32x16xf32>
    %208 = arith.truncf %207 : vector<32x16xf32> to vector<32x16xbf16>
    %209 = vector.extract_strided_slice %181 {offsets = [0, 0], sizes = [16, 32], strides = [1, 1]} : vector<32x32xbf16> to vector<16x32xbf16>
    %cst_94 = arith.constant dense<0.000000e+00> : vector<32x32xf32>
    %210 = tpu.matmul %208, %209, %cst_94 {dimension_numbers = #tpu.dot_dimension_numbers<[1], [0], [0], [1], [0, 0, 1, 1], [], []>} : vector<32x16xbf16>, vector<16x32xbf16>, vector<32x32xf32> -> vector<32x32xf32>
    %211 = arith.addf %188, %210 : vector<32x32xf32>
    %212 = vector.extract_strided_slice %187 {offsets = [0, 16], sizes = [32, 16], strides = [1, 1]} : vector<32x96xf32> to vector<32x16xf32>
    %213 = vector.extract_strided_slice %187 {offsets = [0, 48], sizes = [32, 16], strides = [1, 1]} : vector<32x96xf32> to vector<32x16xf32>
    %214 = vector.extract_strided_slice %187 {offsets = [0, 80], sizes = [32, 16], strides = [1, 1]} : vector<32x96xf32> to vector<32x16xf32>
    %cst_95 = arith.constant dense<0.000000e+00> : vector<32x32xf32>
    %215 = tpu.matmul %212, %213, %cst_95 {dimension_numbers = #tpu.dot_dimension_numbers<[1], [1], [0], [0], [0, 0, 1, 0], [], []>} : vector<32x16xf32>, vector<32x16xf32>, vector<32x32xf32> -> vector<32x32xf32>
    %cst_96 = arith.constant 2.500000e-01 : f32
    %216 = vector.broadcast %cst_96 : f32 to vector<32x32xf32>
    %217 = arith.mulf %215, %216 : vector<32x32xf32>
    %218 = vector.broadcast %3 : vector<1x32xf32> to vector<32x32xf32>
    %219 = arith.addf %217, %218 : vector<32x32xf32>
    %cst_97 = arith.constant dense<0xFF800000> : vector<32xf32>
    %220 = vector.multi_reduction <maximumf>, %219, %cst_97 [1] : vector<32x32xf32> to vector<32xf32>
    %221 = vector.shape_cast %220 : vector<32xf32> to vector<32x1xf32>
    %222 = vector.broadcast %221 : vector<32x1xf32> to vector<32x32xf32>
    %223 = arith.subf %219, %222 : vector<32x32xf32>
    %224 = math.exp %223 : vector<32x32xf32>
    %cst_98 = arith.constant dense<0.000000e+00> : vector<32xf32>
    %225 = vector.multi_reduction <add>, %224, %cst_98 [1] : vector<32x32xf32> to vector<32xf32>
    %226 = vector.shape_cast %225 : vector<32xf32> to vector<32x1xf32>
    %227 = tpu.reciprocal %226 {approx = true} : vector<32x1xf32> -> vector<32x1xf32>
    %228 = vector.broadcast %227 : vector<32x1xf32> to vector<32x32xf32>
    %229 = arith.mulf %224, %228 : vector<32x32xf32>
    %cst_99 = arith.constant dense<0.000000e+00> : vector<32x16xf32>
    %230 = tpu.matmul %229, %214, %cst_99 {dimension_numbers = #tpu.dot_dimension_numbers<[1], [0], [0], [1], [0, 0, 1, 1], [], []>} : vector<32x32xf32>, vector<32x16xf32>, vector<32x16xf32> -> vector<32x16xf32>
    %231 = arith.truncf %230 : vector<32x16xf32> to vector<32x16xbf16>
    %232 = vector.extract_strided_slice %181 {offsets = [16, 0], sizes = [16, 32], strides = [1, 1]} : vector<32x32xbf16> to vector<16x32xbf16>
    %cst_100 = arith.constant dense<0.000000e+00> : vector<32x32xf32>
    %233 = tpu.matmul %231, %232, %cst_100 {dimension_numbers = #tpu.dot_dimension_numbers<[1], [0], [0], [1], [0, 0, 1, 1], [], []>} : vector<32x16xbf16>, vector<16x32xbf16>, vector<32x32xf32> -> vector<32x32xf32>
    %234 = arith.addf %211, %233 : vector<32x32xf32>
    %c1_101 = arith.constant 1 : index
    %c0_102 = arith.constant 0 : index
    %c0_103 = arith.constant 0 : index
    %235 = vector.load %arg8[%c1_101, %c0_102, %c0_103] : memref<2x1x32xf32, #tpu.memory_space<vmem>>, vector<1x1x32xf32>
    %236 = vector.shape_cast %235 : vector<1x1x32xf32> to vector<1x32xf32>
    %237 = vector.broadcast %236 : vector<1x32xf32> to vector<32x32xf32>
    %238 = arith.addf %234, %237 : vector<32x32xf32>
    %239 = arith.addf %177, %238 : vector<32x32xf32>
    %c1_104 = arith.constant 1 : index
    %c0_105 = arith.constant 0 : index
    %c0_106 = arith.constant 0 : index
    %240 = vector.load %arg9[%c1_104, %c0_105, %c0_106] : memref<2x1x32xf32, #tpu.memory_space<vmem>>, vector<1x1x32xf32>
    %241 = vector.shape_cast %240 : vector<1x1x32xf32> to vector<1x32xf32>
    %c1_107 = arith.constant 1 : index
    %c0_108 = arith.constant 0 : index
    %c0_109 = arith.constant 0 : index
    %242 = vector.load %arg10[%c1_107, %c0_108, %c0_109] : memref<2x1x32xf32, #tpu.memory_space<vmem>>, vector<1x1x32xf32>
    %243 = vector.shape_cast %242 : vector<1x1x32xf32> to vector<1x32xf32>
    %cst_110 = arith.constant dense<0.000000e+00> : vector<32xf32>
    %244 = vector.multi_reduction <add>, %239, %cst_110 [1] : vector<32x32xf32> to vector<32xf32>
    %245 = vector.shape_cast %244 : vector<32xf32> to vector<32x1xf32>
    %cst_111 = arith.constant 3.200000e+01 : f32
    %246 = vector.broadcast %cst_111 : f32 to vector<32x1xf32>
    %247 = arith.divf %245, %246 : vector<32x1xf32>
    %248 = vector.broadcast %247 : vector<32x1xf32> to vector<32x32xf32>
    %249 = arith.subf %239, %248 : vector<32x32xf32>
    %250 = vector.broadcast %247 : vector<32x1xf32> to vector<32x32xf32>
    %251 = arith.subf %239, %250 : vector<32x32xf32>
    %252 = arith.mulf %249, %251 : vector<32x32xf32>
    %cst_112 = arith.constant dense<0.000000e+00> : vector<32xf32>
    %253 = vector.multi_reduction <add>, %252, %cst_112 [1] : vector<32x32xf32> to vector<32xf32>
    %254 = vector.shape_cast %253 : vector<32xf32> to vector<32x1xf32>
    %cst_113 = arith.constant 3.200000e+01 : f32
    %255 = vector.broadcast %cst_113 : f32 to vector<32x1xf32>
    %256 = arith.divf %254, %255 : vector<32x1xf32>
    %257 = vector.broadcast %247 : vector<32x1xf32> to vector<32x32xf32>
    %258 = arith.subf %239, %257 : vector<32x32xf32>
    %cst_114 = arith.constant 9.99999996E-13 : f32
    %259 = vector.broadcast %cst_114 : f32 to vector<32x1xf32>
    %260 = arith.addf %256, %259 : vector<32x1xf32>
    %261 = math.rsqrt %260 : vector<32x1xf32>
    %262 = vector.broadcast %261 : vector<32x1xf32> to vector<32x32xf32>
    %263 = arith.mulf %258, %262 : vector<32x32xf32>
    %264 = vector.broadcast %241 : vector<1x32xf32> to vector<32x32xf32>
    %265 = arith.mulf %263, %264 : vector<32x32xf32>
    %266 = vector.broadcast %243 : vector<1x32xf32> to vector<32x32xf32>
    %267 = arith.addf %265, %266 : vector<32x32xf32>
    %268 = arith.truncf %267 : vector<32x32xf32> to vector<32x32xbf16>
    %c1_115 = arith.constant 1 : index
    %c0_116 = arith.constant 0 : index
    %c0_117 = arith.constant 0 : index
    %269 = vector.load %arg11[%c1_115, %c0_116, %c0_117] : memref<2x32x64xbf16, #tpu.memory_space<vmem>>, vector<1x32x64xbf16>
    %270 = vector.shape_cast %269 : vector<1x32x64xbf16> to vector<32x64xbf16>
    %cst_118 = arith.constant dense<0.000000e+00> : vector<32x64xf32>
    %271 = tpu.matmul %268, %270, %cst_118 {dimension_numbers = #tpu.dot_dimension_numbers<[1], [0], [0], [1], [0, 0, 1, 1], [], []>} : vector<32x32xbf16>, vector<32x64xbf16>, vector<32x64xf32> -> vector<32x64xf32>
    %c1_119 = arith.constant 1 : index
    %c0_120 = arith.constant 0 : index
    %c0_121 = arith.constant 0 : index
    %272 = vector.load %arg12[%c1_119, %c0_120, %c0_121] : memref<2x1x64xf32, #tpu.memory_space<vmem>>, vector<1x1x64xf32>
    %273 = vector.shape_cast %272 : vector<1x1x64xf32> to vector<1x64xf32>
    %274 = vector.broadcast %273 : vector<1x64xf32> to vector<32x64xf32>
    %275 = arith.addf %271, %274 : vector<32x64xf32>
    %cst_122 = arith.constant 5.000000e-01 : f32
    %276 = vector.broadcast %cst_122 : f32 to vector<32x64xf32>
    %277 = arith.mulf %276, %275 : vector<32x64xf32>
    %cst_123 = arith.constant 4.471500e-02 : f32
    %278 = vector.broadcast %cst_123 : f32 to vector<32x64xf32>
    %279 = arith.mulf %278, %275 : vector<32x64xf32>
    %280 = arith.mulf %279, %275 : vector<32x64xf32>
    %281 = arith.mulf %280, %275 : vector<32x64xf32>
    %282 = arith.addf %275, %281 : vector<32x64xf32>
    %cst_124 = arith.constant 0.797884583 : f32
    %283 = vector.broadcast %cst_124 : f32 to vector<32x64xf32>
    %284 = arith.mulf %283, %282 : vector<32x64xf32>
    %285 = math.tanh %284 : vector<32x64xf32>
    %cst_125 = arith.constant 1.000000e+00 : f32
    %286 = vector.broadcast %cst_125 : f32 to vector<32x64xf32>
    %287 = arith.addf %286, %285 : vector<32x64xf32>
    %288 = arith.mulf %277, %287 : vector<32x64xf32>
    %289 = arith.truncf %288 : vector<32x64xf32> to vector<32x64xbf16>
    %c1_126 = arith.constant 1 : index
    %c0_127 = arith.constant 0 : index
    %c0_128 = arith.constant 0 : index
    %290 = vector.load %arg13[%c1_126, %c0_127, %c0_128] : memref<2x64x32xbf16, #tpu.memory_space<vmem>>, vector<1x64x32xbf16>
    %291 = vector.shape_cast %290 : vector<1x64x32xbf16> to vector<64x32xbf16>
    %cst_129 = arith.constant dense<0.000000e+00> : vector<32x32xf32>
    %292 = tpu.matmul %289, %291, %cst_129 {dimension_numbers = #tpu.dot_dimension_numbers<[1], [0], [0], [1], [0, 0, 1, 1], [], []>} : vector<32x64xbf16>, vector<64x32xbf16>, vector<32x32xf32> -> vector<32x32xf32>
    %c1_130 = arith.constant 1 : index
    %c0_131 = arith.constant 0 : index
    %c0_132 = arith.constant 0 : index
    %293 = vector.load %arg14[%c1_130, %c0_131, %c0_132] : memref<2x1x32xf32, #tpu.memory_space<vmem>>, vector<1x1x32xf32>
    %294 = vector.shape_cast %293 : vector<1x1x32xf32> to vector<1x32xf32>
    %295 = vector.broadcast %294 : vector<1x32xf32> to vector<32x32xf32>
    %296 = arith.addf %292, %295 : vector<32x32xf32>
    %297 = arith.addf %267, %296 : vector<32x32xf32>
    %c1_133 = arith.constant 1 : index
    %c0_134 = arith.constant 0 : index
    %c0_135 = arith.constant 0 : index
    %298 = vector.load %arg15[%c1_133, %c0_134, %c0_135] : memref<2x1x32xf32, #tpu.memory_space<vmem>>, vector<1x1x32xf32>
    %299 = vector.shape_cast %298 : vector<1x1x32xf32> to vector<1x32xf32>
    %c1_136 = arith.constant 1 : index
    %c0_137 = arith.constant 0 : index
    %c0_138 = arith.constant 0 : index
    %300 = vector.load %arg16[%c1_136, %c0_137, %c0_138] : memref<2x1x32xf32, #tpu.memory_space<vmem>>, vector<1x1x32xf32>
    %301 = vector.shape_cast %300 : vector<1x1x32xf32> to vector<1x32xf32>
    %cst_139 = arith.constant dense<0.000000e+00> : vector<32xf32>
    %302 = vector.multi_reduction <add>, %297, %cst_139 [1] : vector<32x32xf32> to vector<32xf32>
    %303 = vector.shape_cast %302 : vector<32xf32> to vector<32x1xf32>
    %cst_140 = arith.constant 3.200000e+01 : f32
    %304 = vector.broadcast %cst_140 : f32 to vector<32x1xf32>
    %305 = arith.divf %303, %304 : vector<32x1xf32>
    %306 = vector.broadcast %305 : vector<32x1xf32> to vector<32x32xf32>
    %307 = arith.subf %297, %306 : vector<32x32xf32>
    %308 = vector.broadcast %305 : vector<32x1xf32> to vector<32x32xf32>
    %309 = arith.subf %297, %308 : vector<32x32xf32>
    %310 = arith.mulf %307, %309 : vector<32x32xf32>
    %cst_141 = arith.constant dense<0.000000e+00> : vector<32xf32>
    %311 = vector.multi_reduction <add>, %310, %cst_141 [1] : vector<32x32xf32> to vector<32xf32>
    %312 = vector.shape_cast %311 : vector<32xf32> to vector<32x1xf32>
    %cst_142 = arith.constant 3.200000e+01 : f32
    %313 = vector.broadcast %cst_142 : f32 to vector<32x1xf32>
    %314 = arith.divf %312, %313 : vector<32x1xf32>
    %315 = vector.broadcast %305 : vector<32x1xf32> to vector<32x32xf32>
    %316 = arith.subf %297, %315 : vector<32x32xf32>
    %cst_143 = arith.constant 9.99999996E-13 : f32
    %317 = vector.broadcast %cst_143 : f32 to vector<32x1xf32>
    %318 = arith.addf %314, %317 : vector<32x1xf32>
    %319 = math.rsqrt %318 : vector<32x1xf32>
    %320 = vector.broadcast %319 : vector<32x1xf32> to vector<32x32xf32>
    %321 = arith.mulf %316, %320 : vector<32x32xf32>
    %322 = vector.broadcast %299 : vector<1x32xf32> to vector<32x32xf32>
    %323 = arith.mulf %321, %322 : vector<32x32xf32>
    %324 = vector.broadcast %301 : vector<1x32xf32> to vector<32x32xf32>
    %325 = arith.addf %323, %324 : vector<32x32xf32>
    %c0_144 = arith.constant 0 : index
    %c0_145 = arith.constant 0 : index
    %c0_146 = arith.constant 0 : index
    %326 = vector.load %arg19[%c0_144, %c0_145, %c0_146] : memref<1x32x32xf32, #tpu.memory_space<vmem>>, vector<1x32x32xf32>
    %327 = vector.shape_cast %326 : vector<1x32x32xf32> to vector<32x32xf32>
    %328 = vector.shape_cast %325 : vector<32x32xf32> to vector<1x32x32xf32>
    tpu.vector_store %arg19[%c0_144, %c0_145, %c0_146], %328 {strides = array<i32>} : memref<1x32x32xf32, #tpu.memory_space<vmem>>, vector<1x32x32xf32>,
    %329 = vector.extract_strided_slice %325 {offsets = [0, 0], sizes = [1, 32], strides = [1, 1]} : vector<32x32xf32> to vector<1x32xf32>
    %330 = arith.truncf %329 : vector<1x32xf32> to vector<1x32xbf16>
    %c0_147 = arith.constant 0 : index
    %c0_148 = arith.constant 0 : index
    %331 = vector.load %arg17[%c0_147, %c0_148] : memref<32x32xbf16, #tpu.memory_space<vmem>>, vector<32x32xbf16>
    %cst_149 = arith.constant dense<0.000000e+00> : vector<1x32xf32>
    %332 = tpu.matmul %330, %331, %cst_149 {dimension_numbers = #tpu.dot_dimension_numbers<[1], [0], [0], [1], [0, 0, 1, 1], [], []>} : vector<1x32xbf16>, vector<32x32xbf16>, vector<1x32xf32> -> vector<1x32xf32>
    %c0_150 = arith.constant 0 : index
    %c0_151 = arith.constant 0 : index
    %333 = vector.load %arg18[%c0_150, %c0_151] : memref<1x32xf32, #tpu.memory_space<vmem>>, vector<1x32xf32>
    %334 = arith.addf %332, %333 : vector<1x32xf32>
    %335 = math.tanh %334 : vector<1x32xf32>
    %c0_152 = arith.constant 0 : index
    %c0_153 = arith.constant 0 : index
    %c0_154 = arith.constant 0 : index
    %336 = vector.load %arg20[%c0_152, %c0_153, %c0_154] : memref<1x1x32xf32, #tpu.memory_space<vmem>>, vector<1x1x32xf32>
    %337 = vector.shape_cast %336 : vector<1x1x32xf32> to vector<1x32xf32>
    %338 = vector.shape_cast %335 : vector<1x32xf32> to vector<1x1x32xf32>
    tpu.vector_store %arg20[%c0_152, %c0_153, %c0_154], %338 {strides = array<i32>} : memref<1x1x32xf32, #tpu.memory_space<vmem>>, vector<1x1x32xf32>,
    return
  }
  func.func @transform_0(%arg0: i32) -> (i32, i32, i32) {
    %c0_i32 = arith.constant 0 : i32
    %c0_i32_0 = arith.constant 0 : i32
    %c0_i32_1 = arith.constant 0 : i32
    return %arg0, %c0_i32, %c0_i32_0 : i32, i32, i32
  }
  func.func @transform_1(%arg0: i32) -> (i32, i32, i32) {
    %c0_i32 = arith.constant 0 : i32
    %c0_i32_0 = arith.constant 0 : i32
    %c0_i32_1 = arith.constant 0 : i32
    return %arg0, %c0_i32, %c0_i32_0 : i32, i32, i32
  }
  func.func @transform_2(%arg0: i32) -> (i32, i32) {
    %c0_i32 = arith.constant 0 : i32
    %c0_i32_0 = arith.constant 0 : i32
    %c0_i32_1 = arith.constant 0 : i32
    return %c0_i32, %c0_i32_0 : i32, i32
  }
  func.func @transform_3(%arg0: i32) -> (i32, i32) {
    %c0_i32 = arith.constant 0 : i32
    %c0_i32_0 = arith.constant 0 : i32
    %c0_i32_1 = arith.constant 0 : i32
    return %c0_i32, %c0_i32_0 : i32, i32
  }
  func.func @transform_4(%arg0: i32) -> (i32, i32, i32) {
    %c0_i32 = arith.constant 0 : i32
    %c0_i32_0 = arith.constant 0 : i32
    %c0_i32_1 = arith.constant 0 : i32
    %c0_i32_2 = arith.constant 0 : i32
    return %c0_i32, %c0_i32_0, %c0_i32_1 : i32, i32, i32
  }
  func.func @transform_5(%arg0: i32) -> (i32, i32, i32) {
    %c0_i32 = arith.constant 0 : i32
    %c0_i32_0 = arith.constant 0 : i32
    %c0_i32_1 = arith.constant 0 : i32
    %c0_i32_2 = arith.constant 0 : i32
    return %c0_i32, %c0_i32_0, %c0_i32_1 : i32, i32, i32
  }
  func.func @transform_6(%arg0: i32) -> (i32, i32, i32) {
    %c0_i32 = arith.constant 0 : i32
    %c0_i32_0 = arith.constant 0 : i32
    %c0_i32_1 = arith.constant 0 : i32
    %c0_i32_2 = arith.constant 0 : i32
    return %c0_i32, %c0_i32_0, %c0_i32_1 : i32, i32, i32
  }
  func.func @transform_7(%arg0: i32) -> (i32, i32, i32) {
    %c0_i32 = arith.constant 0 : i32
    %c0_i32_0 = arith.constant 0 : i32
    %c0_i32_1 = arith.constant 0 : i32
    %c0_i32_2 = arith.constant 0 : i32
    return %c0_i32, %c0_i32_0, %c0_i32_1 : i32, i32, i32
  }
  func.func @transform_8(%arg0: i32) -> (i32, i32, i32) {
    %c0_i32 = arith.constant 0 : i32
    %c0_i32_0 = arith.constant 0 : i32
    %c0_i32_1 = arith.constant 0 : i32
    %c0_i32_2 = arith.constant 0 : i32
    return %c0_i32, %c0_i32_0, %c0_i32_1 : i32, i32, i32
  }
  func.func @transform_9(%arg0: i32) -> (i32, i32, i32) {
    %c0_i32 = arith.constant 0 : i32
    %c0_i32_0 = arith.constant 0 : i32
    %c0_i32_1 = arith.constant 0 : i32
    %c0_i32_2 = arith.constant 0 : i32
    return %c0_i32, %c0_i32_0, %c0_i32_1 : i32, i32, i32
  }
  func.func @transform_10(%arg0: i32) -> (i32, i32, i32) {
    %c0_i32 = arith.constant 0 : i32
    %c0_i32_0 = arith.constant 0 : i32
    %c0_i32_1 = arith.constant 0 : i32
    %c0_i32_2 = arith.constant 0 : i32
    return %c0_i32, %c0_i32_0, %c0_i32_1 : i32, i32, i32
  }
  func.func @transform_11(%arg0: i32) -> (i32, i32, i32) {
    %c0_i32 = arith.constant 0 : i32
    %c0_i32_0 = arith.constant 0 : i32
    %c0_i32_1 = arith.constant 0 : i32
    %c0_i32_2 = arith.constant 0 : i32
    return %c0_i32, %c0_i32_0, %c0_i32_1 : i32, i32, i32
  }
  func.func @transform_12(%arg0: i32) -> (i32, i32, i32) {
    %c0_i32 = arith.constant 0 : i32
    %c0_i32_0 = arith.constant 0 : i32
    %c0_i32_1 = arith.constant 0 : i32
    %c0_i32_2 = arith.constant 0 : i32
    return %c0_i32, %c0_i32_0, %c0_i32_1 : i32, i32, i32
  }
  func.func @transform_13(%arg0: i32) -> (i32, i32, i32) {
    %c0_i32 = arith.constant 0 : i32
    %c0_i32_0 = arith.constant 0 : i32
    %c0_i32_1 = arith.constant 0 : i32
    %c0_i32_2 = arith.constant 0 : i32
    return %c0_i32, %c0_i32_0, %c0_i32_1 : i32, i32, i32
  }
  func.func @transform_14(%arg0: i32) -> (i32, i32, i32) {
    %c0_i32 = arith.constant 0 : i32
    %c0_i32_0 = arith.constant 0 : i32
    %c0_i32_1 = arith.constant 0 : i32
    %c0_i32_2 = arith.constant 0 : i32
    return %c0_i32, %c0_i32_0, %c0_i32_1 : i32, i32, i32
  }
  func.func @transform_15(%arg0: i32) -> (i32, i32, i32) {
    %c0_i32 = arith.constant 0 : i32
    %c0_i32_0 = arith.constant 0 : i32
    %c0_i32_1 = arith.constant 0 : i32
    %c0_i32_2 = arith.constant 0 : i32
    return %c0_i32, %c0_i32_0, %c0_i32_1 : i32, i32, i32
  }
  func.func @transform_16(%arg0: i32) -> (i32, i32) {
    %c0_i32 = arith.constant 0 : i32
    %c0_i32_0 = arith.constant 0 : i32
    %c0_i32_1 = arith.constant 0 : i32
    return %c0_i32, %c0_i32_0 : i32, i32
  }
  func.func @transform_17(%arg0: i32) -> (i32, i32) {
    %c0_i32 = arith.constant 0 : i32
    %c0_i32_0 = arith.constant 0 : i32
    %c0_i32_1 = arith.constant 0 : i32
    return %c0_i32, %c0_i32_0 : i32, i32
  }
  func.func @transform_18(%arg0: i32) -> (i32, i32, i32) {
    %c0_i32 = arith.constant 0 : i32
    %c0_i32_0 = arith.constant 0 : i32
    %c0_i32_1 = arith.constant 0 : i32
    return %arg0, %c0_i32, %c0_i32_0 : i32, i32, i32
  }
  func.func @transform_19(%arg0: i32) -> (i32, i32, i32) {
    %c0_i32 = arith.constant 0 : i32
    %c0_i32_0 = arith.constant 0 : i32
    %c0_i32_1 = arith.constant 0 : i32
    return %arg0, %c0_i32, %c0_i32_0 : i32, i32, i32
  }
}

module attributes {stable_mosaic.version = 11 : i64} {
  func.func @_head_kernel(%arg0: i32, %arg1: memref<1x30x32xf32, #tpu.memory_space<vmem>>, %arg2: memref<1x8x32xf32, #tpu.memory_space<vmem>>, %arg3: memref<1x8x32xf32, #tpu.memory_space<vmem>>, %arg4: memref<1x1x8xf32, #tpu.memory_space<vmem>>, %arg5: memref<1x1x32xf32, #tpu.memory_space<vmem>>, %arg6: memref<32x6xf32, #tpu.memory_space<vmem>>, %arg7: memref<1x6xf32, #tpu.memory_space<vmem>>, %arg8: memref<32x4xf32, #tpu.memory_space<vmem>>, %arg9: memref<1x4xf32, #tpu.memory_space<vmem>>, %arg10: memref<32x5xf32, #tpu.memory_space<vmem>>, %arg11: memref<1x5xf32, #tpu.memory_space<vmem>>, %arg12: memref<1x8x6xf32, #tpu.memory_space<vmem>>, %arg13: memref<1x30x4xf32, #tpu.memory_space<vmem>>, %arg14: memref<1x1x5xf32, #tpu.memory_space<vmem>>, %arg15: memref<1x30x32xf32, #tpu.memory_space<vmem>>) attributes {dimension_semantics = [#tpu.dimension_semantics<parallel>], iteration_bounds = array<i64: 2>, scalar_prefetch = 0 : i64, scratch_operands = 0 : i64, tpu.core_type = #tpu.core_type<tc>, window_params = [{transform_indices = @transform_0, window_bounds = array<i64: 1, 30, 32>}, {transform_indices = @transform_1, window_bounds = array<i64: 1, 8, 32>}, {transform_indices = @transform_2, window_bounds = array<i64: 1, 8, 32>}, {transform_indices = @transform_3, window_bounds = array<i64: 1, 1, 8>}, {transform_indices = @transform_4, window_bounds = array<i64: 1, 1, 32>}, {pipeline_mode = #tpu.pipeline_mode<synchronous>, transform_indices = @transform_5, window_bounds = array<i64: 32, 6>}, {pipeline_mode = #tpu.pipeline_mode<synchronous>, transform_indices = @transform_6, window_bounds = array<i64: 1, 6>}, {pipeline_mode = #tpu.pipeline_mode<synchronous>, transform_indices = @transform_7, window_bounds = array<i64: 32, 4>}, {pipeline_mode = #tpu.pipeline_mode<synchronous>, transform_indices = @transform_8, window_bounds = array<i64: 1, 4>}, {pipeline_mode = #tpu.pipeline_mode<synchronous>, transform_indices = @transform_9, window_bounds = array<i64: 32, 5>}, {pipeline_mode = #tpu.pipeline_mode<synchronous>, transform_indices = @transform_10, window_bounds = array<i64: 1, 5>}, {transform_indices = @transform_11, window_bounds = array<i64: 1, 8, 6>}, {transform_indices = @transform_12, window_bounds = array<i64: 1, 30, 4>}, {transform_indices = @transform_13, window_bounds = array<i64: 1, 1, 5>}, {transform_indices = @transform_14, window_bounds = array<i64: 1, 30, 32>}]} {
    %c0 = arith.constant 0 : index
    %c0_0 = arith.constant 0 : index
    %c0_1 = arith.constant 0 : index
    %0 = vector.load %arg1[%c0, %c0_0, %c0_1] : memref<1x30x32xf32, #tpu.memory_space<vmem>>, vector<1x30x32xf32>
    %1 = vector.shape_cast %0 : vector<1x30x32xf32> to vector<30x32xf32>
    %c0_2 = arith.constant 0 : index
    %c0_3 = arith.constant 0 : index
    %c0_4 = arith.constant 0 : index
    %2 = vector.load %arg2[%c0_2, %c0_3, %c0_4] : memref<1x8x32xf32, #tpu.memory_space<vmem>>, vector<1x8x32xf32>
    %3 = vector.shape_cast %2 : vector<1x8x32xf32> to vector<8x32xf32>
    %c0_5 = arith.constant 0 : index
    %c0_6 = arith.constant 0 : index
    %c0_7 = arith.constant 0 : index
    %4 = vector.load %arg3[%c0_5, %c0_6, %c0_7] : memref<1x8x32xf32, #tpu.memory_space<vmem>>, vector<1x8x32xf32>
    %5 = vector.shape_cast %4 : vector<1x8x32xf32> to vector<8x32xf32>
    %c0_8 = arith.constant 0 : index
    %c0_9 = arith.constant 0 : index
    %c0_10 = arith.constant 0 : index
    %6 = vector.load %arg4[%c0_8, %c0_9, %c0_10] : memref<1x1x8xf32, #tpu.memory_space<vmem>>, vector<1x1x8xf32>
    %7 = vector.shape_cast %6 : vector<1x1x8xf32> to vector<1x8xf32>
    %c0_11 = arith.constant 0 : index
    %c0_12 = arith.constant 0 : index
    %c0_13 = arith.constant 0 : index
    %8 = vector.load %arg5[%c0_11, %c0_12, %c0_13] : memref<1x1x32xf32, #tpu.memory_space<vmem>>, vector<1x1x32xf32>
    %9 = vector.shape_cast %8 : vector<1x1x32xf32> to vector<1x32xf32>
    %c0_14 = arith.constant 0 : index
    %c0_15 = arith.constant 0 : index
    %10 = vector.load %arg6[%c0_14, %c0_15] : memref<32x6xf32, #tpu.memory_space<vmem>>, vector<32x6xf32>
    %cst = arith.constant dense<0.000000e+00> : vector<8x6xf32>
    %11 = tpu.matmul %3, %10, %cst {dimension_numbers = #tpu.dot_dimension_numbers<[1], [0], [0], [1], [0, 0, 1, 1], [], []>} : vector<8x32xf32>, vector<32x6xf32>, vector<8x6xf32> -> vector<8x6xf32>
    %c0_16 = arith.constant 0 : index
    %c0_17 = arith.constant 0 : index
    %12 = vector.load %arg7[%c0_16, %c0_17] : memref<1x6xf32, #tpu.memory_space<vmem>>, vector<1x6xf32>
    %13 = vector.broadcast %12 : vector<1x6xf32> to vector<8x6xf32>
    %14 = arith.addf %11, %13 : vector<8x6xf32>
    %c0_18 = arith.constant 0 : index
    %c0_19 = arith.constant 0 : index
    %c0_20 = arith.constant 0 : index
    %15 = vector.load %arg12[%c0_18, %c0_19, %c0_20] : memref<1x8x6xf32, #tpu.memory_space<vmem>>, vector<1x8x6xf32>
    %16 = vector.shape_cast %15 : vector<1x8x6xf32> to vector<8x6xf32>
    %17 = vector.shape_cast %14 : vector<8x6xf32> to vector<1x8x6xf32>
    tpu.vector_store %arg12[%c0_18, %c0_19, %c0_20], %17 {strides = array<i32>} : memref<1x8x6xf32, #tpu.memory_space<vmem>>, vector<1x8x6xf32>,
    %cst_21 = arith.constant dense<0.000000e+00> : vector<30x8xf32>
    %18 = tpu.matmul %1, %5, %cst_21 {dimension_numbers = #tpu.dot_dimension_numbers<[1], [1], [0], [0], [0, 0, 1, 0], [], []>} : vector<30x32xf32>, vector<8x32xf32>, vector<30x8xf32> -> vector<30x8xf32>
    %cst_22 = arith.constant 0.000000e+00 : f32
    %19 = vector.broadcast %cst_22 : f32 to vector<1x8xf32>
    %20 = arith.cmpf oeq, %7, %19 : vector<1x8xf32>
    %cst_23 = arith.constant -1.000000e+09 : f32
    %21 = vector.shape_cast %20 : vector<1x8xi1> to vector<1x8xi1>
    %22 = vector.broadcast %21 : vector<1x8xi1> to vector<30x8xi1>
    %23 = vector.broadcast %cst_23 : f32 to vector<30x8xf32>
    %24 = arith.select %22, %23, %18 : vector<30x8xi1>, vector<30x8xf32>
    %cst_24 = arith.constant dense<0xFF800000> : vector<30xf32>
    %25 = vector.multi_reduction <maximumf>, %24, %cst_24 [1] : vector<30x8xf32> to vector<30xf32>
    %26 = vector.shape_cast %25 : vector<30xf32> to vector<30x1xf32>
    %27 = vector.broadcast %26 : vector<30x1xf32> to vector<30x8xf32>
    %28 = arith.subf %24, %27 : vector<30x8xf32>
    %29 = math.exp %28 : vector<30x8xf32>
    %cst_25 = arith.constant dense<0.000000e+00> : vector<30xf32>
    %30 = vector.multi_reduction <add>, %29, %cst_25 [1] : vector<30x8xf32> to vector<30xf32>
    %31 = vector.shape_cast %30 : vector<30xf32> to vector<30x1xf32>
    %32 = tpu.reciprocal %31 {approx = true} : vector<30x1xf32> -> vector<30x1xf32>
    %33 = vector.broadcast %32 : vector<30x1xf32> to vector<30x8xf32>
    %34 = arith.mulf %29, %33 : vector<30x8xf32>
    %cst_26 = arith.constant dense<0.000000e+00> : vector<30x32xf32>
    %35 = tpu.matmul %34, %5, %cst_26 {dimension_numbers = #tpu.dot_dimension_numbers<[1], [0], [0], [1], [0, 0, 1, 1], [], []>} : vector<30x8xf32>, vector<8x32xf32>, vector<30x32xf32> -> vector<30x32xf32>
    %36 = arith.addf %1, %35 : vector<30x32xf32>
    %c0_27 = arith.constant 0 : index
    %c0_28 = arith.constant 0 : index
    %c0_29 = arith.constant 0 : index
    %37 = vector.load %arg15[%c0_27, %c0_28, %c0_29] : memref<1x30x32xf32, #tpu.memory_space<vmem>>, vector<1x30x32xf32>
    %38 = vector.shape_cast %37 : vector<1x30x32xf32> to vector<30x32xf32>
    %39 = vector.shape_cast %36 : vector<30x32xf32> to vector<1x30x32xf32>
    tpu.vector_store %arg15[%c0_27, %c0_28, %c0_29], %39 {strides = array<i32>} : memref<1x30x32xf32, #tpu.memory_space<vmem>>, vector<1x30x32xf32>,
    %c0_30 = arith.constant 0 : index
    %c0_31 = arith.constant 0 : index
    %40 = vector.load %arg8[%c0_30, %c0_31] : memref<32x4xf32, #tpu.memory_space<vmem>>, vector<32x4xf32>
    %cst_32 = arith.constant dense<0.000000e+00> : vector<30x4xf32>
    %41 = tpu.matmul %36, %40, %cst_32 {dimension_numbers = #tpu.dot_dimension_numbers<[1], [0], [0], [1], [0, 0, 1, 1], [], []>} : vector<30x32xf32>, vector<32x4xf32>, vector<30x4xf32> -> vector<30x4xf32>
    %c0_33 = arith.constant 0 : index
    %c0_34 = arith.constant 0 : index
    %42 = vector.load %arg9[%c0_33, %c0_34] : memref<1x4xf32, #tpu.memory_space<vmem>>, vector<1x4xf32>
    %43 = vector.broadcast %42 : vector<1x4xf32> to vector<30x4xf32>
    %44 = arith.addf %41, %43 : vector<30x4xf32>
    %c0_35 = arith.constant 0 : index
    %c0_36 = arith.constant 0 : index
    %c0_37 = arith.constant 0 : index
    %45 = vector.load %arg13[%c0_35, %c0_36, %c0_37] : memref<1x30x4xf32, #tpu.memory_space<vmem>>, vector<1x30x4xf32>
    %46 = vector.shape_cast %45 : vector<1x30x4xf32> to vector<30x4xf32>
    %47 = vector.shape_cast %44 : vector<30x4xf32> to vector<1x30x4xf32>
    tpu.vector_store %arg13[%c0_35, %c0_36, %c0_37], %47 {strides = array<i32>} : memref<1x30x4xf32, #tpu.memory_space<vmem>>, vector<1x30x4xf32>,
    %c0_38 = arith.constant 0 : index
    %c0_39 = arith.constant 0 : index
    %48 = vector.load %arg10[%c0_38, %c0_39] : memref<32x5xf32, #tpu.memory_space<vmem>>, vector<32x5xf32>
    %cst_40 = arith.constant dense<0.000000e+00> : vector<1x5xf32>
    %49 = tpu.matmul %9, %48, %cst_40 {dimension_numbers = #tpu.dot_dimension_numbers<[1], [0], [0], [1], [0, 0, 1, 1], [], []>} : vector<1x32xf32>, vector<32x5xf32>, vector<1x5xf32> -> vector<1x5xf32>
    %c0_41 = arith.constant 0 : index
    %c0_42 = arith.constant 0 : index
    %50 = vector.load %arg11[%c0_41, %c0_42] : memref<1x5xf32, #tpu.memory_space<vmem>>, vector<1x5xf32>
    %51 = arith.addf %49, %50 : vector<1x5xf32>
    %c0_43 = arith.constant 0 : index
    %c0_44 = arith.constant 0 : index
    %c0_45 = arith.constant 0 : index
    %52 = vector.load %arg14[%c0_43, %c0_44, %c0_45] : memref<1x1x5xf32, #tpu.memory_space<vmem>>, vector<1x1x5xf32>
    %53 = vector.shape_cast %52 : vector<1x1x5xf32> to vector<1x5xf32>
    %54 = vector.shape_cast %51 : vector<1x5xf32> to vector<1x1x5xf32>
    tpu.vector_store %arg14[%c0_43, %c0_44, %c0_45], %54 {strides = array<i32>} : memref<1x1x5xf32, #tpu.memory_space<vmem>>, vector<1x1x5xf32>,
    return
  }
  func.func @transform_0(%arg0: i32) -> (i32, i32, i32) {
    %c0_i32 = arith.constant 0 : i32
    %c0_i32_0 = arith.constant 0 : i32
    %c0_i32_1 = arith.constant 0 : i32
    return %arg0, %c0_i32, %c0_i32_0 : i32, i32, i32
  }
  func.func @transform_1(%arg0: i32) -> (i32, i32, i32) {
    %c0_i32 = arith.constant 0 : i32
    %c0_i32_0 = arith.constant 0 : i32
    %c0_i32_1 = arith.constant 0 : i32
    return %arg0, %c0_i32, %c0_i32_0 : i32, i32, i32
  }
  func.func @transform_2(%arg0: i32) -> (i32, i32, i32) {
    %c0_i32 = arith.constant 0 : i32
    %c0_i32_0 = arith.constant 0 : i32
    %c0_i32_1 = arith.constant 0 : i32
    return %arg0, %c0_i32, %c0_i32_0 : i32, i32, i32
  }
  func.func @transform_3(%arg0: i32) -> (i32, i32, i32) {
    %c0_i32 = arith.constant 0 : i32
    %c0_i32_0 = arith.constant 0 : i32
    %c0_i32_1 = arith.constant 0 : i32
    return %arg0, %c0_i32, %c0_i32_0 : i32, i32, i32
  }
  func.func @transform_4(%arg0: i32) -> (i32, i32, i32) {
    %c0_i32 = arith.constant 0 : i32
    %c0_i32_0 = arith.constant 0 : i32
    %c0_i32_1 = arith.constant 0 : i32
    return %arg0, %c0_i32, %c0_i32_0 : i32, i32, i32
  }
  func.func @transform_5(%arg0: i32) -> (i32, i32) {
    %c0_i32 = arith.constant 0 : i32
    %c0_i32_0 = arith.constant 0 : i32
    %c0_i32_1 = arith.constant 0 : i32
    return %c0_i32, %c0_i32_0 : i32, i32
  }
  func.func @transform_6(%arg0: i32) -> (i32, i32) {
    %c0_i32 = arith.constant 0 : i32
    %c0_i32_0 = arith.constant 0 : i32
    %c0_i32_1 = arith.constant 0 : i32
    return %c0_i32, %c0_i32_0 : i32, i32
  }
  func.func @transform_7(%arg0: i32) -> (i32, i32) {
    %c0_i32 = arith.constant 0 : i32
    %c0_i32_0 = arith.constant 0 : i32
    %c0_i32_1 = arith.constant 0 : i32
    return %c0_i32, %c0_i32_0 : i32, i32
  }
  func.func @transform_8(%arg0: i32) -> (i32, i32) {
    %c0_i32 = arith.constant 0 : i32
    %c0_i32_0 = arith.constant 0 : i32
    %c0_i32_1 = arith.constant 0 : i32
    return %c0_i32, %c0_i32_0 : i32, i32
  }
  func.func @transform_9(%arg0: i32) -> (i32, i32) {
    %c0_i32 = arith.constant 0 : i32
    %c0_i32_0 = arith.constant 0 : i32
    %c0_i32_1 = arith.constant 0 : i32
    return %c0_i32, %c0_i32_0 : i32, i32
  }
  func.func @transform_10(%arg0: i32) -> (i32, i32) {
    %c0_i32 = arith.constant 0 : i32
    %c0_i32_0 = arith.constant 0 : i32
    %c0_i32_1 = arith.constant 0 : i32
    return %c0_i32, %c0_i32_0 : i32, i32
  }
  func.func @transform_11(%arg0: i32) -> (i32, i32, i32) {
    %c0_i32 = arith.constant 0 : i32
    %c0_i32_0 = arith.constant 0 : i32
    %c0_i32_1 = arith.constant 0 : i32
    return %arg0, %c0_i32, %c0_i32_0 : i32, i32, i32
  }
  func.func @transform_12(%arg0: i32) -> (i32, i32, i32) {
    %c0_i32 = arith.constant 0 : i32
    %c0_i32_0 = arith.constant 0 : i32
    %c0_i32_1 = arith.constant 0 : i32
    return %arg0, %c0_i32, %c0_i32_0 : i32, i32, i32
  }
  func.func @transform_13(%arg0: i32) -> (i32, i32, i32) {
    %c0_i32 = arith.constant 0 : i32
    %c0_i32_0 = arith.constant 0 : i32
    %c0_i32_1 = arith.constant 0 : i32
    return %arg0, %c0_i32, %c0_i32_0 : i32, i32, i32
  }
  func.func @transform_14(%arg0: i32) -> (i32, i32, i32) {
    %c0_i32 = arith.constant 0 : i32
    %c0_i32_0 = arith.constant 0 : i32
    %c0_i32_1 = arith.constant 0 : i32
    return %arg0, %c0_i32, %c0_i32_0 : i32, i32, i32
  }
}

</mosaic_0001>

<llo_original>
// kernel: _lambda_.3
$region0: #{_lambda_.3}
  #allocation0 [shape = 'u32[]', space=smem, size = 0x4, offset = 0x4, fixed_abs, tag = 'smem constant byte address 0x4 - core index']
  #allocation1 [shape = 'u32[72,128]{1,0:T(1,128)}', space=vmem, size = 0x9000, scoped, tag = 'internal scratch']
  %s0 = inlined_call_operand.vmem [shape: f32[2,30,32], index: 0, kind: input, shape index: {}]
  %s1 = inlined_call_operand.vmem [shape: f32[2,8,32], index: 1, kind: input, shape index: {}]
  %s2 = inlined_call_operand.vmem [shape: f32[2,8,32], index: 2, kind: input, shape index: {}]
  %s3 = inlined_call_operand.vmem [shape: f32[2,1,8], index: 3, kind: input, shape index: {}]
  %s4 = inlined_call_operand.vmem [shape: f32[2,1,32], index: 4, kind: input, shape index: {}]
  %s5 = inlined_call_operand.vmem [shape: f32[32,6], index: 5, kind: input, shape index: {}]
  %s6 = inlined_call_operand.vmem [shape: f32[1,6], index: 6, kind: input, shape index: {}]
  %s7 = inlined_call_operand.vmem [shape: f32[32,4], index: 7, kind: input, shape index: {}]
  %s8 = inlined_call_operand.vmem [shape: f32[1,4], index: 8, kind: input, shape index: {}]
  %s9 = inlined_call_operand.vmem [shape: f32[32,5], index: 9, kind: input, shape index: {}]
  %s10 = inlined_call_operand.vmem [shape: f32[1,5], index: 10, kind: input, shape index: {}]
  %s11 = inlined_call_operand.vmem [shape: f32[2,8,6], index: 11, kind: output, shape index: {0}]
  %s12 = inlined_call_operand.vmem [shape: f32[2,30,4], index: 12, kind: output, shape index: {1}]
  %s13 = inlined_call_operand.hbm [shape: f32[2,1,5], index: 13, kind: output, shape index: {2}]
  %s14 = inlined_call_operand.vmem [shape: f32[2,30,32], index: 14, kind: output, shape index: {3}]
  %15 = xla_tuple %s11, %s12, %s13, %s14
  %s16 = sld [smem:[#allocation0]]
  $region101: #{_lambda_.3} parent=0
    _
  %s18 = ssub.s32 1, %s16
  %s19 = scalar_select 0, %s18, %s16
  $region1: #{_lambda_.3} parent=0
    #allocation2 [shape = 'u8[1024]{0}', space=vmem, size = 0x400, scoped, tag = 'output window, operand 2']
    #allocation3 [shape = 's32[2]{0}', space=sflag, size = 0x8, scoped, tag = 'scoped memory for _lambda_.3']
    %20 = vsyncpa [#allocation3], 0
    %s21 = scalar_lea.sflag [#allocation3], 1
    %22 = vsyncpa %s21, 0
    loop: start=0, step=1, limit=4
    $region2: #{_lambda_.3} parent=1 // loop_pre_header
      _
    $region3: #{_lambda_.3} parent=1 // loop_header
      %s24 = sphi 0, %s28
      %p25 = scmp.ge.s32.totalorder %s24, 4
      %s34 = sphi 0, %s36
      %s37 = sphi 0, %s34
      %s38 = sphi 0, %s37
      %s54 = sphi 0, %s38
      %s60 = sphi 0, %s62
      %s63 = sphi 0, %s60
      %s64 = sphi 0, %s63
      %s80 = sphi 0, %s64
      %s86 = sphi 0, %s88
      %s89 = sphi 0, %s86
      %s90 = sphi 0, %s89
      %s106 = sphi 0, %s90
      %s112 = sphi 0, %s114
      %s115 = sphi 0, %s112
      %s116 = sphi 0, %s115
      %s132 = sphi 0, %s116
      %s138 = sphi 0, %s140
      %s141 = sphi 0, %s138
      %s142 = sphi 0, %s141
      %s158 = sphi 0, %s142
      %s162 = sphi 0, %s162
      %s164 = sphi 0, %s162
      %s165 = sphi 0, %s164
      %s179 = sphi 0, %s165
      %s183 = sphi 0, %s183
      %s185 = sphi 0, %s183
      %s186 = sphi 0, %s185
      %s200 = sphi 0, %s186
      %s204 = sphi 0, %s204
      %s206 = sphi 0, %s204
      %s207 = sphi 0, %s206
      %s221 = sphi 0, %s207
      %s225 = sphi 0, %s225
      %s227 = sphi 0, %s225
      %s228 = sphi 0, %s227
      %s242 = sphi 0, %s228
      %s246 = sphi 0, %s246
      %s248 = sphi 0, %s246
      %s249 = sphi 0, %s248
      %s263 = sphi 0, %s249
      %s267 = sphi 0, %s267
      %s269 = sphi 0, %s267
      %s270 = sphi 0, %s269
      %s284 = sphi 0, %s270
      %s290 = sphi 0, %s292
      %s293 = sphi 0, %s290
      %s294 = sphi 0, %s293
      %s310 = sphi 0, %s294
      %s316 = sphi 0, %s318
      %s319 = sphi 0, %s316
      %s320 = sphi 0, %s319
      %s336 = sphi 0, %s320
      %s342 = sphi 0, %s344
      %s345 = sphi 0, %s342
      %s346 = sphi 0, %s345
      %s362 = sphi 0, %s346
      %s368 = sphi 0, %s370
      %s371 = sphi 0, %s368
      %s372 = sphi 0, %s371
      %s388 = sphi 0, %s372
    $region4: #{_lambda_.3} parent=1 // loop_header_branch
      %27 = sbr.rel (%p25) target = $region8
    $region5: #{_lambda_.3} parent=1 // loop_body
      %s29 = ssub.s32 %s24, 1
      %s30 = ssub.s32 %s24, 2
      %s31 = sadd.s32 %s24, 1
      %s32 = ssub.s32 %s24, %s31
      %p33 = scmp.eq.s32.totalorder %s32, 0
      %s35 = sadd.s32 %s34, 1
      %s36 = scalar_select %p33, %s34, %s35
      %p39 = pneg %p33
      %p40 = scmp.eq.s32.totalorder %s24, 1
      %p41 = por %p39, %p40
      %p42 = scmp.ne.s32.totalorder %s34, %s37
      %p43 = scmp.eq.s32.totalorder %s24, 0
      %p44 = por %p42, %p43
      %p45 = scmp.ne.s32.totalorder %s34, %s37
      %p46 = scmp.eq.s32.totalorder %s29, 1
      %p47 = por %p45, %p46
      %p48 = scmp.ne.s32.totalorder %s37, %s38
      %p49 = scmp.eq.s32.totalorder %s29, 0
      %p50 = por %p48, %p49
      %p51 = scmp.ne.s32.totalorder %s37, %s38
      %p52 = scmp.eq.s32.totalorder %s30, 1
      %p53 = por %p51, %p52
      %p55 = scmp.ne.s32.totalorder %s38, %s54
      %p56 = scmp.eq.s32.totalorder %s30, 0
      %p57 = por %p55, %p56
      %s58 = ssub.s32 %s24, %s31
      %p59 = scmp.eq.s32.totalorder %s58, 0
      %s61 = sadd.s32 %s60, 1
      %s62 = scalar_select %p59, %s60, %s61
      %p65 = pneg %p59
      %p66 = scmp.eq.s32.totalorder %s24, 1
      %p67 = por %p65, %p66
      %p68 = scmp.ne.s32.totalorder %s60, %s63
      %p69 = scmp.eq.s32.totalorder %s24, 0
      %p70 = por %p68, %p69
      %p71 = scmp.ne.s32.totalorder %s60, %s63
      %p72 = scmp.eq.s32.totalorder %s29, 1
      %p73 = por %p71, %p72
      %p74 = scmp.ne.s32.totalorder %s63, %s64
      %p75 = scmp.eq.s32.totalorder %s29, 0
      %p76 = por %p74, %p75
      %p77 = scmp.ne.s32.totalorder %s63, %s64
      %p78 = scmp.eq.s32.totalorder %s30, 1
      %p79 = por %p77, %p78
      %p81 = scmp.ne.s32.totalorder %s64, %s80
      %p82 = scmp.eq.s32.totalorder %s30, 0
      %p83 = por %p81, %p82
      %s84 = ssub.s32 %s24, %s31
      %p85 = scmp.eq.s32.totalorder %s84, 0
      %s87 = sadd.s32 %s86, 1
      %s88 = scalar_select %p85, %s86, %s87
      %p91 = pneg %p85
      %p92 = scmp.eq.s32.totalorder %s24, 1
      %p93 = por %p91, %p92
      %p94 = scmp.ne.s32.totalorder %s86, %s89
      %p95 = scmp.eq.s32.totalorder %s24, 0
      %p96 = por %p94, %p95
      %p97 = scmp.ne.s32.totalorder %s86, %s89
      %p98 = scmp.eq.s32.totalorder %s29, 1
      %p99 = por %p97, %p98
      %p100 = scmp.ne.s32.totalorder %s89, %s90
      %p101 = scmp.eq.s32.totalorder %s29, 0
      %p102 = por %p100, %p101
      %p103 = scmp.ne.s32.totalorder %s89, %s90
      %p104 = scmp.eq.s32.totalorder %s30, 1
      %p105 = por %p103, %p104
      %p107 = scmp.ne.s32.totalorder %s90, %s106
      %p108 = scmp.eq.s32.totalorder %s30, 0
      %p109 = por %p107, %p108
      %s110 = ssub.s32 %s24, %s31
      %p111 = scmp.eq.s32.totalorder %s110, 0
      %s113 = sadd.s32 %s112, 1
      %s114 = scalar_select %p111, %s112, %s113
      %p117 = pneg %p111
      %p118 = scmp.eq.s32.totalorder %s24, 1
      %p119 = por %p117, %p118
      %p120 = scmp.ne.s32.totalorder %s112, %s115
      %p121 = scmp.eq.s32.totalorder %s24, 0
      %p122 = por %p120, %p121
      %p123 = scmp.ne.s32.totalorder %s112, %s115
      %p124 = scmp.eq.s32.totalorder %s29, 1
      %p125 = por %p123, %p124
      %p126 = scmp.ne.s32.totalorder %s115, %s116
      %p127 = scmp.eq.s32.totalorder %s29, 0
      %p128 = por %p126, %p127
      %p129 = scmp.ne.s32.totalorder %s115, %s116
      %p130 = scmp.eq.s32.totalorder %s30, 1
      %p131 = por %p129, %p130
      %p133 = scmp.ne.s32.totalorder %s116, %s132
      %p134 = scmp.eq.s32.totalorder %s30, 0
      %p135 = por %p133, %p134
      %s136 = ssub.s32 %s24, %s31
      %p137 = scmp.eq.s32.totalorder %s136, 0
      %s139 = sadd.s32 %s138, 1
      %s140 = scalar_select %p137, %s138, %s139
      %p143 = pneg %p137
      %p144 = scmp.eq.s32.totalorder %s24, 1
      %p145 = por %p143, %p144
      %p146 = scmp.ne.s32.totalorder %s138, %s141
      %p147 = scmp.eq.s32.totalorder %s24, 0
      %p148 = por %p146, %p147
      %p149 = scmp.ne.s32.totalorder %s138, %s141
      %p150 = scmp.eq.s32.totalorder %s29, 1
      %p151 = por %p149, %p150
      %p152 = scmp.ne.s32.totalorder %s141, %s142
      %p153 = scmp.eq.s32.totalorder %s29, 0
      %p154 = por %p152, %p153
      %p155 = scmp.ne.s32.totalorder %s141, %s142
      %p156 = scmp.eq.s32.totalorder %s30, 1
      %p157 = por %p155, %p156
      %p159 = scmp.ne.s32.totalorder %s142, %s158
      %p160 = scmp.eq.s32.totalorder %s30, 0
      %p161 = por %p159, %p160
      %s163 = sadd.s32 %s162, 1
      %p166 = scmp.eq.s32.totalorder %s24, 1
      %p167 = scmp.ne.s32.totalorder %s162, %s164
      %p168 = scmp.eq.s32.totalorder %s24, 0
      %p169 = por %p167, %p168
      %p170 = scmp.ne.s32.totalorder %s162, %s164
      %p171 = scmp.eq.s32.totalorder %s29, 1
      %p172 = por %p170, %p171
      %p173 = scmp.ne.s32.totalorder %s164, %s165
      %p174 = scmp.eq.s32.totalorder %s29, 0
      %p175 = por %p173, %p174
      %p176 = scmp.ne.s32.totalorder %s164, %s165
      %p177 = scmp.eq.s32.totalorder %s30, 1
      %p178 = por %p176, %p177
      %p180 = scmp.ne.s32.totalorder %s165, %s179
      %p181 = scmp.eq.s32.totalorder %s30, 0
      %p182 = por %p180, %p181
      %s184 = sadd.s32 %s183, 1
      %p187 = scmp.eq.s32.totalorder %s24, 1
      %p188 = scmp.ne.s32.totalorder %s183, %s185
      %p189 = scmp.eq.s32.totalorder %s24, 0
      %p190 = por %p188, %p189
      %p191 = scmp.ne.s32.totalorder %s183, %s185
      %p192 = scmp.eq.s32.totalorder %s29, 1
      %p193 = por %p191, %p192
      %p194 = scmp.ne.s32.totalorder %s185, %s186
      %p195 = scmp.eq.s32.totalorder %s29, 0
      %p196 = por %p194, %p195
      %p197 = scmp.ne.s32.totalorder %s185, %s186
      %p198 = scmp.eq.s32.totalorder %s30, 1
      %p199 = por %p197, %p198
      %p201 = scmp.ne.s32.totalorder %s186, %s200
      %p202 = scmp.eq.s32.totalorder %s30, 0
      %p203 = por %p201, %p202
      %s205 = sadd.s32 %s204, 1
      %p208 = scmp.eq.s32.totalorder %s24, 1
      %p209 = scmp.ne.s32.totalorder %s204, %s206
      %p210 = scmp.eq.s32.totalorder %s24, 0
      %p211 = por %p209, %p210
      %p212 = scmp.ne.s32.totalorder %s204, %s206
      %p213 = scmp.eq.s32.totalorder %s29, 1
      %p214 = por %p212, %p213
      %p215 = scmp.ne.s32.totalorder %s206, %s207
      %p216 = scmp.eq.s32.totalorder %s29, 0
      %p217 = por %p215, %p216
      %p218 = scmp.ne.s32.totalorder %s206, %s207
      %p219 = scmp.eq.s32.totalorder %s30, 1
      %p220 = por %p218, %p219
      %p222 = scmp.ne.s32.totalorder %s207, %s221
      %p223 = scmp.eq.s32.totalorder %s30, 0
      %p224 = por %p222, %p223
      %s226 = sadd.s32 %s225, 1
      %p229 = scmp.eq.s32.totalorder %s24, 1
      %p230 = scmp.ne.s32.totalorder %s225, %s227
      %p231 = scmp.eq.s32.totalorder %s24, 0
      %p232 = por %p230, %p231
      %p233 = scmp.ne.s32.totalorder %s225, %s227
      %p234 = scmp.eq.s32.totalorder %s29, 1
      %p235 = por %p233, %p234
      %p236 = scmp.ne.s32.totalorder %s227, %s228
      %p237 = scmp.eq.s32.totalorder %s29, 0
      %p238 = por %p236, %p237
      %p239 = scmp.ne.s32.totalorder %s227, %s228
      %p240 = scmp.eq.s32.totalorder %s30, 1
      %p241 = por %p239, %p240
      %p243 = scmp.ne.s32.totalorder %s228, %s242
      %p244 = scmp.eq.s32.totalorder %s30, 0
      %p245 = por %p243, %p244
      %s247 = sadd.s32 %s246, 1
      %p250 = scmp.eq.s32.totalorder %s24, 1
      %p251 = scmp.ne.s32.totalorder %s246, %s248
      %p252 = scmp.eq.s32.totalorder %s24, 0
      %p253 = por %p251, %p252
      %p254 = scmp.ne.s32.totalorder %s246, %s248
      %p255 = scmp.eq.s32.totalorder %s29, 1
      %p256 = por %p254, %p255
      %p257 = scmp.ne.s32.totalorder %s248, %s249
      %p258 = scmp.eq.s32.totalorder %s29, 0
      %p259 = por %p257, %p258
      %p260 = scmp.ne.s32.totalorder %s248, %s249
      %p261 = scmp.eq.s32.totalorder %s30, 1
      %p262 = por %p260, %p261
      %p264 = scmp.ne.s32.totalorder %s249, %s263
      %p265 = scmp.eq.s32.totalorder %s30, 0
      %p266 = por %p264, %p265
      %s268 = sadd.s32 %s267, 1
      %p271 = scmp.eq.s32.totalorder %s24, 1
      %p272 = scmp.ne.s32.totalorder %s267, %s269
      %p273 = scmp.eq.s32.totalorder %s24, 0
      %p274 = por %p272, %p273
      %p275 = scmp.ne.s32.totalorder %s267, %s269
      %p276 = scmp.eq.s32.totalorder %s29, 1
      %p277 = por %p275, %p276
      %p278 = scmp.ne.s32.totalorder %s269, %s270
      %p279 = scmp.eq.s32.totalorder %s29, 0
      %p280 = por %p278, %p279
      %p281 = scmp.ne.s32.totalorder %s269, %s270
      %p282 = scmp.eq.s32.totalorder %s30, 1
      %p283 = por %p281, %p282
      %p285 = scmp.ne.s32.totalorder %s270, %s284
      %p286 = scmp.eq.s32.totalorder %s30, 0
      %p287 = por %p285, %p286
      %s288 = ssub.s32 %s24, %s31
      %p289 = scmp.eq.s32.totalorder %s288, 0
      %s291 = sadd.s32 %s290, 1
      %s292 = scalar_select %p289, %s290, %s291
      %p295 = pneg %p289
      %p296 = scmp.eq.s32.totalorder %s24, 1
      %p297 = por %p295, %p296
      %p298 = scmp.ne.s32.totalorder %s290, %s293
      %p299 = scmp.eq.s32.totalorder %s24, 0
      %p300 = por %p298, %p299
      %p301 = scmp.ne.s32.totalorder %s290, %s293
      %p302 = scmp.eq.s32.totalorder %s29, 1
      %p303 = por %p301, %p302
      %p304 = scmp.ne.s32.totalorder %s293, %s294
      %p305 = scmp.eq.s32.totalorder %s29, 0
      %p306 = por %p304, %p305
      %p307 = scmp.ne.s32.totalorder %s293, %s294
      %p308 = scmp.eq.s32.totalorder %s30, 1
      %p309 = por %p307, %p308
      %p311 = scmp.ne.s32.totalorder %s294, %s310
      %p312 = scmp.eq.s32.totalorder %s30, 0
      %p313 = por %p311, %p312
      %s314 = ssub.s32 %s24, %s31
      %p315 = scmp.eq.s32.totalorder %s314, 0
      %s317 = sadd.s32 %s316, 1
      %s318 = scalar_select %p315, %s316, %s317
      %p321 = pneg %p315
      %p322 = scmp.eq.s32.totalorder %s24, 1
      %p323 = por %p321, %p322
      %p324 = scmp.ne.s32.totalorder %s316, %s319
      %p325 = scmp.eq.s32.totalorder %s24, 0
      %p326 = por %p324, %p325
      %p327 = scmp.ne.s32.totalorder %s316, %s319
      %p328 = scmp.eq.s32.totalorder %s29, 1
      %p329 = por %p327, %p328
      %p330 = scmp.ne.s32.totalorder %s319, %s320
      %p331 = scmp.eq.s32.totalorder %s29, 0
      %p332 = por %p330, %p331
      %p333 = scmp.ne.s32.totalorder %s319, %s320
      %p334 = scmp.eq.s32.totalorder %s30, 1
      %p335 = por %p333, %p334
      %p337 = scmp.ne.s32.totalorder %s320, %s336
      %p338 = scmp.eq.s32.totalorder %s30, 0
      %p339 = por %p337, %p338
      %s340 = ssub.s32 %s24, %s31
      %p341 = scmp.eq.s32.totalorder %s340, 0
      %s343 = sadd.s32 %s342, 1
      %s344 = scalar_select %p341, %s342, %s343
      %p347 = pneg %p341
      %p348 = scmp.eq.s32.totalorder %s24, 1
      %p349 = por %p347, %p348
      %p350 = scmp.ne.s32.totalorder %s342, %s345
      %p351 = scmp.eq.s32.totalorder %s24, 0
      %p352 = por %p350, %p351
      %p353 = scmp.ne.s32.totalorder %s342, %s345
      %p354 = scmp.eq.s32.totalorder %s29, 1
      %p355 = por %p353, %p354
      %p356 = scmp.ne.s32.totalorder %s345, %s346
      %p357 = scmp.eq.s32.totalorder %s29, 0
      %p358 = por %p356, %p357
      %p359 = scmp.ne.s32.totalorder %s345, %s346
      %p360 = scmp.eq.s32.totalorder %s30, 1
      %p361 = por %p359, %p360
      %p363 = scmp.ne.s32.totalorder %s346, %s362
      %p364 = scmp.eq.s32.totalorder %s30, 0
      %p365 = por %p363, %p364
      %s366 = ssub.s32 %s24, %s31
      %p367 = scmp.eq.s32.totalorder %s366, 0
      %s369 = sadd.s32 %s368, 1
      %s370 = scalar_select %p367, %s368, %s369
      %p373 = pneg %p367
      %p374 = scmp.eq.s32.totalorder %s24, 1
      %p375 = por %p373, %p374
      %p376 = scmp.ne.s32.totalorder %s368, %s371
      %p377 = scmp.eq.s32.totalorder %s24, 0
      %p378 = por %p376, %p377
      %p379 = scmp.ne.s32.totalorder %s368, %s371
      %p380 = scmp.eq.s32.totalorder %s29, 1
      %p381 = por %p379, %p380
      %p382 = scmp.ne.s32.totalorder %s371, %s372
      %p383 = scmp.eq.s32.totalorder %s29, 0
      %p384 = por %p382, %p383
      %p385 = scmp.ne.s32.totalorder %s371, %s372
      %p386 = scmp.eq.s32.totalorder %s30, 1
      %p387 = por %p385, %p386
      %p389 = scmp.ne.s32.totalorder %s372, %s388
      %p390 = scmp.eq.s32.totalorder %s30, 0
      %p391 = por %p389, %p390
      %p392 = scmp.le.s32.totalorder 1, %s24
      %p393 = scmp.lt.s32.totalorder %s24, 3
      %p394 = pnand %p392, %p393
      %p395 = pneg %p394
      // Predicated region
      $region9: #{_lambda_.3} parent=5 // pred_check
        _
      $region10: #{_lambda_.3} parent=5 // pred_check_branch
        %397 = sbr.rel (%p394) target = $region12
      $region11: #{_lambda_.3} parent=5 // pred_region
        %s398 = ssub.s32 %s24, 1
        // Predicated region
        $region13: #{_lambda_.3} parent=11 // pred_check
          %p399 = pneg %p175
        $region14: #{_lambda_.3} parent=11 // pred_check_branch
          %401 = sbr.rel (%p399) target = $region16
        $region15: #{_lambda_.3} parent=11 // pred_region
          _
        $region16: #{_lambda_.3} parent=11 // pred_fallthru
          _
        // Predicated region
        $region17: #{_lambda_.3} parent=11 // pred_check
          %p402 = pneg %p196
        $region18: #{_lambda_.3} parent=11 // pred_check_branch
          %404 = sbr.rel (%p402) target = $region20
        $region19: #{_lambda_.3} parent=11 // pred_region
          _
        $region20: #{_lambda_.3} parent=11 // pred_fallthru
          _
        // Predicated region
        $region21: #{_lambda_.3} parent=11 // pred_check
          %p405 = pneg %p217
        $region22: #{_lambda_.3} parent=11 // pred_check_branch
          %407 = sbr.rel (%p405) target = $region24
        $region23: #{_lambda_.3} parent=11 // pred_region
          _
        $region24: #{_lambda_.3} parent=11 // pred_fallthru
          _
        // Predicated region
        $region25: #{_lambda_.3} parent=11 // pred_check
          %p408 = pneg %p238
        $region26: #{_lambda_.3} parent=11 // pred_check_branch
          %410 = sbr.rel (%p408) target = $region28
        $region27: #{_lambda_.3} parent=11 // pred_region
          _
        $region28: #{_lambda_.3} parent=11 // pred_fallthru
          _
        // Predicated region
        $region29: #{_lambda_.3} parent=11 // pred_check
          %p411 = pneg %p259
        $region30: #{_lambda_.3} parent=11 // pred_check_branch
          %413 = sbr.rel (%p411) target = $region32
        $region31: #{_lambda_.3} parent=11 // pred_region
          _
        $region32: #{_lambda_.3} parent=11 // pred_fallthru
          _
        // Predicated region
        $region33: #{_lambda_.3} parent=11 // pred_check
          %p414 = pneg %p280
        $region34: #{_lambda_.3} parent=11 // pred_check_branch
          %416 = sbr.rel (%p414) target = $region36
        $region35: #{_lambda_.3} parent=11 // pred_region
          _
        $region36: #{_lambda_.3} parent=11 // pred_fallthru
          _
      $region12: #{_lambda_.3} parent=5 // pred_fallthru
        _
      %p417 = scmp.lt.s32.totalorder %s24, 2
      // Predicated region
      $region37: #{_lambda_.3} parent=5 // pred_check
        %p418 = pneg %p417
      $region38: #{_lambda_.3} parent=5 // pred_check_branch
        %420 = sbr.rel (%p418) target = $region40
      $region39: #{_lambda_.3} parent=5 // pred_region
        // Predicated region
        $region41: #{_lambda_.3} parent=39 // pred_check
          %p421 = pneg %p44
        $region42: #{_lambda_.3} parent=39 // pred_check_branch
          %423 = sbr.rel (%p421) target = $region44
        $region43: #{_lambda_.3} parent=39 // pred_region
          %p424 = scmp.lt.s32.totalorder %s24, 1
          %s425 = scalar_select %p424, %s24, 1
          %s426 = smul.addr %s425, 4
          %s427 = smul.addr %s426, 8
          %s428 = scalar_lea.vmem %s0, %s427
        $region44: #{_lambda_.3} parent=39 // pred_fallthru
          _
        // Predicated region
        $region45: #{_lambda_.3} parent=39 // pred_check
          %p429 = pneg %p70
        $region46: #{_lambda_.3} parent=39 // pred_check_branch
          %431 = sbr.rel (%p429) target = $region48
        $region47: #{_lambda_.3} parent=39 // pred_region
          %p432 = scmp.lt.s32.totalorder %s24, 1
          %s433 = scalar_select %p432, %s24, 1
          %s434 = smul.addr %s433, 8
          %s435 = scalar_lea.vmem %s1, %s434
        $region48: #{_lambda_.3} parent=39 // pred_fallthru
          _
        // Predicated region
        $region49: #{_lambda_.3} parent=39 // pred_check
          %p436 = pneg %p96
        $region50: #{_lambda_.3} parent=39 // pred_check_branch
          %438 = sbr.rel (%p436) target = $region52
        $region51: #{_lambda_.3} parent=39 // pred_region
          %p439 = scmp.lt.s32.totalorder %s24, 1
          %s440 = scalar_select %p439, %s24, 1
          %s441 = smul.addr %s440, 8
          %s442 = scalar_lea.vmem %s2, %s441
        $region52: #{_lambda_.3} parent=39 // pred_fallthru
          _
        // Predicated region
        $region53: #{_lambda_.3} parent=39 // pred_check
          %p443 = pneg %p122
        $region54: #{_lambda_.3} parent=39 // pred_check_branch
          %445 = sbr.rel (%p443) target = $region56
        $region55: #{_lambda_.3} parent=39 // pred_region
          %p446 = scmp.lt.s32.totalorder %s24, 1
          %s447 = scalar_select %p446, %s24, 1
          %s448 = scalar_lea.vmem %s3, %s447
        $region56: #{_lambda_.3} parent=39 // pred_fallthru
          _
        // Predicated region
        $region57: #{_lambda_.3} parent=39 // pred_check
          %p449 = pneg %p148
        $region58: #{_lambda_.3} parent=39 // pred_check_branch
          %451 = sbr.rel (%p449) target = $region60
        $region59: #{_lambda_.3} parent=39 // pred_region
          %p452 = scmp.lt.s32.totalorder %s24, 1
          %s453 = scalar_select %p452, %s24, 1
          %s454 = scalar_lea.vmem %s4, %s453
        $region60: #{_lambda_.3} parent=39 // pred_fallthru
          _
      $region40: #{_lambda_.3} parent=5 // pred_fallthru
        _
      %p455 = scmp.le.s32.totalorder 1, %s24
      %p456 = scmp.lt.s32.totalorder %s24, 3
      %p457 = pnand %p455, %p456
      %p458 = pneg %p457
      // Predicated region
      $region61: #{_lambda_.3} parent=5 // pred_check
        _
      $region62: #{_lambda_.3} parent=5 // pred_check_branch
        %460 = sbr.rel (%p457) target = $region64
      $region63: #{_lambda_.3} parent=5 // pred_region
        %s461 = ssub.s32 %s24, 1
        %p462 = scmp.lt.s32.totalorder %s29, 1
        %s463 = scalar_select %p462, %s29, 1
        %s464 = smul.addr %s463, 4
        %s465 = smul.addr %s464, 8
        %s466 = scalar_lea.vmem %s0, %s465
        %p467 = pneg %p50
        %p468 = pneg %p47
        %p469 = scmp.lt.s32.totalorder %s29, 1
        %s470 = scalar_select %p469, %s29, 1
        %s471 = smul.addr %s470, 8
        %s472 = scalar_lea.vmem %s1, %s471
        %p473 = pneg %p76
        %p474 = pneg %p73
        %p475 = scmp.lt.s32.totalorder %s29, 1
        %s476 = scalar_select %p475, %s29, 1
        %s477 = smul.addr %s476, 8
        %s478 = scalar_lea.vmem %s2, %s477
        %p479 = pneg %p102
        %p480 = pneg %p99
        %p481 = scmp.lt.s32.totalorder %s29, 1
        %s482 = scalar_select %p481, %s29, 1
        %s483 = scalar_lea.vmem %s3, %s482
        %p484 = pneg %p128
        %p485 = pneg %p125
        %p486 = scmp.lt.s32.totalorder %s29, 1
        %s487 = scalar_select %p486, %s29, 1
        %s488 = scalar_lea.vmem %s4, %s487
        %p489 = pneg %p154
        %p490 = pneg %p151
        %p491 = pneg %p175
        %p492 = pneg %p172
        %p493 = pneg %p196
        %p494 = pneg %p193
        %p495 = pneg %p217
        %p496 = pneg %p214
        %p497 = pneg %p238
        %p498 = pneg %p235
        %p499 = pneg %p259
        %p500 = pneg %p256
        %p501 = pneg %p280
        %p502 = pneg %p277
        %p503 = pneg %p306
        %p504 = pneg %p303
        %p505 = scmp.lt.s32.totalorder %s29, 1
        %s506 = scalar_select %p505, %s29, 1
        %s507 = smul.addr %s506, 8
        %s508 = scalar_lea.vmem %s11, %s507
        %p509 = pneg %p332
        %p510 = pneg %p329
        %p511 = scmp.lt.s32.totalorder %s29, 1
        %s512 = scalar_select %p511, %s29, 1
        %s513 = smul.addr %s512, 4
        %s514 = smul.addr %s513, 8
        %s515 = scalar_lea.vmem %s12, %s514
        %p516 = pneg %p358
        %p517 = pneg %p355
        %s518 = sand.u32 %s345, 1
        %s519 = scalar_lea.sflag [#allocation3], %s518
        %s520 = sand.u32 %s345, 1
        %s521 = scalar_lea.vmem [#allocation2], %s520
        %p522 = pneg %p384
        %p523 = pneg %p381
        %p524 = scmp.lt.s32.totalorder %s29, 1
        %s525 = scalar_select %p524, %s29, 1
        %s526 = smul.addr %s525, 4
        %s527 = smul.addr %s526, 8
        %s528 = scalar_lea.vmem %s14, %s527
        %p529 = scmp.lt.s32.totalorder %s29, 1
        %s530 = scalar_select %p529, %s29, 1
        %s531 = smul.addr %s530, 4
        %s532 = smul.addr %s531, 8
        %s533 = scalar_lea.vmem %s0, %s532
        %p534 = scmp.lt.s32.totalorder %s29, 1
        %s535 = scalar_select %p534, %s29, 1
        %s536 = smul.addr %s535, 8
        %s537 = scalar_lea.vmem %s1, %s536
        %p538 = scmp.lt.s32.totalorder %s29, 1
        %s539 = scalar_select %p538, %s29, 1
        %s540 = smul.addr %s539, 8
        %s541 = scalar_lea.vmem %s2, %s540
        %p542 = scmp.lt.s32.totalorder %s29, 1
        %s543 = scalar_select %p542, %s29, 1
        %s544 = scalar_lea.vmem %s3, %s543
        %p545 = scmp.lt.s32.totalorder %s29, 1
        %s546 = scalar_select %p545, %s29, 1
        %s547 = scalar_lea.vmem %s4, %s546
        %p548 = scmp.lt.s32.totalorder %s29, 1
        %s549 = scalar_select %p548, %s29, 1
        %s550 = smul.addr %s549, 8
        %s551 = scalar_lea.vmem %s11, %s550
        %p552 = scmp.lt.s32.totalorder %s29, 1
        %s553 = scalar_select %p552, %s29, 1
        %s554 = smul.addr %s553, 4
        %s555 = smul.addr %s554, 8
        %s556 = scalar_lea.vmem %s12, %s555
        %p557 = scmp.lt.s32.totalorder %s29, 1
        %s558 = scalar_select %p557, %s29, 1
        %s559 = smul.addr %s558, 4
        %s560 = smul.addr %s559, 8
        %s561 = scalar_lea.vmem %s14, %s560
        %v562 = vld [vmem:[%s533] sm:$0xff]
        %v563 = vld [vmem:[%s533 + $0x8] sm:$0xff]
        %v564 = vld [vmem:[%s533 + $0x10] sm:$0xff]
        %v565 = vld [vmem:[%s533 + $0x18] sm:$0x3f]
        %v566 = vld [vmem:[%s537] sm:$0xff]
        %v567 = vld [vmem:[%s541] sm:$0xff]
        %v568 = vld [vmem:[%s544] sm:$0x1]
        %v569 = vld [vmem:[%s547] sm:$0x1]
        %v570 = vld [vmem:[%s5] sm:$0xff]
        %v571 = vld [vmem:[%s5 + $0x8] sm:$0xff]
        %v572 = vld [vmem:[%s5 + $0x10] sm:$0xff]
        %v573 = vld [vmem:[%s5 + $0x18] sm:$0xff]
        %v574 = vld [vmem:[%s6] sm:$0x1]
        %v576 = vperm.slane %v574, 0
        %vm578 = vcmask 261120
        %v580 = vsel %vm578, %v566, 0
        %582 = vmatpush.msra.mxu0 0.0
        %583 = vmatpush.msra.mxu0 0.0
        %584 = vmatpush.msra.mxu0 0.0
        %585 = vmatpush.msra.mxu0 0.0
        %586 = vmatpush.msra.mxu0 0.0
        %587 = vmatpush.msra.mxu0 0.0
        %588 = vmatpush.msra.mxu0 0.0
        %589 = vmatpush.msra.mxu0 0.0
        %590 = vmatpush.msra.mxu0 0.0
        %591 = vmatpush.msra.mxu0 0.0
        %592 = vmatpush.msra.mxu0 0.0
        %593 = vmatpush.msra.mxu0 0.0
        %594 = vmatpush.msra.mxu0 %v573
        %595 = vmatpush.msra.mxu0 %v572
        %596 = vmatpush.msra.mxu0 %v571
        %597 = vmatpush.msra.mxu0 %v570
        %598 = vmatmul.f32.gmra.mxu0 %v580
        %v599 = vpop.f32.mrf.mxu0
        %v600 = vadd.f32 %v576, %v599
        %601 = vdwg.mxu0
        %vm602 = vcmask 48128
        %603 = vst.msk [vmem:[%s551] sm:$0xff] %vm602, %v600
        %v605 = vsel %vm578, %v562, 0
        %v608 = vsel %vm578, %v563, 0
        %v611 = vsel %vm578, %v564, 0
        %v614 = vsel %vm578, %v565, 0
        %v617 = vsel %vm578, %v567, 0
        %619 = vmatpush.xpose.msra.mxu0 0.0
        %620 = vmatpush.xpose.msra.mxu0 0.0
        %621 = vmatpush.xpose.msra.mxu0 0.0
        %622 = vmatpush.xpose.msra.mxu0 0.0
        %623 = vmatpush.xpose.msra.mxu0 0.0
        %624 = vmatpush.xpose.msra.mxu0 0.0
        %625 = vmatpush.xpose.msra.mxu0 0.0
        %626 = vmatpush.xpose.msra.mxu0 0.0
        %627 = vmatpush.xpose.msra.mxu0 0.0
        %628 = vmatpush.xpose.msra.mxu0 0.0
        %629 = vmatpush.xpose.msra.mxu0 0.0
        %630 = vmatpush.xpose.msra.mxu0 0.0
        %631 = vmatpush.xpose.msra.mxu0 0.0
        %632 = vmatpush.xpose.msra.mxu0 0.0
        %633 = vmatpush.xpose.msra.mxu0 0.0
        %634 = vmatpush.xpose.msra.mxu0 %v617
        %635 = vmatmul.f32.gmra.mxu0 %v605
        %v636 = vpop.f32.mrf.mxu0
        %v637 = vadd.f32 0.0, %v636
        %638 = vmatmul.f32.gmra.mxu0 %v608
        %v639 = vpop.f32.mrf.mxu0
        %v640 = vadd.f32 0.0, %v639
        %641 = vmatmul.f32.gmra.mxu0 %v611
        %v642 = vpop.f32.mrf.mxu0
        %v643 = vadd.f32 0.0, %v642
        %644 = vmatmul.f32.gmra.mxu0 %v614
        %v645 = vpop.f32.mrf.mxu0
        %v646 = vadd.f32 0.0, %v645
        %647 = vdwg.mxu0
        %vm648 = vcmp.eq.f32.partialorder %v568, 0.0
        %v649 = vsel %vm648, 1, 0
        %v650 = vperm.slane %v649, 0
        %vm651 = vcmp.eq.s32.totalorder %v650, 1
        %v652 = vsel %vm651, -1e+09, %v637
        %v653 = vsel %vm651, -1e+09, %v640
        %v654 = vsel %vm651, -1e+09, %v643
        %v655 = vsel %vm651, -1e+09, %v646
        %vm656 = vcmask 64512
        %v657 = vsel %vm656, %v652, -inf
        %658 = vmax.xlane.f32.xlu0 %v657
        %v659 = vpop.xlane.xlu0 %658
        %v660 = vsel %vm656, %v653, -inf
        %661 = vmax.xlane.f32.xlu0 %v660
        %v662 = vpop.xlane.xlu0 %661
        %v663 = vsel %vm656, %v654, -inf
        %664 = vmax.xlane.f32.xlu0 %v663
        %v665 = vpop.xlane.xlu0 %664
        %vm666 = vcmask 62464
        %v667 = vsel %vm666, %v655, -inf
        %668 = vmax.xlane.f32.xlu0 %v667
        %v669 = vpop.xlane.xlu0 %668
        %v670 = vsub.f32 %v652, %v659
        %v671 = vsub.f32 %v653, %v662
        %v672 = vsub.f32 %v654, %v665
        %v673 = vsub.f32 %v655, %v669
        %v674 = vmul.f32 %v670, 1.442695
        %v675 = vpow.pop %v674
        %v676 = vmul.f32 %v671, 1.442695
        %v677 = vpow.pop %v676
        %v678 = vmul.f32 %v672, 1.442695
        %v679 = vpow.pop %v678
        %v680 = vmul.f32 %v673, 1.442695
        %v681 = vpow.pop %v680
        %v682 = vsel %vm656, %v675, 0.0
        %683 = vadd.xlane.f32.xlu0 %v682
        %v684 = vpop.xlane.xlu0 %683
        %v685 = vsel %vm656, %v677, 0.0
        %686 = vadd.xlane.f32.xlu0 %v685
        %v687 = vpop.xlane.xlu0 %686
        %v688 = vsel %vm656, %v679, 0.0
        %689 = vadd.xlane.f32.xlu0 %v688
        %v690 = vpop.xlane.xlu0 %689
        %v691 = vsel %vm666, %v681, 0.0
        %692 = vadd.xlane.f32.xlu0 %v691
        %v693 = vpop.xlane.xlu0 %692
        %v694 = vrcp.pop %v684
        %v695 = vrcp.pop %v687
        %v696 = vrcp.pop %v690
        %v697 = vrcp.pop %v693
        %v698 = vmul.f32 %v675, %v694
        %v699 = vmul.f32 %v677, %v695
        %v700 = vmul.f32 %v679, %v696
        %v701 = vmul.f32 %v681, %v697
        %v703 = vsel %vm656, %v698, 0
        %v706 = vsel %vm656, %v699, 0
        %v709 = vsel %vm656, %v700, 0
        %v712 = vsel %vm656, %v701, 0
        %714 = vmatpush.msra.mxu0 0.0
        %715 = vmatpush.msra.mxu0 0.0
        %716 = vmatpush.msra.mxu0 0.0
        %717 = vmatpush.msra.mxu0 0.0
        %718 = vmatpush.msra.mxu0 0.0
        %719 = vmatpush.msra.mxu0 0.0
        %720 = vmatpush.msra.mxu0 0.0
        %721 = vmatpush.msra.mxu0 0.0
        %722 = vmatpush.msra.mxu0 0.0
        %723 = vmatpush.msra.mxu0 0.0
        %724 = vmatpush.msra.mxu0 0.0
        %725 = vmatpush.msra.mxu0 0.0
        %726 = vmatpush.msra.mxu0 0.0
        %727 = vmatpush.msra.mxu0 0.0
        %728 = vmatpush.msra.mxu0 0.0
        %729 = vmatpush.msra.mxu0 %v567
        %730 = vmatmul.f32.gmra.mxu0 %v703
        %v731 = vpop.f32.mrf.mxu0
        %v732 = vadd.f32 0.0, %v731
        %733 = vmatmul.f32.gmra.mxu0 %v706
        %v734 = vpop.f32.mrf.mxu0
        %v735 = vadd.f32 0.0, %v734
        %736 = vmatmul.f32.gmra.mxu0 %v709
        %v737 = vpop.f32.mrf.mxu0
        %v738 = vadd.f32 0.0, %v737
        %739 = vmatmul.f32.gmra.mxu0 %v712
        %v740 = vpop.f32.mrf.mxu0
        %v741 = vadd.f32 0.0, %v740
        %742 = vdwg.mxu0
        %v743 = vadd.f32 %v562, %v732
        %v744 = vadd.f32 %v563, %v735
        %v745 = vadd.f32 %v564, %v738
        %v746 = vadd.f32 %v565, %v741
        %747 = vst.msk [vmem:[%s561] sm:$0xff] %vm578, %v743
        %748 = vst.msk [vmem:[%s561 + $0x8] sm:$0xff] %vm578, %v744
        %749 = vst.msk [vmem:[%s561 + $0x10] sm:$0xff] %vm578, %v745
        %vm750 = vcmask 259072
        %751 = vst.msk [vmem:[%s561 + $0x18] sm:$0x3f] %vm750, %v746
        %v752 = vld [vmem:[%s7] sm:$0xff]
        %v753 = vld [vmem:[%s7 + $0x8] sm:$0xff]
        %v754 = vld [vmem:[%s7 + $0x10] sm:$0xff]
        %v755 = vld [vmem:[%s7 + $0x18] sm:$0xff]
        %v756 = vld [vmem:[%s8] sm:$0x1]
        %v758 = vperm.slane %v756, 0
        %v761 = vsel %vm578, %v743, 0
        %v764 = vsel %vm578, %v744, 0
        %v767 = vsel %vm578, %v745, 0
        %v770 = vsel %vm578, %v746, 0
        %772 = vmatpush.msra.mxu0 0.0
        %773 = vmatpush.msra.mxu0 0.0
        %774 = vmatpush.msra.mxu0 0.0
        %775 = vmatpush.msra.mxu0 0.0
        %776 = vmatpush.msra.mxu0 0.0
        %777 = vmatpush.msra.mxu0 0.0
        %778 = vmatpush.msra.mxu0 0.0
        %779 = vmatpush.msra.mxu0 0.0
        %780 = vmatpush.msra.mxu0 0.0
        %781 = vmatpush.msra.mxu0 0.0
        %782 = vmatpush.msra.mxu0 0.0
        %783 = vmatpush.msra.mxu0 0.0
        %784 = vmatpush.msra.mxu0 %v755
        %785 = vmatpush.msra.mxu0 %v754
        %786 = vmatpush.msra.mxu0 %v753
        %787 = vmatpush.msra.mxu0 %v752
        %788 = vmatmul.f32.gmra.mxu0 %v761
        %v789 = vpop.f32.mrf.mxu0
        %v790 = vadd.f32 %v758, %v789
        %791 = vmatmul.f32.gmra.mxu0 %v764
        %v792 = vpop.f32.mrf.mxu0
        %v793 = vadd.f32 %v758, %v792
        %794 = vmatmul.f32.gmra.mxu0 %v767
        %v795 = vpop.f32.mrf.mxu0
        %v796 = vadd.f32 %v758, %v795
        %797 = vmatmul.f32.gmra.mxu0 %v770
        %v798 = vpop.f32.mrf.mxu0
        %v799 = vadd.f32 %v758, %v798
        %800 = vdwg.mxu0
        %vm801 = vcmask 31744
        %802 = vst.msk [vmem:[%s556] sm:$0xff] %vm801, %v790
        %803 = vst.msk [vmem:[%s556 + $0x8] sm:$0xff] %vm801, %v793
        %804 = vst.msk [vmem:[%s556 + $0x10] sm:$0xff] %vm801, %v796
        %vm805 = vcmask 29696
        %806 = vst.msk [vmem:[%s556 + $0x18] sm:$0x3f] %vm805, %v799
        %v807 = vld [vmem:[%s9] sm:$0xff]
        %v808 = vld [vmem:[%s9 + $0x8] sm:$0xff]
        %v809 = vld [vmem:[%s9 + $0x10] sm:$0xff]
        %v810 = vld [vmem:[%s9 + $0x18] sm:$0xff]
        %v811 = vld [vmem:[%s10] sm:$0x1]
        %v813 = vsel %vm578, %v569, 0
        %815 = vmatpush.msra.mxu0 0.0
        %816 = vmatpush.msra.mxu0 0.0
        %817 = vmatpush.msra.mxu0 0.0
        %818 = vmatpush.msra.mxu0 0.0
        %819 = vmatpush.msra.mxu0 0.0
        %820 = vmatpush.msra.mxu0 0.0
        %821 = vmatpush.msra.mxu0 0.0
        %822 = vmatpush.msra.mxu0 0.0
        %823 = vmatpush.msra.mxu0 0.0
        %824 = vmatpush.msra.mxu0 0.0
        %825 = vmatpush.msra.mxu0 0.0
        %826 = vmatpush.msra.mxu0 0.0
        %827 = vmatpush.msra.mxu0 %v810
        %828 = vmatpush.msra.mxu0 %v809
        %829 = vmatpush.msra.mxu0 %v808
        %830 = vmatpush.msra.mxu0 %v807
        %831 = vmatmul.f32.gmra.mxu0 %v813
        %v832 = vpop.f32.mrf.mxu0
        %v833 = vadd.f32 %v811, %v832
        %834 = vdwg.mxu0
        %vm835 = vcmask 32768
        %836 = vst.msk [vmem:[%s521] sm:$0x1] %vm835, %v833
        %p837 = scmp.lt.s32.totalorder %s29, 1
        %s838 = scalar_select %p837, %s29, 1
        %s839 = smul.addr %s838, 8
        %s840 = scalar_lea.vmem %s11, %s839
        %p841 = scmp.lt.s32.totalorder %s29, 1
        %s842 = scalar_select %p841, %s29, 1
        %s843 = smul.addr %s842, 4
        %s844 = smul.addr %s843, 8
        %s845 = scalar_lea.vmem %s12, %s844
        %s846 = sand.u32 %s345, 1
        %s847 = scalar_lea.sflag [#allocation3], %s846
        %s848 = sand.u32 %s345, 1
        %s849 = scalar_lea.vmem [#allocation2], %s848
        %p850 = scmp.lt.s32.totalorder %s29, 1
        %s851 = scalar_select %p850, %s29, 1
        %s852 = smul.addr %s851, 4
        %s853 = smul.addr %s852, 8
        %s854 = scalar_lea.vmem %s14, %s853
        // Predicated region
        $region65: #{_lambda_.3} parent=63 // pred_check
          %p855 = pneg %p303
        $region66: #{_lambda_.3} parent=63 // pred_check_branch
          %857 = sbr.rel (%p855) target = $region68
        $region67: #{_lambda_.3} parent=63 // pred_region
          _
        $region68: #{_lambda_.3} parent=63 // pred_fallthru
          _
        // Predicated region
        $region69: #{_lambda_.3} parent=63 // pred_check
          %p858 = pneg %p329
        $region70: #{_lambda_.3} parent=63 // pred_check_branch
          %860 = sbr.rel (%p858) target = $region72
        $region71: #{_lambda_.3} parent=63 // pred_region
          _
        $region72: #{_lambda_.3} parent=63 // pred_fallthru
          _
        // Predicated region
        $region73: #{_lambda_.3} parent=63 // pred_check
          %p861 = pneg %p355
        $region74: #{_lambda_.3} parent=63 // pred_check_branch
          %863 = sbr.rel (%p861) target = $region76
        $region75: #{_lambda_.3} parent=63 // pred_region
          %865 = vsyncadd %s847, 0
          %s866 = scalar_lea.hbm %s13, %s29
          %s868 = sshll.u32 %s849, 4
          %s869 = int_to_ptr.vmem [resolvable:$true] %s868
          %s870 = sshll.u32 %s866, 4
          %s871 = int_to_ptr.hbm [resolvable:$true] %s870
          %873 = dma.vmem_to_hbm [thread:$0]  %s869, 16, %s871, %s847
        $region76: #{_lambda_.3} parent=63 // pred_fallthru
          _
        // Predicated region
        $region77: #{_lambda_.3} parent=63 // pred_check
          %p874 = pneg %p381
        $region78: #{_lambda_.3} parent=63 // pred_check_branch
          %876 = sbr.rel (%p874) target = $region80
        $region79: #{_lambda_.3} parent=63 // pred_region
          _
        $region80: #{_lambda_.3} parent=63 // pred_fallthru
          _
      $region64: #{_lambda_.3} parent=5 // pred_fallthru
        _
      %p877 = scmp.le.s32.totalorder 2, %s24
      // Predicated region
      $region81: #{_lambda_.3} parent=5 // pred_check
        %p878 = pneg %p877
      $region82: #{_lambda_.3} parent=5 // pred_check_branch
        %880 = sbr.rel (%p878) target = $region84
      $region83: #{_lambda_.3} parent=5 // pred_region
        %s881 = ssub.s32 %s24, 2
        // Predicated region
        $region85: #{_lambda_.3} parent=83 // pred_check
          %p882 = pneg %p309
        $region86: #{_lambda_.3} parent=83 // pred_check_branch
          %884 = sbr.rel (%p882) target = $region88
        $region87: #{_lambda_.3} parent=83 // pred_region
          %p885 = scmp.lt.s32.totalorder %s30, 1
          %s886 = scalar_select %p885, %s30, 1
          %s887 = smul.addr %s886, 8
          %s888 = scalar_lea.vmem %s11, %s887
        $region88: #{_lambda_.3} parent=83 // pred_fallthru
          _
        // Predicated region
        $region89: #{_lambda_.3} parent=83 // pred_check
          %p889 = pneg %p335
        $region90: #{_lambda_.3} parent=83 // pred_check_branch
          %891 = sbr.rel (%p889) target = $region92
        $region91: #{_lambda_.3} parent=83 // pred_region
          %p892 = scmp.lt.s32.totalorder %s30, 1
          %s893 = scalar_select %p892, %s30, 1
          %s894 = smul.addr %s893, 4
          %s895 = smul.addr %s894, 8
          %s896 = scalar_lea.vmem %s12, %s895
        $region92: #{_lambda_.3} parent=83 // pred_fallthru
          _
        // Predicated region
        $region93: #{_lambda_.3} parent=83 // pred_check
          %p897 = pneg %p361
        $region94: #{_lambda_.3} parent=83 // pred_check_branch
          %899 = sbr.rel (%p897) target = $region96
        $region95: #{_lambda_.3} parent=83 // pred_region
          %s900 = sand.u32 %s346, 1
          %s901 = scalar_lea.sflag [#allocation3], %s900
          %s902 = sand.u32 %s346, 1
          %s903 = scalar_lea.vmem [#allocation2], %s902
          %905 = dma.done %s901, 16
        $region96: #{_lambda_.3} parent=83 // pred_fallthru
          _
        // Predicated region
        $region97: #{_lambda_.3} parent=83 // pred_check
          %p906 = pneg %p387
        $region98: #{_lambda_.3} parent=83 // pred_check_branch
          %908 = sbr.rel (%p906) target = $region100
        $region99: #{_lambda_.3} parent=83 // pred_region
          %p909 = scmp.lt.s32.totalorder %s30, 1
          %s910 = scalar_select %p909, %s30, 1
          %s911 = smul.addr %s910, 4
          %s912 = smul.addr %s911, 8
          %s913 = scalar_lea.vmem %s14, %s912
        $region100: #{_lambda_.3} parent=83 // pred_fallthru
          _
      $region84: #{_lambda_.3} parent=5 // pred_fallthru
        _
    $region6: #{_lambda_.3} parent=1 // loop_footer
      %s28 = sadd.s32 1, %s24
    $region7: #{_lambda_.3} parent=1 // loop_footer_branch
      %23 = sbr.rel target = $region3
    $region8: #{_lambda_.3} parent=1 // loop_exit
      _
    %914 = vsyncpa [#allocation3], 1
    %s915 = scalar_lea.sflag [#allocation3], 1
    %916 = vsyncpa %s915, 1

// kernel: _lambda_.2
$region0: #{_lambda_.2}
  #allocation0 [shape = 'u32[]', space=smem, size = 0x4, offset = 0x4, fixed_abs, tag = 'smem constant byte address 0x4 - core index']
  #allocation1 [shape = 'u32[72,128]{1,0:T(1,128)}', space=vmem, size = 0x9000, scoped, tag = 'internal scratch']
  %s0 = inlined_call_operand.vmem [shape: f32[2,32,32], index: 0, kind: input, shape index: {}]
  %s1 = inlined_call_operand.vmem [shape: f32[2,1,32], index: 1, kind: input, shape index: {}]
  %s2 = inlined_call_operand.vmem [shape: f32[1,32], index: 2, kind: input, shape index: {}]
  %s3 = inlined_call_operand.vmem [shape: f32[1,32], index: 3, kind: input, shape index: {}]
  %s4 = inlined_call_operand.vmem [shape: bf16[2,32,96], index: 4, kind: input, shape index: {}]
  %s5 = inlined_call_operand.vmem [shape: f32[2,1,96], index: 5, kind: input, shape index: {}]
  %s6 = inlined_call_operand.vmem [shape: bf16[2,32,32], index: 6, kind: input, shape index: {}]
  %s7 = inlined_call_operand.vmem [shape: f32[2,1,32], index: 7, kind: input, shape index: {}]
  %s8 = inlined_call_operand.vmem [shape: f32[2,1,32], index: 8, kind: input, shape index: {}]
  %s9 = inlined_call_operand.vmem [shape: f32[2,1,32], index: 9, kind: input, shape index: {}]
  %s10 = inlined_call_operand.vmem [shape: bf16[2,32,64], index: 10, kind: input, shape index: {}]
  %s11 = inlined_call_operand.vmem [shape: f32[2,1,64], index: 11, kind: input, shape index: {}]
  %s12 = inlined_call_operand.vmem [shape: bf16[2,64,32], index: 12, kind: input, shape index: {}]
  %s13 = inlined_call_operand.vmem [shape: f32[2,1,32], index: 13, kind: input, shape index: {}]
  %s14 = inlined_call_operand.vmem [shape: f32[2,1,32], index: 14, kind: input, shape index: {}]
  %s15 = inlined_call_operand.vmem [shape: f32[2,1,32], index: 15, kind: input, shape index: {}]
  %s16 = inlined_call_operand.vmem [shape: bf16[32,32], index: 16, kind: input, shape index: {}]
  %s17 = inlined_call_operand.vmem [shape: f32[1,32], index: 17, kind: input, shape index: {}]
  %s18 = inlined_call_operand.vmem [shape: f32[2,32,32], index: 18, kind: output, shape index: {0}]
  %s19 = inlined_call_operand.vmem [shape: f32[2,1,32], index: 19, kind: output, shape index: {1}]
  %20 = xla_tuple %s18, %s19
  %s21 = sld [smem:[#allocation0]]
  $region113: #{_lambda_.2} parent=0
    _
  %s23 = ssub.s32 1, %s21
  %s24 = scalar_select 0, %s23, %s21
  loop: start=0, step=1, limit=4
  $region2: #{_lambda_.2} parent=0 // loop_pre_header
    _
  $region3: #{_lambda_.2} parent=0 // loop_header
    %s26 = sphi 0, %s30
    %p27 = scmp.ge.s32.totalorder %s26, 4
    %s36 = sphi 0, %s38
    %s39 = sphi 0, %s36
    %s40 = sphi 0, %s39
    %s56 = sphi 0, %s40
    %s62 = sphi 0, %s64
    %s65 = sphi 0, %s62
    %s66 = sphi 0, %s65
    %s82 = sphi 0, %s66
    %s86 = sphi 0, %s86
    %s88 = sphi 0, %s86
    %s89 = sphi 0, %s88
    %s103 = sphi 0, %s89
    %s107 = sphi 0, %s107
    %s109 = sphi 0, %s107
    %s110 = sphi 0, %s109
    %s124 = sphi 0, %s110
    %s128 = sphi 0, %s128
    %s130 = sphi 0, %s128
    %s131 = sphi 0, %s130
    %s145 = sphi 0, %s131
    %s149 = sphi 0, %s149
    %s151 = sphi 0, %s149
    %s152 = sphi 0, %s151
    %s166 = sphi 0, %s152
    %s170 = sphi 0, %s170
    %s172 = sphi 0, %s170
    %s173 = sphi 0, %s172
    %s187 = sphi 0, %s173
    %s191 = sphi 0, %s191
    %s193 = sphi 0, %s191
    %s194 = sphi 0, %s193
    %s208 = sphi 0, %s194
    %s212 = sphi 0, %s212
    %s214 = sphi 0, %s212
    %s215 = sphi 0, %s214
    %s229 = sphi 0, %s215
    %s233 = sphi 0, %s233
    %s235 = sphi 0, %s233
    %s236 = sphi 0, %s235
    %s250 = sphi 0, %s236
    %s254 = sphi 0, %s254
    %s256 = sphi 0, %s254
    %s257 = sphi 0, %s256
    %s271 = sphi 0, %s257
    %s275 = sphi 0, %s275
    %s277 = sphi 0, %s275
    %s278 = sphi 0, %s277
    %s292 = sphi 0, %s278
    %s296 = sphi 0, %s296
    %s298 = sphi 0, %s296
    %s299 = sphi 0, %s298
    %s313 = sphi 0, %s299
    %s317 = sphi 0, %s317
    %s319 = sphi 0, %s317
    %s320 = sphi 0, %s319
    %s334 = sphi 0, %s320
    %s338 = sphi 0, %s338
    %s340 = sphi 0, %s338
    %s341 = sphi 0, %s340
    %s355 = sphi 0, %s341
    %s359 = sphi 0, %s359
    %s361 = sphi 0, %s359
    %s362 = sphi 0, %s361
    %s376 = sphi 0, %s362
    %s380 = sphi 0, %s380
    %s382 = sphi 0, %s380
    %s383 = sphi 0, %s382
    %s397 = sphi 0, %s383
    %s401 = sphi 0, %s401
    %s403 = sphi 0, %s401
    %s404 = sphi 0, %s403
    %s418 = sphi 0, %s404
    %s424 = sphi 0, %s426
    %s427 = sphi 0, %s424
    %s428 = sphi 0, %s427
    %s444 = sphi 0, %s428
    %s450 = sphi 0, %s452
    %s453 = sphi 0, %s450
    %s454 = sphi 0, %s453
    %s470 = sphi 0, %s454
  $region4: #{_lambda_.2} parent=0 // loop_header_branch
    %29 = sbr.rel (%p27) target = $region8
  $region5: #{_lambda_.2} parent=0 // loop_body
    %s31 = ssub.s32 %s26, 1
    %s32 = ssub.s32 %s26, 2
    %s33 = sadd.s32 %s26, 1
    %s34 = ssub.s32 %s26, %s33
    %p35 = scmp.eq.s32.totalorder %s34, 0
    %s37 = sadd.s32 %s36, 1
    %s38 = scalar_select %p35, %s36, %s37
    %p41 = pneg %p35
    %p42 = scmp.eq.s32.totalorder %s26, 1
    %p43 = por %p41, %p42
    %p44 = scmp.ne.s32.totalorder %s36, %s39
    %p45 = scmp.eq.s32.totalorder %s26, 0
    %p46 = por %p44, %p45
    %p47 = scmp.ne.s32.totalorder %s36, %s39
    %p48 = scmp.eq.s32.totalorder %s31, 1
    %p49 = por %p47, %p48
    %p50 = scmp.ne.s32.totalorder %s39, %s40
    %p51 = scmp.eq.s32.totalorder %s31, 0
    %p52 = por %p50, %p51
    %p53 = scmp.ne.s32.totalorder %s39, %s40
    %p54 = scmp.eq.s32.totalorder %s32, 1
    %p55 = por %p53, %p54
    %p57 = scmp.ne.s32.totalorder %s40, %s56
    %p58 = scmp.eq.s32.totalorder %s32, 0
    %p59 = por %p57, %p58
    %s60 = ssub.s32 %s26, %s33
    %p61 = scmp.eq.s32.totalorder %s60, 0
    %s63 = sadd.s32 %s62, 1
    %s64 = scalar_select %p61, %s62, %s63
    %p67 = pneg %p61
    %p68 = scmp.eq.s32.totalorder %s26, 1
    %p69 = por %p67, %p68
    %p70 = scmp.ne.s32.totalorder %s62, %s65
    %p71 = scmp.eq.s32.totalorder %s26, 0
    %p72 = por %p70, %p71
    %p73 = scmp.ne.s32.totalorder %s62, %s65
    %p74 = scmp.eq.s32.totalorder %s31, 1
    %p75 = por %p73, %p74
    %p76 = scmp.ne.s32.totalorder %s65, %s66
    %p77 = scmp.eq.s32.totalorder %s31, 0
    %p78 = por %p76, %p77
    %p79 = scmp.ne.s32.totalorder %s65, %s66
    %p80 = scmp.eq.s32.totalorder %s32, 1
    %p81 = por %p79, %p80
    %p83 = scmp.ne.s32.totalorder %s66, %s82
    %p84 = scmp.eq.s32.totalorder %s32, 0
    %p85 = por %p83, %p84
    %s87 = sadd.s32 %s86, 1
    %p90 = scmp.eq.s32.totalorder %s26, 1
    %p91 = scmp.ne.s32.totalorder %s86, %s88
    %p92 = scmp.eq.s32.totalorder %s26, 0
    %p93 = por %p91, %p92
    %p94 = scmp.ne.s32.totalorder %s86, %s88
    %p95 = scmp.eq.s32.totalorder %s31, 1
    %p96 = por %p94, %p95
    %p97 = scmp.ne.s32.totalorder %s88, %s89
    %p98 = scmp.eq.s32.totalorder %s31, 0
    %p99 = por %p97, %p98
    %p100 = scmp.ne.s32.totalorder %s88, %s89
    %p101 = scmp.eq.s32.totalorder %s32, 1
    %p102 = por %p100, %p101
    %p104 = scmp.ne.s32.totalorder %s89, %s103
    %p105 = scmp.eq.s32.totalorder %s32, 0
    %p106 = por %p104, %p105
    %s108 = sadd.s32 %s107, 1
    %p111 = scmp.eq.s32.totalorder %s26, 1
    %p112 = scmp.ne.s32.totalorder %s107, %s109
    %p113 = scmp.eq.s32.totalorder %s26, 0
    %p114 = por %p112, %p113
    %p115 = scmp.ne.s32.totalorder %s107, %s109
    %p116 = scmp.eq.s32.totalorder %s31, 1
    %p117 = por %p115, %p116
    %p118 = scmp.ne.s32.totalorder %s109, %s110
    %p119 = scmp.eq.s32.totalorder %s31, 0
    %p120 = por %p118, %p119
    %p121 = scmp.ne.s32.totalorder %s109, %s110
    %p122 = scmp.eq.s32.totalorder %s32, 1
    %p123 = por %p121, %p122
    %p125 = scmp.ne.s32.totalorder %s110, %s124
    %p126 = scmp.eq.s32.totalorder %s32, 0
    %p127 = por %p125, %p126
    %s129 = sadd.s32 %s128, 1
    %p132 = scmp.eq.s32.totalorder %s26, 1
    %p133 = scmp.ne.s32.totalorder %s128, %s130
    %p134 = scmp.eq.s32.totalorder %s26, 0
    %p135 = por %p133, %p134
    %p136 = scmp.ne.s32.totalorder %s128, %s130
    %p137 = scmp.eq.s32.totalorder %s31, 1
    %p138 = por %p136, %p137
    %p139 = scmp.ne.s32.totalorder %s130, %s131
    %p140 = scmp.eq.s32.totalorder %s31, 0
    %p141 = por %p139, %p140
    %p142 = scmp.ne.s32.totalorder %s130, %s131
    %p143 = scmp.eq.s32.totalorder %s32, 1
    %p144 = por %p142, %p143
    %p146 = scmp.ne.s32.totalorder %s131, %s145
    %p147 = scmp.eq.s32.totalorder %s32, 0
    %p148 = por %p146, %p147
    %s150 = sadd.s32 %s149, 1
    %p153 = scmp.eq.s32.totalorder %s26, 1
    %p154 = scmp.ne.s32.totalorder %s149, %s151
    %p155 = scmp.eq.s32.totalorder %s26, 0
    %p156 = por %p154, %p155
    %p157 = scmp.ne.s32.totalorder %s149, %s151
    %p158 = scmp.eq.s32.totalorder %s31, 1
    %p159 = por %p157, %p158
    %p160 = scmp.ne.s32.totalorder %s151, %s152
    %p161 = scmp.eq.s32.totalorder %s31, 0
    %p162 = por %p160, %p161
    %p163 = scmp.ne.s32.totalorder %s151, %s152
    %p164 = scmp.eq.s32.totalorder %s32, 1
    %p165 = por %p163, %p164
    %p167 = scmp.ne.s32.totalorder %s152, %s166
    %p168 = scmp.eq.s32.totalorder %s32, 0
    %p169 = por %p167, %p168
    %s171 = sadd.s32 %s170, 1
    %p174 = scmp.eq.s32.totalorder %s26, 1
    %p175 = scmp.ne.s32.totalorder %s170, %s172
    %p176 = scmp.eq.s32.totalorder %s26, 0
    %p177 = por %p175, %p176
    %p178 = scmp.ne.s32.totalorder %s170, %s172
    %p179 = scmp.eq.s32.totalorder %s31, 1
    %p180 = por %p178, %p179
    %p181 = scmp.ne.s32.totalorder %s172, %s173
    %p182 = scmp.eq.s32.totalorder %s31, 0
    %p183 = por %p181, %p182
    %p184 = scmp.ne.s32.totalorder %s172, %s173
    %p185 = scmp.eq.s32.totalorder %s32, 1
    %p186 = por %p184, %p185
    %p188 = scmp.ne.s32.totalorder %s173, %s187
    %p189 = scmp.eq.s32.totalorder %s32, 0
    %p190 = por %p188, %p189
    %s192 = sadd.s32 %s191, 1
    %p195 = scmp.eq.s32.totalorder %s26, 1
    %p196 = scmp.ne.s32.totalorder %s191, %s193
    %p197 = scmp.eq.s32.totalorder %s26, 0
    %p198 = por %p196, %p197
    %p199 = scmp.ne.s32.totalorder %s191, %s193
    %p200 = scmp.eq.s32.totalorder %s31, 1
    %p201 = por %p199, %p200
    %p202 = scmp.ne.s32.totalorder %s193, %s194
    %p203 = scmp.eq.s32.totalorder %s31, 0
    %p204 = por %p202, %p203
    %p205 = scmp.ne.s32.totalorder %s193, %s194
    %p206 = scmp.eq.s32.totalorder %s32, 1
    %p207 = por %p205, %p206
    %p209 = scmp.ne.s32.totalorder %s194, %s208
    %p210 = scmp.eq.s32.totalorder %s32, 0
    %p211 = por %p209, %p210
    %s213 = sadd.s32 %s212, 1
    %p216 = scmp.eq.s32.totalorder %s26, 1
    %p217 = scmp.ne.s32.totalorder %s212, %s214
    %p218 = scmp.eq.s32.totalorder %s26, 0
    %p219 = por %p217, %p218
    %p220 = scmp.ne.s32.totalorder %s212, %s214
    %p221 = scmp.eq.s32.totalorder %s31, 1
    %p222 = por %p220, %p221
    %p223 = scmp.ne.s32.totalorder %s214, %s215
    %p224 = scmp.eq.s32.totalorder %s31, 0
    %p225 = por %p223, %p224
    %p226 = scmp.ne.s32.totalorder %s214, %s215
    %p227 = scmp.eq.s32.totalorder %s32, 1
    %p228 = por %p226, %p227
    %p230 = scmp.ne.s32.totalorder %s215, %s229
    %p231 = scmp.eq.s32.totalorder %s32, 0
    %p232 = por %p230, %p231
    %s234 = sadd.s32 %s233, 1
    %p237 = scmp.eq.s32.totalorder %s26, 1
    %p238 = scmp.ne.s32.totalorder %s233, %s235
    %p239 = scmp.eq.s32.totalorder %s26, 0
    %p240 = por %p238, %p239
    %p241 = scmp.ne.s32.totalorder %s233, %s235
    %p242 = scmp.eq.s32.totalorder %s31, 1
    %p243 = por %p241, %p242
    %p244 = scmp.ne.s32.totalorder %s235, %s236
    %p245 = scmp.eq.s32.totalorder %s31, 0
    %p246 = por %p244, %p245
    %p247 = scmp.ne.s32.totalorder %s235, %s236
    %p248 = scmp.eq.s32.totalorder %s32, 1
    %p249 = por %p247, %p248
    %p251 = scmp.ne.s32.totalorder %s236, %s250
    %p252 = scmp.eq.s32.totalorder %s32, 0
    %p253 = por %p251, %p252
    %s255 = sadd.s32 %s254, 1
    %p258 = scmp.eq.s32.totalorder %s26, 1
    %p259 = scmp.ne.s32.totalorder %s254, %s256
    %p260 = scmp.eq.s32.totalorder %s26, 0
    %p261 = por %p259, %p260
    %p262 = scmp.ne.s32.totalorder %s254, %s256
    %p263 = scmp.eq.s32.totalorder %s31, 1
    %p264 = por %p262, %p263
    %p265 = scmp.ne.s32.totalorder %s256, %s257
    %p266 = scmp.eq.s32.totalorder %s31, 0
    %p267 = por %p265, %p266
    %p268 = scmp.ne.s32.totalorder %s256, %s257
    %p269 = scmp.eq.s32.totalorder %s32, 1
    %p270 = por %p268, %p269
    %p272 = scmp.ne.s32.totalorder %s257, %s271
    %p273 = scmp.eq.s32.totalorder %s32, 0
    %p274 = por %p272, %p273
    %s276 = sadd.s32 %s275, 1
    %p279 = scmp.eq.s32.totalorder %s26, 1
    %p280 = scmp.ne.s32.totalorder %s275, %s277
    %p281 = scmp.eq.s32.totalorder %s26, 0
    %p282 = por %p280, %p281
    %p283 = scmp.ne.s32.totalorder %s275, %s277
    %p284 = scmp.eq.s32.totalorder %s31, 1
    %p285 = por %p283, %p284
    %p286 = scmp.ne.s32.totalorder %s277, %s278
    %p287 = scmp.eq.s32.totalorder %s31, 0
    %p288 = por %p286, %p287
    %p289 = scmp.ne.s32.totalorder %s277, %s278
    %p290 = scmp.eq.s32.totalorder %s32, 1
    %p291 = por %p289, %p290
    %p293 = scmp.ne.s32.totalorder %s278, %s292
    %p294 = scmp.eq.s32.totalorder %s32, 0
    %p295 = por %p293, %p294
    %s297 = sadd.s32 %s296, 1
    %p300 = scmp.eq.s32.totalorder %s26, 1
    %p301 = scmp.ne.s32.totalorder %s296, %s298
    %p302 = scmp.eq.s32.totalorder %s26, 0
    %p303 = por %p301, %p302
    %p304 = scmp.ne.s32.totalorder %s296, %s298
    %p305 = scmp.eq.s32.totalorder %s31, 1
    %p306 = por %p304, %p305
    %p307 = scmp.ne.s32.totalorder %s298, %s299
    %p308 = scmp.eq.s32.totalorder %s31, 0
    %p309 = por %p307, %p308
    %p310 = scmp.ne.s32.totalorder %s298, %s299
    %p311 = scmp.eq.s32.totalorder %s32, 1
    %p312 = por %p310, %p311
    %p314 = scmp.ne.s32.totalorder %s299, %s313
    %p315 = scmp.eq.s32.totalorder %s32, 0
    %p316 = por %p314, %p315
    %s318 = sadd.s32 %s317, 1
    %p321 = scmp.eq.s32.totalorder %s26, 1
    %p322 = scmp.ne.s32.totalorder %s317, %s319
    %p323 = scmp.eq.s32.totalorder %s26, 0
    %p324 = por %p322, %p323
    %p325 = scmp.ne.s32.totalorder %s317, %s319
    %p326 = scmp.eq.s32.totalorder %s31, 1
    %p327 = por %p325, %p326
    %p328 = scmp.ne.s32.totalorder %s319, %s320
    %p329 = scmp.eq.s32.totalorder %s31, 0
    %p330 = por %p328, %p329
    %p331 = scmp.ne.s32.totalorder %s319, %s320
    %p332 = scmp.eq.s32.totalorder %s32, 1
    %p333 = por %p331, %p332
    %p335 = scmp.ne.s32.totalorder %s320, %s334
    %p336 = scmp.eq.s32.totalorder %s32, 0
    %p337 = por %p335, %p336
    %s339 = sadd.s32 %s338, 1
    %p342 = scmp.eq.s32.totalorder %s26, 1
    %p343 = scmp.ne.s32.totalorder %s338, %s340
    %p344 = scmp.eq.s32.totalorder %s26, 0
    %p345 = por %p343, %p344
    %p346 = scmp.ne.s32.totalorder %s338, %s340
    %p347 = scmp.eq.s32.totalorder %s31, 1
    %p348 = por %p346, %p347
    %p349 = scmp.ne.s32.totalorder %s340, %s341
    %p350 = scmp.eq.s32.totalorder %s31, 0
    %p351 = por %p349, %p350
    %p352 = scmp.ne.s32.totalorder %s340, %s341
    %p353 = scmp.eq.s32.totalorder %s32, 1
    %p354 = por %p352, %p353
    %p356 = scmp.ne.s32.totalorder %s341, %s355
    %p357 = scmp.eq.s32.totalorder %s32, 0
    %p358 = por %p356, %p357
    %s360 = sadd.s32 %s359, 1
    %p363 = scmp.eq.s32.totalorder %s26, 1
    %p364 = scmp.ne.s32.totalorder %s359, %s361
    %p365 = scmp.eq.s32.totalorder %s26, 0
    %p366 = por %p364, %p365
    %p367 = scmp.ne.s32.totalorder %s359, %s361
    %p368 = scmp.eq.s32.totalorder %s31, 1
    %p369 = por %p367, %p368
    %p370 = scmp.ne.s32.totalorder %s361, %s362
    %p371 = scmp.eq.s32.totalorder %s31, 0
    %p372 = por %p370, %p371
    %p373 = scmp.ne.s32.totalorder %s361, %s362
    %p374 = scmp.eq.s32.totalorder %s32, 1
    %p375 = por %p373, %p374
    %p377 = scmp.ne.s32.totalorder %s362, %s376
    %p378 = scmp.eq.s32.totalorder %s32, 0
    %p379 = por %p377, %p378
    %s381 = sadd.s32 %s380, 1
    %p384 = scmp.eq.s32.totalorder %s26, 1
    %p385 = scmp.ne.s32.totalorder %s380, %s382
    %p386 = scmp.eq.s32.totalorder %s26, 0
    %p387 = por %p385, %p386
    %p388 = scmp.ne.s32.totalorder %s380, %s382
    %p389 = scmp.eq.s32.totalorder %s31, 1
    %p390 = por %p388, %p389
    %p391 = scmp.ne.s32.totalorder %s382, %s383
    %p392 = scmp.eq.s32.totalorder %s31, 0
    %p393 = por %p391, %p392
    %p394 = scmp.ne.s32.totalorder %s382, %s383
    %p395 = scmp.eq.s32.totalorder %s32, 1
    %p396 = por %p394, %p395
    %p398 = scmp.ne.s32.totalorder %s383, %s397
    %p399 = scmp.eq.s32.totalorder %s32, 0
    %p400 = por %p398, %p399
    %s402 = sadd.s32 %s401, 1
    %p405 = scmp.eq.s32.totalorder %s26, 1
    %p406 = scmp.ne.s32.totalorder %s401, %s403
    %p407 = scmp.eq.s32.totalorder %s26, 0
    %p408 = por %p406, %p407
    %p409 = scmp.ne.s32.totalorder %s401, %s403
    %p410 = scmp.eq.s32.totalorder %s31, 1
    %p411 = por %p409, %p410
    %p412 = scmp.ne.s32.totalorder %s403, %s404
    %p413 = scmp.eq.s32.totalorder %s31, 0
    %p414 = por %p412, %p413
    %p415 = scmp.ne.s32.totalorder %s403, %s404
    %p416 = scmp.eq.s32.totalorder %s32, 1
    %p417 = por %p415, %p416
    %p419 = scmp.ne.s32.totalorder %s404, %s418
    %p420 = scmp.eq.s32.totalorder %s32, 0
    %p421 = por %p419, %p420
    %s422 = ssub.s32 %s26, %s33
    %p423 = scmp.eq.s32.totalorder %s422, 0
    %s425 = sadd.s32 %s424, 1
    %s426 = scalar_select %p423, %s424, %s425
    %p429 = pneg %p423
    %p430 = scmp.eq.s32.totalorder %s26, 1
    %p431 = por %p429, %p430
    %p432 = scmp.ne.s32.totalorder %s424, %s427
    %p433 = scmp.eq.s32.totalorder %s26, 0
    %p434 = por %p432, %p433
    %p435 = scmp.ne.s32.totalorder %s424, %s427
    %p436 = scmp.eq.s32.totalorder %s31, 1
    %p437 = por %p435, %p436
    %p438 = scmp.ne.s32.totalorder %s427, %s428
    %p439 = scmp.eq.s32.totalorder %s31, 0
    %p440 = por %p438, %p439
    %p441 = scmp.ne.s32.totalorder %s427, %s428
    %p442 = scmp.eq.s32.totalorder %s32, 1
    %p443 = por %p441, %p442
    %p445 = scmp.ne.s32.totalorder %s428, %s444
    %p446 = scmp.eq.s32.totalorder %s32, 0
    %p447 = por %p445, %p446
    %s448 = ssub.s32 %s26, %s33
    %p449 = scmp.eq.s32.totalorder %s448, 0
    %s451 = sadd.s32 %s450, 1
    %s452 = scalar_select %p449, %s450, %s451
    %p455 = pneg %p449
    %p456 = scmp.eq.s32.totalorder %s26, 1
    %p457 = por %p455, %p456
    %p458 = scmp.ne.s32.totalorder %s450, %s453
    %p459 = scmp.eq.s32.totalorder %s26, 0
    %p460 = por %p458, %p459
    %p461 = scmp.ne.s32.totalorder %s450, %s453
    %p462 = scmp.eq.s32.totalorder %s31, 1
    %p463 = por %p461, %p462
    %p464 = scmp.ne.s32.totalorder %s453, %s454
    %p465 = scmp.eq.s32.totalorder %s31, 0
    %p466 = por %p464, %p465
    %p467 = scmp.ne.s32.totalorder %s453, %s454
    %p468 = scmp.eq.s32.totalorder %s32, 1
    %p469 = por %p467, %p468
    %p471 = scmp.ne.s32.totalorder %s454, %s470
    %p472 = scmp.eq.s32.totalorder %s32, 0
    %p473 = por %p471, %p472
    %p474 = scmp.le.s32.totalorder 1, %s26
    %p475 = scmp.lt.s32.totalorder %s26, 3
    %p476 = pnand %p474, %p475
    %p477 = pneg %p476
    // Predicated region
    $region9: #{_lambda_.2} parent=5 // pred_check
      _
    $region10: #{_lambda_.2} parent=5 // pred_check_branch
      %479 = sbr.rel (%p476) target = $region12
    $region11: #{_lambda_.2} parent=5 // pred_region
      %s480 = ssub.s32 %s26, 1
      // Predicated region
      $region13: #{_lambda_.2} parent=11 // pred_check
        %p481 = pneg %p99
      $region14: #{_lambda_.2} parent=11 // pred_check_branch
        %483 = sbr.rel (%p481) target = $region16
      $region15: #{_lambda_.2} parent=11 // pred_region
        _
      $region16: #{_lambda_.2} parent=11 // pred_fallthru
        _
      // Predicated region
      $region17: #{_lambda_.2} parent=11 // pred_check
        %p484 = pneg %p120
      $region18: #{_lambda_.2} parent=11 // pred_check_branch
        %486 = sbr.rel (%p484) target = $region20
      $region19: #{_lambda_.2} parent=11 // pred_region
        _
      $region20: #{_lambda_.2} parent=11 // pred_fallthru
        _
      // Predicated region
      $region21: #{_lambda_.2} parent=11 // pred_check
        %p487 = pneg %p141
      $region22: #{_lambda_.2} parent=11 // pred_check_branch
        %489 = sbr.rel (%p487) target = $region24
      $region23: #{_lambda_.2} parent=11 // pred_region
        _
      $region24: #{_lambda_.2} parent=11 // pred_fallthru
        _
      // Predicated region
      $region25: #{_lambda_.2} parent=11 // pred_check
        %p490 = pneg %p162
      $region26: #{_lambda_.2} parent=11 // pred_check_branch
        %492 = sbr.rel (%p490) target = $region28
      $region27: #{_lambda_.2} parent=11 // pred_region
        _
      $region28: #{_lambda_.2} parent=11 // pred_fallthru
        _
      // Predicated region
      $region29: #{_lambda_.2} parent=11 // pred_check
        %p493 = pneg %p183
      $region30: #{_lambda_.2} parent=11 // pred_check_branch
        %495 = sbr.rel (%p493) target = $region32
      $region31: #{_lambda_.2} parent=11 // pred_region
        _
      $region32: #{_lambda_.2} parent=11 // pred_fallthru
        _
      // Predicated region
      $region33: #{_lambda_.2} parent=11 // pred_check
        %p496 = pneg %p204
      $region34: #{_lambda_.2} parent=11 // pred_check_branch
        %498 = sbr.rel (%p496) target = $region36
      $region35: #{_lambda_.2} parent=11 // pred_region
        _
      $region36: #{_lambda_.2} parent=11 // pred_fallthru
        _
      // Predicated region
      $region37: #{_lambda_.2} parent=11 // pred_check
        %p499 = pneg %p225
      $region38: #{_lambda_.2} parent=11 // pred_check_branch
        %501 = sbr.rel (%p499) target = $region40
      $region39: #{_lambda_.2} parent=11 // pred_region
        _
      $region40: #{_lambda_.2} parent=11 // pred_fallthru
        _
      // Predicated region
      $region41: #{_lambda_.2} parent=11 // pred_check
        %p502 = pneg %p246
      $region42: #{_lambda_.2} parent=11 // pred_check_branch
        %504 = sbr.rel (%p502) target = $region44
      $region43: #{_lambda_.2} parent=11 // pred_region
        _
      $region44: #{_lambda_.2} parent=11 // pred_fallthru
        _
      // Predicated region
      $region45: #{_lambda_.2} parent=11 // pred_check
        %p505 = pneg %p267
      $region46: #{_lambda_.2} parent=11 // pred_check_branch
        %507 = sbr.rel (%p505) target = $region48
      $region47: #{_lambda_.2} parent=11 // pred_region
        _
      $region48: #{_lambda_.2} parent=11 // pred_fallthru
        _
      // Predicated region
      $region49: #{_lambda_.2} parent=11 // pred_check
        %p508 = pneg %p288
      $region50: #{_lambda_.2} parent=11 // pred_check_branch
        %510 = sbr.rel (%p508) target = $region52
      $region51: #{_lambda_.2} parent=11 // pred_region
        _
      $region52: #{_lambda_.2} parent=11 // pred_fallthru
        _
      // Predicated region
      $region53: #{_lambda_.2} parent=11 // pred_check
        %p511 = pneg %p309
      $region54: #{_lambda_.2} parent=11 // pred_check_branch
        %513 = sbr.rel (%p511) target = $region56
      $region55: #{_lambda_.2} parent=11 // pred_region
        _
      $region56: #{_lambda_.2} parent=11 // pred_fallthru
        _
      // Predicated region
      $region57: #{_lambda_.2} parent=11 // pred_check
        %p514 = pneg %p330
      $region58: #{_lambda_.2} parent=11 // pred_check_branch
        %516 = sbr.rel (%p514) target = $region60
      $region59: #{_lambda_.2} parent=11 // pred_region
        _
      $region60: #{_lambda_.2} parent=11 // pred_fallthru
        _
      // Predicated region
      $region61: #{_lambda_.2} parent=11 // pred_check
        %p517 = pneg %p351
      $region62: #{_lambda_.2} parent=11 // pred_check_branch
        %519 = sbr.rel (%p517) target = $region64
      $region63: #{_lambda_.2} parent=11 // pred_region
        _
      $region64: #{_lambda_.2} parent=11 // pred_fallthru
        _
      // Predicated region
      $region65: #{_lambda_.2} parent=11 // pred_check
        %p520 = pneg %p372
      $region66: #{_lambda_.2} parent=11 // pred_check_branch
        %522 = sbr.rel (%p520) target = $region68
      $region67: #{_lambda_.2} parent=11 // pred_region
        _
      $region68: #{_lambda_.2} parent=11 // pred_fallthru
        _
      // Predicated region
      $region69: #{_lambda_.2} parent=11 // pred_check
        %p523 = pneg %p393
      $region70: #{_lambda_.2} parent=11 // pred_check_branch
        %525 = sbr.rel (%p523) target = $region72
      $region71: #{_lambda_.2} parent=11 // pred_region
        _
      $region72: #{_lambda_.2} parent=11 // pred_fallthru
        _
      // Predicated region
      $region73: #{_lambda_.2} parent=11 // pred_check
        %p526 = pneg %p414
      $region74: #{_lambda_.2} parent=11 // pred_check_branch
        %528 = sbr.rel (%p526) target = $region76
      $region75: #{_lambda_.2} parent=11 // pred_region
        _
      $region76: #{_lambda_.2} parent=11 // pred_fallthru
        _
    $region12: #{_lambda_.2} parent=5 // pred_fallthru
      _
    %p529 = scmp.lt.s32.totalorder %s26, 2
    // Predicated region
    $region77: #{_lambda_.2} parent=5 // pred_check
      %p530 = pneg %p529
    $region78: #{_lambda_.2} parent=5 // pred_check_branch
      %532 = sbr.rel (%p530) target = $region80
    $region79: #{_lambda_.2} parent=5 // pred_region
      // Predicated region
      $region81: #{_lambda_.2} parent=79 // pred_check
        %p533 = pneg %p46
      $region82: #{_lambda_.2} parent=79 // pred_check_branch
        %535 = sbr.rel (%p533) target = $region84
      $region83: #{_lambda_.2} parent=79 // pred_region
        %p536 = scmp.lt.s32.totalorder %s26, 1
        %s537 = scalar_select %p536, %s26, 1
        %s538 = smul.addr %s537, 4
        %s539 = smul.addr %s538, 8
        %s540 = scalar_lea.vmem %s0, %s539
      $region84: #{_lambda_.2} parent=79 // pred_fallthru
        _
      // Predicated region
      $region85: #{_lambda_.2} parent=79 // pred_check
        %p541 = pneg %p72
      $region86: #{_lambda_.2} parent=79 // pred_check_branch
        %543 = sbr.rel (%p541) target = $region88
      $region87: #{_lambda_.2} parent=79 // pred_region
        %p544 = scmp.lt.s32.totalorder %s26, 1
        %s545 = scalar_select %p544, %s26, 1
        %s546 = scalar_lea.vmem %s1, %s545
      $region88: #{_lambda_.2} parent=79 // pred_fallthru
        _
    $region80: #{_lambda_.2} parent=5 // pred_fallthru
      _
    %p547 = scmp.le.s32.totalorder 1, %s26
    %p548 = scmp.lt.s32.totalorder %s26, 3
    %p549 = pnand %p547, %p548
    %p550 = pneg %p549
    // Predicated region
    $region89: #{_lambda_.2} parent=5 // pred_check
      _
    $region90: #{_lambda_.2} parent=5 // pred_check_branch
      %552 = sbr.rel (%p549) target = $region92
    $region91: #{_lambda_.2} parent=5 // pred_region
      %s553 = ssub.s32 %s26, 1
      %p554 = scmp.lt.s32.totalorder %s31, 1
      %s555 = scalar_select %p554, %s31, 1
      %s556 = smul.addr %s555, 4
      %s557 = smul.addr %s556, 8
      %s558 = scalar_lea.vmem %s0, %s557
      %p559 = pneg %p52
      %p560 = pneg %p49
      %p561 = scmp.lt.s32.totalorder %s31, 1
      %s562 = scalar_select %p561, %s31, 1
      %s563 = scalar_lea.vmem %s1, %s562
      %p564 = pneg %p78
      %p565 = pneg %p75
      %p566 = pneg %p99
      %p567 = pneg %p96
      %p568 = pneg %p120
      %p569 = pneg %p117
      %p570 = pneg %p141
      %p571 = pneg %p138
      %p572 = pneg %p162
      %p573 = pneg %p159
      %p574 = pneg %p183
      %p575 = pneg %p180
      %p576 = pneg %p204
      %p577 = pneg %p201
      %p578 = pneg %p225
      %p579 = pneg %p222
      %p580 = pneg %p246
      %p581 = pneg %p243
      %p582 = pneg %p267
      %p583 = pneg %p264
      %p584 = pneg %p288
      %p585 = pneg %p285
      %p586 = pneg %p309
      %p587 = pneg %p306
      %p588 = pneg %p330
      %p589 = pneg %p327
      %p590 = pneg %p351
      %p591 = pneg %p348
      %p592 = pneg %p372
      %p593 = pneg %p369
      %p594 = pneg %p393
      %p595 = pneg %p390
      %p596 = pneg %p414
      %p597 = pneg %p411
      %p598 = pneg %p440
      %p599 = pneg %p437
      %p600 = scmp.lt.s32.totalorder %s31, 1
      %s601 = scalar_select %p600, %s31, 1
      %s602 = smul.addr %s601, 4
      %s603 = smul.addr %s602, 8
      %s604 = scalar_lea.vmem %s18, %s603
      %p605 = pneg %p466
      %p606 = pneg %p463
      %p607 = scmp.lt.s32.totalorder %s31, 1
      %s608 = scalar_select %p607, %s31, 1
      %s609 = scalar_lea.vmem %s19, %s608
      %p610 = scmp.lt.s32.totalorder %s31, 1
      %s611 = scalar_select %p610, %s31, 1
      %s612 = smul.addr %s611, 4
      %s613 = smul.addr %s612, 8
      %s614 = scalar_lea.vmem %s0, %s613
      %p615 = scmp.lt.s32.totalorder %s31, 1
      %s616 = scalar_select %p615, %s31, 1
      %s617 = scalar_lea.vmem %s1, %s616
      %p618 = scmp.lt.s32.totalorder %s31, 1
      %s619 = scalar_select %p618, %s31, 1
      %s620 = smul.addr %s619, 4
      %s621 = smul.addr %s620, 8
      %s622 = scalar_lea.vmem %s18, %s621
      %p623 = scmp.lt.s32.totalorder %s31, 1
      %s624 = scalar_select %p623, %s31, 1
      %s625 = scalar_lea.vmem %s19, %s624
      %v627 = vld [vmem:[%s614] sm:$0xff]
      %v628 = vld [vmem:[%s614 + $0x8] sm:$0xff]
      %v629 = vld [vmem:[%s614 + $0x10] sm:$0xff]
      %v630 = vld [vmem:[%s614 + $0x18] sm:$0xff]
      %v631 = vld [vmem:[%s617] sm:$0x1]
      %v632 = vld [vmem:[%s2] sm:$0x1]
      %v633 = vld [vmem:[%s3] sm:$0x1]
      %vm634 = vcmask 261120
      %v635 = vsel %vm634, %v627, 0.0
      %636 = vadd.xlane.f32.xlu0 %v635
      %v637 = vpop.xlane.xlu0 %636
      %v638 = vsel %vm634, %v628, 0.0
      %639 = vadd.xlane.f32.xlu0 %v638
      %v640 = vpop.xlane.xlu0 %639
      %v641 = vsel %vm634, %v629, 0.0
      %642 = vadd.xlane.f32.xlu0 %v641
      %v643 = vpop.xlane.xlu0 %642
      %v644 = vsel %vm634, %v630, 0.0
      %645 = vadd.xlane.f32.xlu0 %v644
      %v646 = vpop.xlane.xlu0 %645
      %v647 = vrcp.pop 32.0
      %v648 = vmul.f32 32.0, %v647
      %v649 = vsub.f32 1.0, %v648
      %v650 = vmul.f32 %v647, %v649
      %v651 = vadd.f32 %v647, %v650
      %vm652 = vweird.f32 %v647
      %v653 = vsel %vm652, %v647, %v651
      %v654 = vmul.f32 %v637, %v653
      %v655 = vmul.f32 %v640, %v653
      %v656 = vmul.f32 %v643, %v653
      %v657 = vmul.f32 %v646, %v653
      %v658 = vsub.f32 %v627, %v654
      %v659 = vsub.f32 %v628, %v655
      %v660 = vsub.f32 %v629, %v656
      %v661 = vsub.f32 %v630, %v657
      %v662 = vmul.f32 %v658, %v658
      %v663 = vmul.f32 %v659, %v659
      %v664 = vmul.f32 %v660, %v660
      %v665 = vmul.f32 %v661, %v661
      %v666 = vsel %vm634, %v662, 0.0
      %667 = vadd.xlane.f32.xlu0 %v666
      %v668 = vpop.xlane.xlu0 %667
      %v669 = vsel %vm634, %v663, 0.0
      %670 = vadd.xlane.f32.xlu0 %v669
      %v671 = vpop.xlane.xlu0 %670
      %v672 = vsel %vm634, %v664, 0.0
      %673 = vadd.xlane.f32.xlu0 %v672
      %v674 = vpop.xlane.xlu0 %673
      %v675 = vsel %vm634, %v665, 0.0
      %676 = vadd.xlane.f32.xlu0 %v675
      %v677 = vpop.xlane.xlu0 %676
      %v678 = vmul.f32 %v668, %v653
      %v679 = vmul.f32 %v671, %v653
      %v680 = vmul.f32 %v674, %v653
      %v681 = vmul.f32 %v677, %v653
      %v682 = vadd.f32 %v678, 1e-12
      %v683 = vadd.f32 %v679, 1e-12
      %v684 = vadd.f32 %v680, 1e-12
      %v685 = vadd.f32 %v681, 1e-12
      %v686 = vrsqrt.pop %v682
      %v687 = vmul.f32 %v686, %v682
      %v688 = vmul.f32 %v687, %v686
      %v689 = vmul.f32 0.5, %v688
      %v690 = vsub.f32 1.5, %v689
      %v691 = vmul.f32 %v686, %v690
      %vm692 = vweird.f32 %v682
      %vm693 = vweird.f32 %v686
      %vm694 = vmor %vm692, %vm693
      %v695 = vsel %vm694, %v686, %v691
      %v696 = vrsqrt.pop %v683
      %v697 = vmul.f32 %v696, %v683
      %v698 = vmul.f32 %v697, %v696
      %v699 = vmul.f32 0.5, %v698
      %v700 = vsub.f32 1.5, %v699
      %v701 = vmul.f32 %v696, %v700
      %vm702 = vweird.f32 %v683
      %vm703 = vweird.f32 %v696
      %vm704 = vmor %vm702, %vm703
      %v705 = vsel %vm704, %v696, %v701
      %v706 = vrsqrt.pop %v684
      %v707 = vmul.f32 %v706, %v684
      %v708 = vmul.f32 %v707, %v706
      %v709 = vmul.f32 0.5, %v708
      %v710 = vsub.f32 1.5, %v709
      %v711 = vmul.f32 %v706, %v710
      %vm712 = vweird.f32 %v684
      %vm713 = vweird.f32 %v706
      %vm714 = vmor %vm712, %vm713
      %v715 = vsel %vm714, %v706, %v711
      %v716 = vrsqrt.pop %v685
      %v717 = vmul.f32 %v716, %v685
      %v718 = vmul.f32 %v717, %v716
      %v719 = vmul.f32 0.5, %v718
      %v720 = vsub.f32 1.5, %v719
      %v721 = vmul.f32 %v716, %v720
      %vm722 = vweird.f32 %v685
      %vm723 = vweird.f32 %v716
      %vm724 = vmor %vm722, %vm723
      %v725 = vsel %vm724, %v716, %v721
      %v726 = vmul.f32 %v658, %v695
      %v727 = vmul.f32 %v659, %v705
      %v728 = vmul.f32 %v660, %v715
      %v729 = vmul.f32 %v661, %v725
      %v731 = vperm.slane %v632, 0
      %v733 = vmul.f32 %v726, %v731
      %v734 = vmul.f32 %v727, %v731
      %v735 = vmul.f32 %v728, %v731
      %v736 = vmul.f32 %v729, %v731
      %v738 = vperm.slane %v633, 0
      %v740 = vadd.f32 %v733, %v738
      %v741 = vadd.f32 %v734, %v738
      %v742 = vadd.f32 %v735, %v738
      %v743 = vadd.f32 %v736, %v738
      %v744 = vld [vmem:[%s4] sm:$0xf]
      %v745 = vld [vmem:[%s4 + $0x4] sm:$0xf]
      %v746 = vld [vmem:[%s4 + $0x8] sm:$0xf]
      %v747 = vld [vmem:[%s4 + $0xc] sm:$0xf]
      %v748 = vld [vmem:[%s6] sm:$0xf]
      %v749 = vld [vmem:[%s6 + $0x4] sm:$0xf]
      %v750 = vld [vmem:[%s6 + $0x8] sm:$0xf]
      %v751 = vld [vmem:[%s6 + $0xc] sm:$0xf]
      %v752 = vpack.c.bf16 %v741, %v740
      %v753 = vpack.c.bf16 %v743, %v742
      %v754 = vld [vmem:[%s5] sm:$0x1]
      %v756 = vperm.slane %v754, 0
      %v762 = vunpack.c.l.b16 %v744
      %v763 = vunpack.c.l.b16 %v745
      %v764 = vunpack.c.l.b16 %v746
      %v765 = vunpack.c.l.b16 %v747
      %v766 = vpack.c.b16 %v763, %v762
      %v767 = vpack.c.b16 %v765, %v764
      %v771 = vsel %vm634, %v752, 0
      %v774 = vsel %vm634, %v753, 0
      %776 = vmatpush.bf16.msra.mxu0 0
      %777 = vmatpush.bf16.msra.mxu0 0
      %778 = vmatpush.bf16.msra.mxu0 0
      %779 = vmatpush.bf16.msra.mxu0 0
      %780 = vmatpush.bf16.msra.mxu0 0
      %781 = vmatpush.bf16.msra.mxu0 0
      %782 = vmatpush.bf16.msra.mxu0 %v767
      %783 = vmatpush.bf16.msra.mxu0 %v766
      %784 = vmatmul.bf16.gmra.mxu0 %v771
      %v785 = vpop.f32.mrf.mxu0
      %v786 = vadd.f32 %v756, %v785
      %v787 = vpop.f32.mrf.mxu0
      %v788 = vadd.f32 %v756, %v787
      %789 = vmatmul.bf16.gmra.mxu0 %v774
      %v790 = vpop.f32.mrf.mxu0
      %v791 = vadd.f32 %v756, %v790
      %v792 = vpop.f32.mrf.mxu0
      %v793 = vadd.f32 %v756, %v792
      %794 = vdwg.mxu0
      %799 = vrot.lane.b32.xlu0 %v786, 96
      %v800 = vpop.permute.xlu0 %799
      %801 = vrot.lane.b32.xlu0 %v788, 96
      %v802 = vpop.permute.xlu0 %801
      %803 = vrot.lane.b32.xlu0 %v791, 96
      %v804 = vpop.permute.xlu0 %803
      %805 = vrot.lane.b32.xlu0 %v793, 96
      %v806 = vpop.permute.xlu0 %805
      %vm807 = vcmask 130048
      %v808 = vsel %vm807, %v786, 0
      %v810 = vsel %vm807, %v788, 0
      %v812 = vsel %vm807, %v791, 0
      %v814 = vsel %vm807, %v793, 0
      %v816 = vsel %vm807, %v800, 0
      %v818 = vsel %vm807, %v802, 0
      %v820 = vsel %vm807, %v804, 0
      %v822 = vsel %vm807, %v806, 0
      %824 = vmatpush.xpose.msra.mxu0 0.0
      %825 = vmatpush.xpose.msra.mxu0 0.0
      %826 = vmatpush.xpose.msra.mxu0 0.0
      %827 = vmatpush.xpose.msra.mxu0 0.0
      %828 = vmatpush.xpose.msra.mxu0 0.0
      %829 = vmatpush.xpose.msra.mxu0 0.0
      %830 = vmatpush.xpose.msra.mxu0 0.0
      %831 = vmatpush.xpose.msra.mxu0 0.0
      %832 = vmatpush.xpose.msra.mxu0 0.0
      %833 = vmatpush.xpose.msra.mxu0 0.0
      %834 = vmatpush.xpose.msra.mxu0 0.0
      %835 = vmatpush.xpose.msra.mxu0 0.0
      %836 = vmatpush.xpose.msra.mxu0 %v822
      %837 = vmatpush.xpose.msra.mxu0 %v820
      %838 = vmatpush.xpose.msra.mxu0 %v818
      %839 = vmatpush.xpose.msra.mxu0 %v816
      %840 = vmatmul.f32.gmra.mxu0 %v808
      %v841 = vpop.f32.mrf.mxu0
      %v842 = vadd.f32 0.0, %v841
      %843 = vmatmul.f32.gmra.mxu0 %v810
      %v844 = vpop.f32.mrf.mxu0
      %v845 = vadd.f32 0.0, %v844
      %846 = vmatmul.f32.gmra.mxu0 %v812
      %v847 = vpop.f32.mrf.mxu0
      %v848 = vadd.f32 0.0, %v847
      %849 = vmatmul.f32.gmra.mxu0 %v814
      %v850 = vpop.f32.mrf.mxu0
      %v851 = vadd.f32 0.0, %v850
      %852 = vdwg.mxu0
      %v853 = vmul.f32 %v842, 0.25
      %v854 = vmul.f32 %v845, 0.25
      %v855 = vmul.f32 %v848, 0.25
      %v856 = vmul.f32 %v851, 0.25
      %v858 = vperm.slane %v631, 0
      %v860 = vadd.f32 %v853, %v858
      %v861 = vadd.f32 %v854, %v858
      %v862 = vadd.f32 %v855, %v858
      %v863 = vadd.f32 %v856, %v858
      %v864 = vsel %vm634, %v860, -inf
      %865 = vmax.xlane.f32.xlu0 %v864
      %v866 = vpop.xlane.xlu0 %865
      %v867 = vsel %vm634, %v861, -inf
      %868 = vmax.xlane.f32.xlu0 %v867
      %v869 = vpop.xlane.xlu0 %868
      %v870 = vsel %vm634, %v862, -inf
      %871 = vmax.xlane.f32.xlu0 %v870
      %v872 = vpop.xlane.xlu0 %871
      %v873 = vsel %vm634, %v863, -inf
      %874 = vmax.xlane.f32.xlu0 %v873
      %v875 = vpop.xlane.xlu0 %874
      %v876 = vsub.f32 %v860, %v866
      %v877 = vsub.f32 %v861, %v869
      %v878 = vsub.f32 %v862, %v872
      %v879 = vsub.f32 %v863, %v875
      %v880 = vmul.f32 %v876, 1.442695
      %v881 = vpow.pop %v880
      %v882 = vmul.f32 %v877, 1.442695
      %v883 = vpow.pop %v882
      %v884 = vmul.f32 %v878, 1.442695
      %v885 = vpow.pop %v884
      %v886 = vmul.f32 %v879, 1.442695
      %v887 = vpow.pop %v886
      %v888 = vsel %vm634, %v881, 0.0
      %889 = vadd.xlane.f32.xlu0 %v888
      %v890 = vpop.xlane.xlu0 %889
      %v891 = vsel %vm634, %v883, 0.0
      %892 = vadd.xlane.f32.xlu0 %v891
      %v893 = vpop.xlane.xlu0 %892
      %v894 = vsel %vm634, %v885, 0.0
      %895 = vadd.xlane.f32.xlu0 %v894
      %v896 = vpop.xlane.xlu0 %895
      %v897 = vsel %vm634, %v887, 0.0
      %898 = vadd.xlane.f32.xlu0 %v897
      %v899 = vpop.xlane.xlu0 %898
      %v900 = vrcp.pop %v890
      %v901 = vrcp.pop %v893
      %v902 = vrcp.pop %v896
      %v903 = vrcp.pop %v899
      %v904 = vmul.f32 %v881, %v900
      %v905 = vmul.f32 %v883, %v901
      %v906 = vmul.f32 %v885, %v902
      %v907 = vmul.f32 %v887, %v903
      %908 = vrot.lane.b32.xlu0 %v786, 64
      %v909 = vpop.permute.xlu0 %908
      %910 = vrot.lane.b32.xlu0 %v788, 64
      %v911 = vpop.permute.xlu0 %910
      %912 = vrot.lane.b32.xlu0 %v791, 64
      %v913 = vpop.permute.xlu0 %912
      %914 = vrot.lane.b32.xlu0 %v793, 64
      %v915 = vpop.permute.xlu0 %914
      %v921 = vsel %vm634, %v904, 0
      %v924 = vsel %vm634, %v905, 0
      %v927 = vsel %vm634, %v906, 0
      %v930 = vsel %vm634, %v907, 0
      %932 = vmatpush.msra.mxu0 0.0
      %933 = vmatpush.msra.mxu0 0.0
      %934 = vmatpush.msra.mxu0 0.0
      %935 = vmatpush.msra.mxu0 0.0
      %936 = vmatpush.msra.mxu0 0.0
      %937 = vmatpush.msra.mxu0 0.0
      %938 = vmatpush.msra.mxu0 0.0
      %939 = vmatpush.msra.mxu0 0.0
      %940 = vmatpush.msra.mxu0 0.0
      %941 = vmatpush.msra.mxu0 0.0
      %942 = vmatpush.msra.mxu0 0.0
      %943 = vmatpush.msra.mxu0 0.0
      %944 = vmatpush.msra.mxu0 %v915
      %945 = vmatpush.msra.mxu0 %v913
      %946 = vmatpush.msra.mxu0 %v911
      %947 = vmatpush.msra.mxu0 %v909
      %948 = vmatmul.f32.gmra.mxu0 %v921
      %v949 = vpop.f32.mrf.mxu0
      %v950 = vadd.f32 0.0, %v949
      %951 = vmatmul.f32.gmra.mxu0 %v924
      %v952 = vpop.f32.mrf.mxu0
      %v953 = vadd.f32 0.0, %v952
      %954 = vmatmul.f32.gmra.mxu0 %v927
      %v955 = vpop.f32.mrf.mxu0
      %v956 = vadd.f32 0.0, %v955
      %957 = vmatmul.f32.gmra.mxu0 %v930
      %v958 = vpop.f32.mrf.mxu0
      %v959 = vadd.f32 0.0, %v958
      %960 = vdwg.mxu0
      %v961 = vpack.c.bf16 %v953, %v950
      %v962 = vpack.c.bf16 %v959, %v956
      %963 = vrot.lane.b32.xlu0 %v786, 112
      %v964 = vpop.permute.xlu0 %963
      %965 = vrot.lane.b32.xlu0 %v788, 112
      %v966 = vpop.permute.xlu0 %965
      %967 = vrot.lane.b32.xlu0 %v791, 112
      %v968 = vpop.permute.xlu0 %967
      %969 = vrot.lane.b32.xlu0 %v793, 112
      %v970 = vpop.permute.xlu0 %969
      %971 = vrot.lane.b32.xlu0 %v786, 80
      %v972 = vpop.permute.xlu0 %971
      %973 = vrot.lane.b32.xlu0 %v788, 80
      %v974 = vpop.permute.xlu0 %973
      %975 = vrot.lane.b32.xlu0 %v791, 80
      %v976 = vpop.permute.xlu0 %975
      %977 = vrot.lane.b32.xlu0 %v793, 80
      %v978 = vpop.permute.xlu0 %977
      %v979 = vsel %vm807, %v964, 0
      %v981 = vsel %vm807, %v966, 0
      %v983 = vsel %vm807, %v968, 0
      %v985 = vsel %vm807, %v970, 0
      %v987 = vsel %vm807, %v972, 0
      %v989 = vsel %vm807, %v974, 0
      %v991 = vsel %vm807, %v976, 0
      %v993 = vsel %vm807, %v978, 0
      %995 = vmatpush.xpose.msra.mxu0 0.0
      %996 = vmatpush.xpose.msra.mxu0 0.0
      %997 = vmatpush.xpose.msra.mxu0 0.0
      %998 = vmatpush.xpose.msra.mxu0 0.0
      %999 = vmatpush.xpose.msra.mxu0 0.0
      %1000 = vmatpush.xpose.msra.mxu0 0.0
      %1001 = vmatpush.xpose.msra.mxu0 0.0
      %1002 = vmatpush.xpose.msra.mxu0 0.0
      %1003 = vmatpush.xpose.msra.mxu0 0.0
      %1004 = vmatpush.xpose.msra.mxu0 0.0
      %1005 = vmatpush.xpose.msra.mxu0 0.0
      %1006 = vmatpush.xpose.msra.mxu0 0.0
      %1007 = vmatpush.xpose.msra.mxu0 %v993
      %1008 = vmatpush.xpose.msra.mxu0 %v991
      %1009 = vmatpush.xpose.msra.mxu0 %v989
      %1010 = vmatpush.xpose.msra.mxu0 %v987
      %1011 = vmatmul.f32.gmra.mxu0 %v979
      %v1012 = vpop.f32.mrf.mxu0
      %v1013 = vadd.f32 0.0, %v1012
      %1014 = vmatmul.f32.gmra.mxu0 %v981
      %v1015 = vpop.f32.mrf.mxu0
      %v1016 = vadd.f32 0.0, %v1015
      %1017 = vmatmul.f32.gmra.mxu0 %v983
      %v1018 = vpop.f32.mrf.mxu0
      %v1019 = vadd.f32 0.0, %v1018
      %1020 = vmatmul.f32.gmra.mxu0 %v985
      %v1021 = vpop.f32.mrf.mxu0
      %v1022 = vadd.f32 0.0, %v1021
      %1023 = vdwg.mxu0
      %v1024 = vmul.f32 %v1013, 0.25
      %v1025 = vmul.f32 %v1016, 0.25
      %v1026 = vmul.f32 %v1019, 0.25
      %v1027 = vmul.f32 %v1022, 0.25
      %v1028 = vadd.f32 %v1024, %v858
      %v1029 = vadd.f32 %v1025, %v858
      %v1030 = vadd.f32 %v1026, %v858
      %v1031 = vadd.f32 %v1027, %v858
      %v1032 = vsel %vm634, %v1028, -inf
      %1033 = vmax.xlane.f32.xlu0 %v1032
      %v1034 = vpop.xlane.xlu0 %1033
      %v1035 = vsel %vm634, %v1029, -inf
      %1036 = vmax.xlane.f32.xlu0 %v1035
      %v1037 = vpop.xlane.xlu0 %1036
      %v1038 = vsel %vm634, %v1030, -inf
      %1039 = vmax.xlane.f32.xlu0 %v1038
      %v1040 = vpop.xlane.xlu0 %1039
      %v1041 = vsel %vm634, %v1031, -inf
      %1042 = vmax.xlane.f32.xlu0 %v1041
      %v1043 = vpop.xlane.xlu0 %1042
      %v1044 = vsub.f32 %v1028, %v1034
      %v1045 = vsub.f32 %v1029, %v1037
      %v1046 = vsub.f32 %v1030, %v1040
      %v1047 = vsub.f32 %v1031, %v1043
      %v1048 = vmul.f32 %v1044, 1.442695
      %v1049 = vpow.pop %v1048
      %v1050 = vmul.f32 %v1045, 1.442695
      %v1051 = vpow.pop %v1050
      %v1052 = vmul.f32 %v1046, 1.442695
      %v1053 = vpow.pop %v1052
      %v1054 = vmul.f32 %v1047, 1.442695
      %v1055 = vpow.pop %v1054
      %v1056 = vsel %vm634, %v1049, 0.0
      %1057 = vadd.xlane.f32.xlu0 %v1056
      %v1058 = vpop.xlane.xlu0 %1057
      %v1059 = vsel %vm634, %v1051, 0.0
      %1060 = vadd.xlane.f32.xlu0 %v1059
      %v1061 = vpop.xlane.xlu0 %1060
      %v1062 = vsel %vm634, %v1053, 0.0
      %1063 = vadd.xlane.f32.xlu0 %v1062
      %v1064 = vpop.xlane.xlu0 %1063
      %v1065 = vsel %vm634, %v1055, 0.0
      %1066 = vadd.xlane.f32.xlu0 %v1065
      %v1067 = vpop.xlane.xlu0 %1066
      %v1068 = vrcp.pop %v1058
      %v1069 = vrcp.pop %v1061
      %v1070 = vrcp.pop %v1064
      %v1071 = vrcp.pop %v1067
      %v1072 = vmul.f32 %v1049, %v1068
      %v1073 = vmul.f32 %v1051, %v1069
      %v1074 = vmul.f32 %v1053, %v1070
      %v1075 = vmul.f32 %v1055, %v1071
      %1076 = vrot.lane.b32.xlu0 %v786, 48
      %v1077 = vpop.permute.xlu0 %1076
      %1078 = vrot.lane.b32.xlu0 %v788, 48
      %v1079 = vpop.permute.xlu0 %1078
      %1080 = vrot.lane.b32.xlu0 %v791, 48
      %v1081 = vpop.permute.xlu0 %1080
      %1082 = vrot.lane.b32.xlu0 %v793, 48
      %v1083 = vpop.permute.xlu0 %1082
      %v1089 = vsel %vm634, %v1072, 0
      %v1092 = vsel %vm634, %v1073, 0
      %v1095 = vsel %vm634, %v1074, 0
      %v1098 = vsel %vm634, %v1075, 0
      %1100 = vmatpush.msra.mxu0 0.0
      %1101 = vmatpush.msra.mxu0 0.0
      %1102 = vmatpush.msra.mxu0 0.0
      %1103 = vmatpush.msra.mxu0 0.0
      %1104 = vmatpush.msra.mxu0 0.0
      %1105 = vmatpush.msra.mxu0 0.0
      %1106 = vmatpush.msra.mxu0 0.0
      %1107 = vmatpush.msra.mxu0 0.0
      %1108 = vmatpush.msra.mxu0 0.0
      %1109 = vmatpush.msra.mxu0 0.0
      %1110 = vmatpush.msra.mxu0 0.0
      %1111 = vmatpush.msra.mxu0 0.0
      %1112 = vmatpush.msra.mxu0 %v1083
      %1113 = vmatpush.msra.mxu0 %v1081
      %1114 = vmatpush.msra.mxu0 %v1079
      %1115 = vmatpush.msra.mxu0 %v1077
      %1116 = vmatmul.f32.gmra.mxu0 %v1089
      %v1117 = vpop.f32.mrf.mxu0
      %v1118 = vadd.f32 0.0, %v1117
      %1119 = vmatmul.f32.gmra.mxu0 %v1092
      %v1120 = vpop.f32.mrf.mxu0
      %v1121 = vadd.f32 0.0, %v1120
      %1122 = vmatmul.f32.gmra.mxu0 %v1095
      %v1123 = vpop.f32.mrf.mxu0
      %v1124 = vadd.f32 0.0, %v1123
      %1125 = vmatmul.f32.gmra.mxu0 %v1098
      %v1126 = vpop.f32.mrf.mxu0
      %v1127 = vadd.f32 0.0, %v1126
      %1128 = vdwg.mxu0
      %v1129 = vpack.c.bf16 %v1121, %v1118
      %v1130 = vpack.c.bf16 %v1127, %v1124
      %v1133 = vunpack.c.l.b16 %v750
      %v1134 = vunpack.c.l.b16 %v751
      %v1135 = vpack.c.b16 %v1134, %v1133
      %v1138 = vsel %vm807, %v1129, 0
      %v1141 = vsel %vm807, %v1130, 0
      %1143 = vmatpush.bf16.msra.mxu0 0
      %1144 = vmatpush.bf16.msra.mxu0 0
      %1145 = vmatpush.bf16.msra.mxu0 0
      %1146 = vmatpush.bf16.msra.mxu0 0
      %1147 = vmatpush.bf16.msra.mxu0 0
      %1148 = vmatpush.bf16.msra.mxu0 0
      %1149 = vmatpush.bf16.msra.mxu0 0
      %1150 = vmatpush.bf16.msra.mxu0 %v1135
      %1151 = vmatmul.bf16.gmra.mxu0 %v1138
      %v1152 = vpop.f32.mrf.mxu0
      %v1153 = vadd.f32 0.0, %v1152
      %v1154 = vpop.f32.mrf.mxu0
      %v1155 = vadd.f32 0.0, %v1154
      %1156 = vmatmul.bf16.gmra.mxu0 %v1141
      %v1157 = vpop.f32.mrf.mxu0
      %v1158 = vadd.f32 0.0, %v1157
      %v1159 = vpop.f32.mrf.mxu0
      %v1160 = vadd.f32 0.0, %v1159
      %1161 = vdwg.mxu0
      %v1164 = vunpack.c.l.b16 %v748
      %v1165 = vunpack.c.l.b16 %v749
      %v1166 = vpack.c.b16 %v1165, %v1164
      %v1169 = vsel %vm807, %v961, 0
      %v1172 = vsel %vm807, %v962, 0
      %1174 = vmatpush.bf16.msra.mxu0 0
      %1175 = vmatpush.bf16.msra.mxu0 0
      %1176 = vmatpush.bf16.msra.mxu0 0
      %1177 = vmatpush.bf16.msra.mxu0 0
      %1178 = vmatpush.bf16.msra.mxu0 0
      %1179 = vmatpush.bf16.msra.mxu0 0
      %1180 = vmatpush.bf16.msra.mxu0 0
      %1181 = vmatpush.bf16.msra.mxu0 %v1166
      %1182 = vmatmul.bf16.gmra.mxu0 %v1169
      %v1183 = vpop.f32.mrf.mxu0
      %v1184 = vadd.f32 %v1153, %v1183
      %v1185 = vpop.f32.mrf.mxu0
      %v1186 = vadd.f32 %v1155, %v1185
      %1187 = vmatmul.bf16.gmra.mxu0 %v1172
      %v1188 = vpop.f32.mrf.mxu0
      %v1189 = vadd.f32 %v1158, %v1188
      %v1190 = vpop.f32.mrf.mxu0
      %v1191 = vadd.f32 %v1160, %v1190
      %1192 = vdwg.mxu0
      %v1193 = vld [vmem:[%s7] sm:$0x1]
      %v1195 = vperm.slane %v1193, 0
      %v1197 = vadd.f32 %v1184, %v1195
      %v1198 = vadd.f32 %v1186, %v1195
      %v1199 = vadd.f32 %v1189, %v1195
      %v1200 = vadd.f32 %v1191, %v1195
      %v1201 = vadd.f32 %v740, %v1197
      %v1202 = vadd.f32 %v741, %v1198
      %v1203 = vadd.f32 %v742, %v1199
      %v1204 = vadd.f32 %v743, %v1200
      %v1205 = vld [vmem:[%s8] sm:$0x1]
      %v1206 = vld [vmem:[%s9] sm:$0x1]
      %v1207 = vsel %vm634, %v1201, 0.0
      %1208 = vadd.xlane.f32.xlu0 %v1207
      %v1209 = vpop.xlane.xlu0 %1208
      %v1210 = vsel %vm634, %v1202, 0.0
      %1211 = vadd.xlane.f32.xlu0 %v1210
      %v1212 = vpop.xlane.xlu0 %1211
      %v1213 = vsel %vm634, %v1203, 0.0
      %1214 = vadd.xlane.f32.xlu0 %v1213
      %v1215 = vpop.xlane.xlu0 %1214
      %v1216 = vsel %vm634, %v1204, 0.0
      %1217 = vadd.xlane.f32.xlu0 %v1216
      %v1218 = vpop.xlane.xlu0 %1217
      %v1219 = vmul.f32 %v1209, %v653
      %v1220 = vmul.f32 %v1212, %v653
      %v1221 = vmul.f32 %v1215, %v653
      %v1222 = vmul.f32 %v1218, %v653
      %v1223 = vsub.f32 %v1201, %v1219
      %v1224 = vsub.f32 %v1202, %v1220
      %v1225 = vsub.f32 %v1203, %v1221
      %v1226 = vsub.f32 %v1204, %v1222
      %v1227 = vmul.f32 %v1223, %v1223
      %v1228 = vmul.f32 %v1224, %v1224
      %v1229 = vmul.f32 %v1225, %v1225
      %v1230 = vmul.f32 %v1226, %v1226
      %v1231 = vsel %vm634, %v1227, 0.0
      %1232 = vadd.xlane.f32.xlu0 %v1231
      %v1233 = vpop.xlane.xlu0 %1232
      %v1234 = vsel %vm634, %v1228, 0.0
      %1235 = vadd.xlane.f32.xlu0 %v1234
      %v1236 = vpop.xlane.xlu0 %1235
      %v1237 = vsel %vm634, %v1229, 0.0
      %1238 = vadd.xlane.f32.xlu0 %v1237
      %v1239 = vpop.xlane.xlu0 %1238
      %v1240 = vsel %vm634, %v1230, 0.0
      %1241 = vadd.xlane.f32.xlu0 %v1240
      %v1242 = vpop.xlane.xlu0 %1241
      %v1243 = vmul.f32 %v1233, %v653
      %v1244 = vmul.f32 %v1236, %v653
      %v1245 = vmul.f32 %v1239, %v653
      %v1246 = vmul.f32 %v1242, %v653
      %v1247 = vadd.f32 %v1243, 1e-12
      %v1248 = vadd.f32 %v1244, 1e-12
      %v1249 = vadd.f32 %v1245, 1e-12
      %v1250 = vadd.f32 %v1246, 1e-12
      %v1251 = vrsqrt.pop %v1247
      %v1252 = vmul.f32 %v1251, %v1247
      %v1253 = vmul.f32 %v1252, %v1251
      %v1254 = vmul.f32 0.5, %v1253
      %v1255 = vsub.f32 1.5, %v1254
      %v1256 = vmul.f32 %v1251, %v1255
      %vm1257 = vweird.f32 %v1247
      %vm1258 = vweird.f32 %v1251
      %vm1259 = vmor %vm1257, %vm1258
      %v1260 = vsel %vm1259, %v1251, %v1256
      %v1261 = vrsqrt.pop %v1248
      %v1262 = vmul.f32 %v1261, %v1248
      %v1263 = vmul.f32 %v1262, %v1261
      %v1264 = vmul.f32 0.5, %v1263
      %v1265 = vsub.f32 1.5, %v1264
      %v1266 = vmul.f32 %v1261, %v1265
      %vm1267 = vweird.f32 %v1248
      %vm1268 = vweird.f32 %v1261
      %vm1269 = vmor %vm1267, %vm1268
      %v1270 = vsel %vm1269, %v1261, %v1266
      %v1271 = vrsqrt.pop %v1249
      %v1272 = vmul.f32 %v1271, %v1249
      %v1273 = vmul.f32 %v1272, %v1271
      %v1274 = vmul.f32 0.5, %v1273
      %v1275 = vsub.f32 1.5, %v1274
      %v1276 = vmul.f32 %v1271, %v1275
      %vm1277 = vweird.f32 %v1249
      %vm1278 = vweird.f32 %v1271
      %vm1279 = vmor %vm1277, %vm1278
      %v1280 = vsel %vm1279, %v1271, %v1276
      %v1281 = vrsqrt.pop %v1250
      %v1282 = vmul.f32 %v1281, %v1250
      %v1283 = vmul.f32 %v1282, %v1281
      %v1284 = vmul.f32 0.5, %v1283
      %v1285 = vsub.f32 1.5, %v1284
      %v1286 = vmul.f32 %v1281, %v1285
      %vm1287 = vweird.f32 %v1250
      %vm1288 = vweird.f32 %v1281
      %vm1289 = vmor %vm1287, %vm1288
      %v1290 = vsel %vm1289, %v1281, %v1286
      %v1291 = vmul.f32 %v1223, %v1260
      %v1292 = vmul.f32 %v1224, %v1270
      %v1293 = vmul.f32 %v1225, %v1280
      %v1294 = vmul.f32 %v1226, %v1290
      %v1296 = vperm.slane %v1205, 0
      %v1298 = vmul.f32 %v1291, %v1296
      %v1299 = vmul.f32 %v1292, %v1296
      %v1300 = vmul.f32 %v1293, %v1296
      %v1301 = vmul.f32 %v1294, %v1296
      %v1303 = vperm.slane %v1206, 0
      %v1305 = vadd.f32 %v1298, %v1303
      %v1306 = vadd.f32 %v1299, %v1303
      %v1307 = vadd.f32 %v1300, %v1303
      %v1308 = vadd.f32 %v1301, %v1303
      %v1309 = vpack.c.bf16 %v1306, %v1305
      %v1310 = vpack.c.bf16 %v1308, %v1307
      %v1311 = vld [vmem:[%s10] sm:$0xf]
      %v1312 = vld [vmem:[%s10 + $0x4] sm:$0xf]
      %v1313 = vld [vmem:[%s10 + $0x8] sm:$0xf]
      %v1314 = vld [vmem:[%s10 + $0xc] sm:$0xf]
      %v1315 = vld [vmem:[%s11] sm:$0x1]
      %v1317 = vperm.slane %v1315, 0
      %v1323 = vunpack.c.l.b16 %v1311
      %v1324 = vunpack.c.l.b16 %v1312
      %v1325 = vunpack.c.l.b16 %v1313
      %v1326 = vunpack.c.l.b16 %v1314
      %v1327 = vpack.c.b16 %v1324, %v1323
      %v1328 = vpack.c.b16 %v1326, %v1325
      %v1332 = vsel %vm634, %v1309, 0
      %v1335 = vsel %vm634, %v1310, 0
      %1337 = vmatpush.bf16.msra.mxu0 0
      %1338 = vmatpush.bf16.msra.mxu0 0
      %1339 = vmatpush.bf16.msra.mxu0 0
      %1340 = vmatpush.bf16.msra.mxu0 0
      %1341 = vmatpush.bf16.msra.mxu0 0
      %1342 = vmatpush.bf16.msra.mxu0 0
      %1343 = vmatpush.bf16.msra.mxu0 %v1328
      %1344 = vmatpush.bf16.msra.mxu0 %v1327
      %1345 = vmatmul.bf16.gmra.mxu0 %v1332
      %v1346 = vpop.f32.mrf.mxu0
      %v1347 = vadd.f32 %v1317, %v1346
      %v1348 = vpop.f32.mrf.mxu0
      %v1349 = vadd.f32 %v1317, %v1348
      %1350 = vmatmul.bf16.gmra.mxu0 %v1335
      %v1351 = vpop.f32.mrf.mxu0
      %v1352 = vadd.f32 %v1317, %v1351
      %v1353 = vpop.f32.mrf.mxu0
      %v1354 = vadd.f32 %v1317, %v1353
      %1355 = vdwg.mxu0
      %v1356 = vmul.f32 %v1347, 0.5
      %v1357 = vmul.f32 %v1349, 0.5
      %v1358 = vmul.f32 %v1352, 0.5
      %v1359 = vmul.f32 %v1354, 0.5
      %v1360 = vmul.f32 %v1347, 0.044715
      %v1361 = vmul.f32 %v1349, 0.044715
      %v1362 = vmul.f32 %v1352, 0.044715
      %v1363 = vmul.f32 %v1354, 0.044715
      %v1364 = vmul.f32 %v1360, %v1347
      %v1365 = vmul.f32 %v1361, %v1349
      %v1366 = vmul.f32 %v1362, %v1352
      %v1367 = vmul.f32 %v1363, %v1354
      %v1368 = vmul.f32 %v1364, %v1347
      %v1369 = vmul.f32 %v1365, %v1349
      %v1370 = vmul.f32 %v1366, %v1352
      %v1371 = vmul.f32 %v1367, %v1354
      %v1372 = vadd.f32 %v1347, %v1368
      %v1373 = vadd.f32 %v1349, %v1369
      %v1374 = vadd.f32 %v1352, %v1370
      %v1375 = vadd.f32 %v1354, %v1371
      %v1376 = vmul.f32 %v1372, 0.7978846
      %v1377 = vmul.f32 %v1373, 0.7978846
      %v1378 = vmul.f32 %v1374, 0.7978846
      %v1379 = vmul.f32 %v1375, 0.7978846
      %v1380 = vtanh.pop %v1376
      %v1381 = vtanh.pop %v1377
      %v1382 = vtanh.pop %v1378
      %v1383 = vtanh.pop %v1379
      %v1384 = vadd.f32 %v1380, 1.0
      %v1385 = vadd.f32 %v1381, 1.0
      %v1386 = vadd.f32 %v1382, 1.0
      %v1387 = vadd.f32 %v1383, 1.0
      %v1388 = vmul.f32 %v1356, %v1384
      %v1389 = vmul.f32 %v1357, %v1385
      %v1390 = vmul.f32 %v1358, %v1386
      %v1391 = vmul.f32 %v1359, %v1387
      %v1392 = vpack.c.bf16 %v1389, %v1388
      %v1393 = vpack.c.bf16 %v1391, %v1390
      %v1394 = vld [vmem:[%s12] sm:$0xf]
      %v1395 = vld [vmem:[%s12 + $0x4] sm:$0xf]
      %v1396 = vld [vmem:[%s12 + $0x8] sm:$0xf]
      %v1397 = vld [vmem:[%s12 + $0xc] sm:$0xf]
      %v1398 = vld [vmem:[%s12 + $0x10] sm:$0xf]
      %v1399 = vld [vmem:[%s12 + $0x14] sm:$0xf]
      %v1400 = vld [vmem:[%s12 + $0x18] sm:$0xf]
      %v1401 = vld [vmem:[%s12 + $0x1c] sm:$0xf]
      %v1402 = vld [vmem:[%s13] sm:$0x1]
      %v1404 = vperm.slane %v1402, 0
      %v1414 = vunpack.c.l.b16 %v1394
      %v1415 = vunpack.c.l.b16 %v1395
      %v1416 = vunpack.c.l.b16 %v1396
      %v1417 = vunpack.c.l.b16 %v1397
      %v1418 = vunpack.c.l.b16 %v1398
      %v1419 = vunpack.c.l.b16 %v1399
      %v1420 = vunpack.c.l.b16 %v1400
      %v1421 = vunpack.c.l.b16 %v1401
      %v1422 = vpack.c.b16 %v1415, %v1414
      %v1423 = vpack.c.b16 %v1417, %v1416
      %v1424 = vpack.c.b16 %v1419, %v1418
      %v1425 = vpack.c.b16 %v1421, %v1420
      %vm1430 = vcmask 523264
      %v1432 = vsel %vm1430, %v1392, 0
      %v1435 = vsel %vm1430, %v1393, 0
      %1437 = vmatpush.bf16.msra.mxu0 0
      %1438 = vmatpush.bf16.msra.mxu0 0
      %1439 = vmatpush.bf16.msra.mxu0 0
      %1440 = vmatpush.bf16.msra.mxu0 0
      %1441 = vmatpush.bf16.msra.mxu0 %v1425
      %1442 = vmatpush.bf16.msra.mxu0 %v1424
      %1443 = vmatpush.bf16.msra.mxu0 %v1423
      %1444 = vmatpush.bf16.msra.mxu0 %v1422
      %1445 = vmatmul.bf16.gmra.mxu0 %v1432
      %v1446 = vpop.f32.mrf.mxu0
      %v1447 = vadd.f32 %v1404, %v1446
      %v1448 = vpop.f32.mrf.mxu0
      %v1449 = vadd.f32 %v1404, %v1448
      %1450 = vmatmul.bf16.gmra.mxu0 %v1435
      %v1451 = vpop.f32.mrf.mxu0
      %v1452 = vadd.f32 %v1404, %v1451
      %v1453 = vpop.f32.mrf.mxu0
      %v1454 = vadd.f32 %v1404, %v1453
      %1455 = vdwg.mxu0
      %v1456 = vadd.f32 %v1305, %v1447
      %v1457 = vadd.f32 %v1306, %v1449
      %v1458 = vadd.f32 %v1307, %v1452
      %v1459 = vadd.f32 %v1308, %v1454
      %v1460 = vld [vmem:[%s14] sm:$0x1]
      %v1461 = vld [vmem:[%s15] sm:$0x1]
      %v1462 = vsel %vm634, %v1456, 0.0
      %1463 = vadd.xlane.f32.xlu0 %v1462
      %v1464 = vpop.xlane.xlu0 %1463
      %v1465 = vsel %vm634, %v1457, 0.0
      %1466 = vadd.xlane.f32.xlu0 %v1465
      %v1467 = vpop.xlane.xlu0 %1466
      %v1468 = vsel %vm634, %v1458, 0.0
      %1469 = vadd.xlane.f32.xlu0 %v1468
      %v1470 = vpop.xlane.xlu0 %1469
      %v1471 = vsel %vm634, %v1459, 0.0
      %1472 = vadd.xlane.f32.xlu0 %v1471
      %v1473 = vpop.xlane.xlu0 %1472
      %v1474 = vmul.f32 %v1464, %v653
      %v1475 = vmul.f32 %v1467, %v653
      %v1476 = vmul.f32 %v1470, %v653
      %v1477 = vmul.f32 %v1473, %v653
      %v1478 = vsub.f32 %v1456, %v1474
      %v1479 = vsub.f32 %v1457, %v1475
      %v1480 = vsub.f32 %v1458, %v1476
      %v1481 = vsub.f32 %v1459, %v1477
      %v1482 = vmul.f32 %v1478, %v1478
      %v1483 = vmul.f32 %v1479, %v1479
      %v1484 = vmul.f32 %v1480, %v1480
      %v1485 = vmul.f32 %v1481, %v1481
      %v1486 = vsel %vm634, %v1482, 0.0
      %1487 = vadd.xlane.f32.xlu0 %v1486
      %v1488 = vpop.xlane.xlu0 %1487
      %v1489 = vsel %vm634, %v1483, 0.0
      %1490 = vadd.xlane.f32.xlu0 %v1489
      %v1491 = vpop.xlane.xlu0 %1490
      %v1492 = vsel %vm634, %v1484, 0.0
      %1493 = vadd.xlane.f32.xlu0 %v1492
      %v1494 = vpop.xlane.xlu0 %1493
      %v1495 = vsel %vm634, %v1485, 0.0
      %1496 = vadd.xlane.f32.xlu0 %v1495
      %v1497 = vpop.xlane.xlu0 %1496
      %v1498 = vmul.f32 %v1488, %v653
      %v1499 = vmul.f32 %v1491, %v653
      %v1500 = vmul.f32 %v1494, %v653
      %v1501 = vmul.f32 %v1497, %v653
      %v1502 = vadd.f32 %v1498, 1e-12
      %v1503 = vadd.f32 %v1499, 1e-12
      %v1504 = vadd.f32 %v1500, 1e-12
      %v1505 = vadd.f32 %v1501, 1e-12
      %v1506 = vrsqrt.pop %v1502
      %v1507 = vmul.f32 %v1506, %v1502
      %v1508 = vmul.f32 %v1507, %v1506
      %v1509 = vmul.f32 0.5, %v1508
      %v1510 = vsub.f32 1.5, %v1509
      %v1511 = vmul.f32 %v1506, %v1510
      %vm1512 = vweird.f32 %v1502
      %vm1513 = vweird.f32 %v1506
      %vm1514 = vmor %vm1512, %vm1513
      %v1515 = vsel %vm1514, %v1506, %v1511
      %v1516 = vrsqrt.pop %v1503
      %v1517 = vmul.f32 %v1516, %v1503
      %v1518 = vmul.f32 %v1517, %v1516
      %v1519 = vmul.f32 0.5, %v1518
      %v1520 = vsub.f32 1.5, %v1519
      %v1521 = vmul.f32 %v1516, %v1520
      %vm1522 = vweird.f32 %v1503
      %vm1523 = vweird.f32 %v1516
      %vm1524 = vmor %vm1522, %vm1523
      %v1525 = vsel %vm1524, %v1516, %v1521
      %v1526 = vrsqrt.pop %v1504
      %v1527 = vmul.f32 %v1526, %v1504
      %v1528 = vmul.f32 %v1527, %v1526
      %v1529 = vmul.f32 0.5, %v1528
      %v1530 = vsub.f32 1.5, %v1529
      %v1531 = vmul.f32 %v1526, %v1530
      %vm1532 = vweird.f32 %v1504
      %vm1533 = vweird.f32 %v1526
      %vm1534 = vmor %vm1532, %vm1533
      %v1535 = vsel %vm1534, %v1526, %v1531
      %v1536 = vrsqrt.pop %v1505
      %v1537 = vmul.f32 %v1536, %v1505
      %v1538 = vmul.f32 %v1537, %v1536
      %v1539 = vmul.f32 0.5, %v1538
      %v1540 = vsub.f32 1.5, %v1539
      %v1541 = vmul.f32 %v1536, %v1540
      %vm1542 = vweird.f32 %v1505
      %vm1543 = vweird.f32 %v1536
      %vm1544 = vmor %vm1542, %vm1543
      %v1545 = vsel %vm1544, %v1536, %v1541
      %v1546 = vmul.f32 %v1478, %v1515
      %v1547 = vmul.f32 %v1479, %v1525
      %v1548 = vmul.f32 %v1480, %v1535
      %v1549 = vmul.f32 %v1481, %v1545
      %v1551 = vperm.slane %v1460, 0
      %v1553 = vmul.f32 %v1546, %v1551
      %v1554 = vmul.f32 %v1547, %v1551
      %v1555 = vmul.f32 %v1548, %v1551
      %v1556 = vmul.f32 %v1549, %v1551
      %v1558 = vperm.slane %v1461, 0
      %v1560 = vadd.f32 %v1553, %v1558
      %v1561 = vadd.f32 %v1554, %v1558
      %v1562 = vadd.f32 %v1555, %v1558
      %v1563 = vadd.f32 %v1556, %v1558
      %s1564 = scalar_lea.vmem %s4, 16
      %v1565 = vld [vmem:[%s1564] sm:$0xf]
      %v1566 = vld [vmem:[%s1564 + $0x4] sm:$0xf]
      %v1567 = vld [vmem:[%s1564 + $0x8] sm:$0xf]
      %v1568 = vld [vmem:[%s1564 + $0xc] sm:$0xf]
      %s1569 = scalar_lea.vmem %s6, 16
      %v1570 = vld [vmem:[%s1569] sm:$0xf]
      %v1571 = vld [vmem:[%s1569 + $0x4] sm:$0xf]
      %v1572 = vld [vmem:[%s1569 + $0x8] sm:$0xf]
      %v1573 = vld [vmem:[%s1569 + $0xc] sm:$0xf]
      %v1574 = vpack.c.bf16 %v1561, %v1560
      %v1575 = vpack.c.bf16 %v1563, %v1562
      %s1576 = scalar_lea.vmem %s5, 1
      %v1577 = vld [vmem:[%s1576] sm:$0x1]
      %v1579 = vperm.slane %v1577, 0
      %v1585 = vunpack.c.l.b16 %v1565
      %v1586 = vunpack.c.l.b16 %v1566
      %v1587 = vunpack.c.l.b16 %v1567
      %v1588 = vunpack.c.l.b16 %v1568
      %v1589 = vpack.c.b16 %v1586, %v1585
      %v1590 = vpack.c.b16 %v1588, %v1587
      %v1594 = vsel %vm634, %v1574, 0
      %v1597 = vsel %vm634, %v1575, 0
      %1599 = vmatpush.bf16.msra.mxu0 0
      %1600 = vmatpush.bf16.msra.mxu0 0
      %1601 = vmatpush.bf16.msra.mxu0 0
      %1602 = vmatpush.bf16.msra.mxu0 0
      %1603 = vmatpush.bf16.msra.mxu0 0
      %1604 = vmatpush.bf16.msra.mxu0 0
      %1605 = vmatpush.bf16.msra.mxu0 %v1590
      %1606 = vmatpush.bf16.msra.mxu0 %v1589
      %1607 = vmatmul.bf16.gmra.mxu0 %v1594
      %v1608 = vpop.f32.mrf.mxu0
      %v1609 = vadd.f32 %v1579, %v1608
      %v1610 = vpop.f32.mrf.mxu0
      %v1611 = vadd.f32 %v1579, %v1610
      %1612 = vmatmul.bf16.gmra.mxu0 %v1597
      %v1613 = vpop.f32.mrf.mxu0
      %v1614 = vadd.f32 %v1579, %v1613
      %v1615 = vpop.f32.mrf.mxu0
      %v1616 = vadd.f32 %v1579, %v1615
      %1617 = vdwg.mxu0
      %1622 = vrot.lane.b32.xlu0 %v1609, 96
      %v1623 = vpop.permute.xlu0 %1622
      %1624 = vrot.lane.b32.xlu0 %v1611, 96
      %v1625 = vpop.permute.xlu0 %1624
      %1626 = vrot.lane.b32.xlu0 %v1614, 96
      %v1627 = vpop.permute.xlu0 %1626
      %1628 = vrot.lane.b32.xlu0 %v1616, 96
      %v1629 = vpop.permute.xlu0 %1628
      %v1630 = vsel %vm807, %v1609, 0
      %v1632 = vsel %vm807, %v1611, 0
      %v1634 = vsel %vm807, %v1614, 0
      %v1636 = vsel %vm807, %v1616, 0
      %v1638 = vsel %vm807, %v1623, 0
      %v1640 = vsel %vm807, %v1625, 0
      %v1642 = vsel %vm807, %v1627, 0
      %v1644 = vsel %vm807, %v1629, 0
      %1646 = vmatpush.xpose.msra.mxu0 0.0
      %1647 = vmatpush.xpose.msra.mxu0 0.0
      %1648 = vmatpush.xpose.msra.mxu0 0.0
      %1649 = vmatpush.xpose.msra.mxu0 0.0
      %1650 = vmatpush.xpose.msra.mxu0 0.0
      %1651 = vmatpush.xpose.msra.mxu0 0.0
      %1652 = vmatpush.xpose.msra.mxu0 0.0
      %1653 = vmatpush.xpose.msra.mxu0 0.0
      %1654 = vmatpush.xpose.msra.mxu0 0.0
      %1655 = vmatpush.xpose.msra.mxu0 0.0
      %1656 = vmatpush.xpose.msra.mxu0 0.0
      %1657 = vmatpush.xpose.msra.mxu0 0.0
      %1658 = vmatpush.xpose.msra.mxu0 %v1644
      %1659 = vmatpush.xpose.msra.mxu0 %v1642
      %1660 = vmatpush.xpose.msra.mxu0 %v1640
      %1661 = vmatpush.xpose.msra.mxu0 %v1638
      %1662 = vmatmul.f32.gmra.mxu0 %v1630
      %v1663 = vpop.f32.mrf.mxu0
      %v1664 = vadd.f32 0.0, %v1663
      %1665 = vmatmul.f32.gmra.mxu0 %v1632
      %v1666 = vpop.f32.mrf.mxu0
      %v1667 = vadd.f32 0.0, %v1666
      %1668 = vmatmul.f32.gmra.mxu0 %v1634
      %v1669 = vpop.f32.mrf.mxu0
      %v1670 = vadd.f32 0.0, %v1669
      %1671 = vmatmul.f32.gmra.mxu0 %v1636
      %v1672 = vpop.f32.mrf.mxu0
      %v1673 = vadd.f32 0.0, %v1672
      %1674 = vdwg.mxu0
      %v1675 = vmul.f32 %v1664, 0.25
      %v1676 = vmul.f32 %v1667, 0.25
      %v1677 = vmul.f32 %v1670, 0.25
      %v1678 = vmul.f32 %v1673, 0.25
      %v1679 = vadd.f32 %v1675, %v858
      %v1680 = vadd.f32 %v1676, %v858
      %v1681 = vadd.f32 %v1677, %v858
      %v1682 = vadd.f32 %v1678, %v858
      %v1683 = vsel %vm634, %v1679, -inf
      %1684 = vmax.xlane.f32.xlu0 %v1683
      %v1685 = vpop.xlane.xlu0 %1684
      %v1686 = vsel %vm634, %v1680, -inf
      %1687 = vmax.xlane.f32.xlu0 %v1686
      %v1688 = vpop.xlane.xlu0 %1687
      %v1689 = vsel %vm634, %v1681, -inf
      %1690 = vmax.xlane.f32.xlu0 %v1689
      %v1691 = vpop.xlane.xlu0 %1690
      %v1692 = vsel %vm634, %v1682, -inf
      %1693 = vmax.xlane.f32.xlu0 %v1692
      %v1694 = vpop.xlane.xlu0 %1693
      %v1695 = vsub.f32 %v1679, %v1685
      %v1696 = vsub.f32 %v1680, %v1688
      %v1697 = vsub.f32 %v1681, %v1691
      %v1698 = vsub.f32 %v1682, %v1694
      %v1699 = vmul.f32 %v1695, 1.442695
      %v1700 = vpow.pop %v1699
      %v1701 = vmul.f32 %v1696, 1.442695
      %v1702 = vpow.pop %v1701
      %v1703 = vmul.f32 %v1697, 1.442695
      %v1704 = vpow.pop %v1703
      %v1705 = vmul.f32 %v1698, 1.442695
      %v1706 = vpow.pop %v1705
      %v1707 = vsel %vm634, %v1700, 0.0
      %1708 = vadd.xlane.f32.xlu0 %v1707
      %v1709 = vpop.xlane.xlu0 %1708
      %v1710 = vsel %vm634, %v1702, 0.0
      %1711 = vadd.xlane.f32.xlu0 %v1710
      %v1712 = vpop.xlane.xlu0 %1711
      %v1713 = vsel %vm634, %v1704, 0.0
      %1714 = vadd.xlane.f32.xlu0 %v1713
      %v1715 = vpop.xlane.xlu0 %1714
      %v1716 = vsel %vm634, %v1706, 0.0
      %1717 = vadd.xlane.f32.xlu0 %v1716
      %v1718 = vpop.xlane.xlu0 %1717
      %v1719 = vrcp.pop %v1709
      %v1720 = vrcp.pop %v1712
      %v1721 = vrcp.pop %v1715
      %v1722 = vrcp.pop %v1718
      %v1723 = vmul.f32 %v1700, %v1719
      %v1724 = vmul.f32 %v1702, %v1720
      %v1725 = vmul.f32 %v1704, %v1721
      %v1726 = vmul.f32 %v1706, %v1722
      %1727 = vrot.lane.b32.xlu0 %v1609, 64
      %v1728 = vpop.permute.xlu0 %1727
      %1729 = vrot.lane.b32.xlu0 %v1611, 64
      %v1730 = vpop.permute.xlu0 %1729
      %1731 = vrot.lane.b32.xlu0 %v1614, 64
      %v1732 = vpop.permute.xlu0 %1731
      %1733 = vrot.lane.b32.xlu0 %v1616, 64
      %v1734 = vpop.permute.xlu0 %1733
      %v1740 = vsel %vm634, %v1723, 0
      %v1743 = vsel %vm634, %v1724, 0
      %v1746 = vsel %vm634, %v1725, 0
      %v1749 = vsel %vm634, %v1726, 0
      %1751 = vmatpush.msra.mxu0 0.0
      %1752 = vmatpush.msra.mxu0 0.0
      %1753 = vmatpush.msra.mxu0 0.0
      %1754 = vmatpush.msra.mxu0 0.0
      %1755 = vmatpush.msra.mxu0 0.0
      %1756 = vmatpush.msra.mxu0 0.0
      %1757 = vmatpush.msra.mxu0 0.0
      %1758 = vmatpush.msra.mxu0 0.0
      %1759 = vmatpush.msra.mxu0 0.0
      %1760 = vmatpush.msra.mxu0 0.0
      %1761 = vmatpush.msra.mxu0 0.0
      %1762 = vmatpush.msra.mxu0 0.0
      %1763 = vmatpush.msra.mxu0 %v1734
      %1764 = vmatpush.msra.mxu0 %v1732
      %1765 = vmatpush.msra.mxu0 %v1730
      %1766 = vmatpush.msra.mxu0 %v1728
      %1767 = vmatmul.f32.gmra.mxu0 %v1740
      %v1768 = vpop.f32.mrf.mxu0
      %v1769 = vadd.f32 0.0, %v1768
      %1770 = vmatmul.f32.gmra.mxu0 %v1743
      %v1771 = vpop.f32.mrf.mxu0
      %v1772 = vadd.f32 0.0, %v1771
      %1773 = vmatmul.f32.gmra.mxu0 %v1746
      %v1774 = vpop.f32.mrf.mxu0
      %v1775 = vadd.f32 0.0, %v1774
      %1776 = vmatmul.f32.gmra.mxu0 %v1749
      %v1777 = vpop.f32.mrf.mxu0
      %v1778 = vadd.f32 0.0, %v1777
      %1779 = vdwg.mxu0
      %v1780 = vpack.c.bf16 %v1772, %v1769
      %v1781 = vpack.c.bf16 %v1778, %v1775
      %1782 = vrot.lane.b32.xlu0 %v1609, 112
      %v1783 = vpop.permute.xlu0 %1782
      %1784 = vrot.lane.b32.xlu0 %v1611, 112
      %v1785 = vpop.permute.xlu0 %1784
      %1786 = vrot.lane.b32.xlu0 %v1614, 112
      %v1787 = vpop.permute.xlu0 %1786
      %1788 = vrot.lane.b32.xlu0 %v1616, 112
      %v1789 = vpop.permute.xlu0 %1788
      %1790 = vrot.lane.b32.xlu0 %v1609, 80
      %v1791 = vpop.permute.xlu0 %1790
      %1792 = vrot.lane.b32.xlu0 %v1611, 80
      %v1793 = vpop.permute.xlu0 %1792
      %1794 = vrot.lane.b32.xlu0 %v1614, 80
      %v1795 = vpop.permute.xlu0 %1794
      %1796 = vrot.lane.b32.xlu0 %v1616, 80
      %v1797 = vpop.permute.xlu0 %1796
      %v1798 = vsel %vm807, %v1783, 0
      %v1800 = vsel %vm807, %v1785, 0
      %v1802 = vsel %vm807, %v1787, 0
      %v1804 = vsel %vm807, %v1789, 0
      %v1806 = vsel %vm807, %v1791, 0
      %v1808 = vsel %vm807, %v1793, 0
      %v1810 = vsel %vm807, %v1795, 0
      %v1812 = vsel %vm807, %v1797, 0
      %1814 = vmatpush.xpose.msra.mxu0 0.0
      %1815 = vmatpush.xpose.msra.mxu0 0.0
      %1816 = vmatpush.xpose.msra.mxu0 0.0
      %1817 = vmatpush.xpose.msra.mxu0 0.0
      %1818 = vmatpush.xpose.msra.mxu0 0.0
      %1819 = vmatpush.xpose.msra.mxu0 0.0
      %1820 = vmatpush.xpose.msra.mxu0 0.0
      %1821 = vmatpush.xpose.msra.mxu0 0.0
      %1822 = vmatpush.xpose.msra.mxu0 0.0
      %1823 = vmatpush.xpose.msra.mxu0 0.0
      %1824 = vmatpush.xpose.msra.mxu0 0.0
      %1825 = vmatpush.xpose.msra.mxu0 0.0
      %1826 = vmatpush.xpose.msra.mxu0 %v1812
      %1827 = vmatpush.xpose.msra.mxu0 %v1810
      %1828 = vmatpush.xpose.msra.mxu0 %v1808
      %1829 = vmatpush.xpose.msra.mxu0 %v1806
      %1830 = vmatmul.f32.gmra.mxu0 %v1798
      %v1831 = vpop.f32.mrf.mxu0
      %v1832 = vadd.f32 0.0, %v1831
      %1833 = vmatmul.f32.gmra.mxu0 %v1800
      %v1834 = vpop.f32.mrf.mxu0
      %v1835 = vadd.f32 0.0, %v1834
      %1836 = vmatmul.f32.gmra.mxu0 %v1802
      %v1837 = vpop.f32.mrf.mxu0
      %v1838 = vadd.f32 0.0, %v1837
      %1839 = vmatmul.f32.gmra.mxu0 %v1804
      %v1840 = vpop.f32.mrf.mxu0
      %v1841 = vadd.f32 0.0, %v1840
      %1842 = vdwg.mxu0
      %v1843 = vmul.f32 %v1832, 0.25
      %v1844 = vmul.f32 %v1835, 0.25
      %v1845 = vmul.f32 %v1838, 0.25
      %v1846 = vmul.f32 %v1841, 0.25
      %v1847 = vadd.f32 %v1843, %v858
      %v1848 = vadd.f32 %v1844, %v858
      %v1849 = vadd.f32 %v1845, %v858
      %v1850 = vadd.f32 %v1846, %v858
      %v1851 = vsel %vm634, %v1847, -inf
      %1852 = vmax.xlane.f32.xlu0 %v1851
      %v1853 = vpop.xlane.xlu0 %1852
      %v1854 = vsel %vm634, %v1848, -inf
      %1855 = vmax.xlane.f32.xlu0 %v1854
      %v1856 = vpop.xlane.xlu0 %1855
      %v1857 = vsel %vm634, %v1849, -inf
      %1858 = vmax.xlane.f32.xlu0 %v1857
      %v1859 = vpop.xlane.xlu0 %1858
      %v1860 = vsel %vm634, %v1850, -inf
      %1861 = vmax.xlane.f32.xlu0 %v1860
      %v1862 = vpop.xlane.xlu0 %1861
      %v1863 = vsub.f32 %v1847, %v1853
      %v1864 = vsub.f32 %v1848, %v1856
      %v1865 = vsub.f32 %v1849, %v1859
      %v1866 = vsub.f32 %v1850, %v1862
      %v1867 = vmul.f32 %v1863, 1.442695
      %v1868 = vpow.pop %v1867
      %v1869 = vmul.f32 %v1864, 1.442695
      %v1870 = vpow.pop %v1869
      %v1871 = vmul.f32 %v1865, 1.442695
      %v1872 = vpow.pop %v1871
      %v1873 = vmul.f32 %v1866, 1.442695
      %v1874 = vpow.pop %v1873
      %v1875 = vsel %vm634, %v1868, 0.0
      %1876 = vadd.xlane.f32.xlu0 %v1875
      %v1877 = vpop.xlane.xlu0 %1876
      %v1878 = vsel %vm634, %v1870, 0.0
      %1879 = vadd.xlane.f32.xlu0 %v1878
      %v1880 = vpop.xlane.xlu0 %1879
      %v1881 = vsel %vm634, %v1872, 0.0
      %1882 = vadd.xlane.f32.xlu0 %v1881
      %v1883 = vpop.xlane.xlu0 %1882
      %v1884 = vsel %vm634, %v1874, 0.0
      %1885 = vadd.xlane.f32.xlu0 %v1884
      %v1886 = vpop.xlane.xlu0 %1885
      %v1887 = vrcp.pop %v1877
      %v1888 = vrcp.pop %v1880
      %v1889 = vrcp.pop %v1883
      %v1890 = vrcp.pop %v1886
      %v1891 = vmul.f32 %v1868, %v1887
      %v1892 = vmul.f32 %v1870, %v1888
      %v1893 = vmul.f32 %v1872, %v1889
      %v1894 = vmul.f32 %v1874, %v1890
      %1895 = vrot.lane.b32.xlu0 %v1609, 48
      %v1896 = vpop.permute.xlu0 %1895
      %1897 = vrot.lane.b32.xlu0 %v1611, 48
      %v1898 = vpop.permute.xlu0 %1897
      %1899 = vrot.lane.b32.xlu0 %v1614, 48
      %v1900 = vpop.permute.xlu0 %1899
      %1901 = vrot.lane.b32.xlu0 %v1616, 48
      %v1902 = vpop.permute.xlu0 %1901
      %v1908 = vsel %vm634, %v1891, 0
      %v1911 = vsel %vm634, %v1892, 0
      %v1914 = vsel %vm634, %v1893, 0
      %v1917 = vsel %vm634, %v1894, 0
      %1919 = vmatpush.msra.mxu0 0.0
      %1920 = vmatpush.msra.mxu0 0.0
      %1921 = vmatpush.msra.mxu0 0.0
      %1922 = vmatpush.msra.mxu0 0.0
      %1923 = vmatpush.msra.mxu0 0.0
      %1924 = vmatpush.msra.mxu0 0.0
      %1925 = vmatpush.msra.mxu0 0.0
      %1926 = vmatpush.msra.mxu0 0.0
      %1927 = vmatpush.msra.mxu0 0.0
      %1928 = vmatpush.msra.mxu0 0.0
      %1929 = vmatpush.msra.mxu0 0.0
      %1930 = vmatpush.msra.mxu0 0.0
      %1931 = vmatpush.msra.mxu0 %v1902
      %1932 = vmatpush.msra.mxu0 %v1900
      %1933 = vmatpush.msra.mxu0 %v1898
      %1934 = vmatpush.msra.mxu0 %v1896
      %1935 = vmatmul.f32.gmra.mxu0 %v1908
      %v1936 = vpop.f32.mrf.mxu0
      %v1937 = vadd.f32 0.0, %v1936
      %1938 = vmatmul.f32.gmra.mxu0 %v1911
      %v1939 = vpop.f32.mrf.mxu0
      %v1940 = vadd.f32 0.0, %v1939
      %1941 = vmatmul.f32.gmra.mxu0 %v1914
      %v1942 = vpop.f32.mrf.mxu0
      %v1943 = vadd.f32 0.0, %v1942
      %1944 = vmatmul.f32.gmra.mxu0 %v1917
      %v1945 = vpop.f32.mrf.mxu0
      %v1946 = vadd.f32 0.0, %v1945
      %1947 = vdwg.mxu0
      %v1948 = vpack.c.bf16 %v1940, %v1937
      %v1949 = vpack.c.bf16 %v1946, %v1943
      %v1952 = vunpack.c.l.b16 %v1572
      %v1953 = vunpack.c.l.b16 %v1573
      %v1954 = vpack.c.b16 %v1953, %v1952
      %v1957 = vsel %vm807, %v1948, 0
      %v1960 = vsel %vm807, %v1949, 0
      %1962 = vmatpush.bf16.msra.mxu0 0
      %1963 = vmatpush.bf16.msra.mxu0 0
      %1964 = vmatpush.bf16.msra.mxu0 0
      %1965 = vmatpush.bf16.msra.mxu0 0
      %1966 = vmatpush.bf16.msra.mxu0 0
      %1967 = vmatpush.bf16.msra.mxu0 0
      %1968 = vmatpush.bf16.msra.mxu0 0
      %1969 = vmatpush.bf16.msra.mxu0 %v1954
      %1970 = vmatmul.bf16.gmra.mxu0 %v1957
      %v1971 = vpop.f32.mrf.mxu0
      %v1972 = vadd.f32 0.0, %v1971
      %v1973 = vpop.f32.mrf.mxu0
      %v1974 = vadd.f32 0.0, %v1973
      %1975 = vmatmul.bf16.gmra.mxu0 %v1960
      %v1976 = vpop.f32.mrf.mxu0
      %v1977 = vadd.f32 0.0, %v1976
      %v1978 = vpop.f32.mrf.mxu0
      %v1979 = vadd.f32 0.0, %v1978
      %1980 = vdwg.mxu0
      %v1983 = vunpack.c.l.b16 %v1570
      %v1984 = vunpack.c.l.b16 %v1571
      %v1985 = vpack.c.b16 %v1984, %v1983
      %v1988 = vsel %vm807, %v1780, 0
      %v1991 = vsel %vm807, %v1781, 0
      %1993 = vmatpush.bf16.msra.mxu0 0
      %1994 = vmatpush.bf16.msra.mxu0 0
      %1995 = vmatpush.bf16.msra.mxu0 0
      %1996 = vmatpush.bf16.msra.mxu0 0
      %1997 = vmatpush.bf16.msra.mxu0 0
      %1998 = vmatpush.bf16.msra.mxu0 0
      %1999 = vmatpush.bf16.msra.mxu0 0
      %2000 = vmatpush.bf16.msra.mxu0 %v1985
      %2001 = vmatmul.bf16.gmra.mxu0 %v1988
      %v2002 = vpop.f32.mrf.mxu0
      %v2003 = vadd.f32 %v1972, %v2002
      %v2004 = vpop.f32.mrf.mxu0
      %v2005 = vadd.f32 %v1974, %v2004
      %2006 = vmatmul.bf16.gmra.mxu0 %v1991
      %v2007 = vpop.f32.mrf.mxu0
      %v2008 = vadd.f32 %v1977, %v2007
      %v2009 = vpop.f32.mrf.mxu0
      %v2010 = vadd.f32 %v1979, %v2009
      %2011 = vdwg.mxu0
      %s2012 = scalar_lea.vmem %s7, 1
      %v2013 = vld [vmem:[%s2012] sm:$0x1]
      %v2015 = vperm.slane %v2013, 0
      %v2017 = vadd.f32 %v2003, %v2015
      %v2018 = vadd.f32 %v2005, %v2015
      %v2019 = vadd.f32 %v2008, %v2015
      %v2020 = vadd.f32 %v2010, %v2015
      %v2021 = vadd.f32 %v1560, %v2017
      %v2022 = vadd.f32 %v1561, %v2018
      %v2023 = vadd.f32 %v1562, %v2019
      %v2024 = vadd.f32 %v1563, %v2020
      %s2025 = scalar_lea.vmem %s8, 1
      %v2026 = vld [vmem:[%s2025] sm:$0x1]
      %s2027 = scalar_lea.vmem %s9, 1
      %v2028 = vld [vmem:[%s2027] sm:$0x1]
      %v2029 = vsel %vm634, %v2021, 0.0
      %2030 = vadd.xlane.f32.xlu0 %v2029
      %v2031 = vpop.xlane.xlu0 %2030
      %v2032 = vsel %vm634, %v2022, 0.0
      %2033 = vadd.xlane.f32.xlu0 %v2032
      %v2034 = vpop.xlane.xlu0 %2033
      %v2035 = vsel %vm634, %v2023, 0.0
      %2036 = vadd.xlane.f32.xlu0 %v2035
      %v2037 = vpop.xlane.xlu0 %2036
      %v2038 = vsel %vm634, %v2024, 0.0
      %2039 = vadd.xlane.f32.xlu0 %v2038
      %v2040 = vpop.xlane.xlu0 %2039
      %v2041 = vmul.f32 %v2031, %v653
      %v2042 = vmul.f32 %v2034, %v653
      %v2043 = vmul.f32 %v2037, %v653
      %v2044 = vmul.f32 %v2040, %v653
      %v2045 = vsub.f32 %v2021, %v2041
      %v2046 = vsub.f32 %v2022, %v2042
      %v2047 = vsub.f32 %v2023, %v2043
      %v2048 = vsub.f32 %v2024, %v2044
      %v2049 = vmul.f32 %v2045, %v2045
      %v2050 = vmul.f32 %v2046, %v2046
      %v2051 = vmul.f32 %v2047, %v2047
      %v2052 = vmul.f32 %v2048, %v2048
      %v2053 = vsel %vm634, %v2049, 0.0
      %2054 = vadd.xlane.f32.xlu0 %v2053
      %v2055 = vpop.xlane.xlu0 %2054
      %v2056 = vsel %vm634, %v2050, 0.0
      %2057 = vadd.xlane.f32.xlu0 %v2056
      %v2058 = vpop.xlane.xlu0 %2057
      %v2059 = vsel %vm634, %v2051, 0.0
      %2060 = vadd.xlane.f32.xlu0 %v2059
      %v2061 = vpop.xlane.xlu0 %2060
      %v2062 = vsel %vm634, %v2052, 0.0
      %2063 = vadd.xlane.f32.xlu0 %v2062
      %v2064 = vpop.xlane.xlu0 %2063
      %v2065 = vmul.f32 %v2055, %v653
      %v2066 = vmul.f32 %v2058, %v653
      %v2067 = vmul.f32 %v2061, %v653
      %v2068 = vmul.f32 %v2064, %v653
      %v2069 = vadd.f32 %v2065, 1e-12
      %v2070 = vadd.f32 %v2066, 1e-12
      %v2071 = vadd.f32 %v2067, 1e-12
      %v2072 = vadd.f32 %v2068, 1e-12
      %v2073 = vrsqrt.pop %v2069
      %v2074 = vmul.f32 %v2073, %v2069
      %v2075 = vmul.f32 %v2074, %v2073
      %v2076 = vmul.f32 0.5, %v2075
      %v2077 = vsub.f32 1.5, %v2076
      %v2078 = vmul.f32 %v2073, %v2077
      %vm2079 = vweird.f32 %v2069
      %vm2080 = vweird.f32 %v2073
      %vm2081 = vmor %vm2079, %vm2080
      %v2082 = vsel %vm2081, %v2073, %v2078
      %v2083 = vrsqrt.pop %v2070
      %v2084 = vmul.f32 %v2083, %v2070
      %v2085 = vmul.f32 %v2084, %v2083
      %v2086 = vmul.f32 0.5, %v2085
      %v2087 = vsub.f32 1.5, %v2086
      %v2088 = vmul.f32 %v2083, %v2087
      %vm2089 = vweird.f32 %v2070
      %vm2090 = vweird.f32 %v2083
      %vm2091 = vmor %vm2089, %vm2090
      %v2092 = vsel %vm2091, %v2083, %v2088
      %v2093 = vrsqrt.pop %v2071
      %v2094 = vmul.f32 %v2093, %v2071
      %v2095 = vmul.f32 %v2094, %v2093
      %v2096 = vmul.f32 0.5, %v2095
      %v2097 = vsub.f32 1.5, %v2096
      %v2098 = vmul.f32 %v2093, %v2097
      %vm2099 = vweird.f32 %v2071
      %vm2100 = vweird.f32 %v2093
      %vm2101 = vmor %vm2099, %vm2100
      %v2102 = vsel %vm2101, %v2093, %v2098
      %v2103 = vrsqrt.pop %v2072
      %v2104 = vmul.f32 %v2103, %v2072
      %v2105 = vmul.f32 %v2104, %v2103
      %v2106 = vmul.f32 0.5, %v2105
      %v2107 = vsub.f32 1.5, %v2106
      %v2108 = vmul.f32 %v2103, %v2107
      %vm2109 = vweird.f32 %v2072
      %vm2110 = vweird.f32 %v2103
      %vm2111 = vmor %vm2109, %vm2110
      %v2112 = vsel %vm2111, %v2103, %v2108
      %v2113 = vmul.f32 %v2045, %v2082
      %v2114 = vmul.f32 %v2046, %v2092
      %v2115 = vmul.f32 %v2047, %v2102
      %v2116 = vmul.f32 %v2048, %v2112
      %v2118 = vperm.slane %v2026, 0
      %v2120 = vmul.f32 %v2113, %v2118
      %v2121 = vmul.f32 %v2114, %v2118
      %v2122 = vmul.f32 %v2115, %v2118
      %v2123 = vmul.f32 %v2116, %v2118
      %v2125 = vperm.slane %v2028, 0
      %v2127 = vadd.f32 %v2120, %v2125
      %v2128 = vadd.f32 %v2121, %v2125
      %v2129 = vadd.f32 %v2122, %v2125
      %v2130 = vadd.f32 %v2123, %v2125
      %v2131 = vpack.c.bf16 %v2128, %v2127
      %v2132 = vpack.c.bf16 %v2130, %v2129
      %s2133 = scalar_lea.vmem %s10, 16
      %v2134 = vld [vmem:[%s2133] sm:$0xf]
      %v2135 = vld [vmem:[%s2133 + $0x4] sm:$0xf]
      %v2136 = vld [vmem:[%s2133 + $0x8] sm:$0xf]
      %v2137 = vld [vmem:[%s2133 + $0xc] sm:$0xf]
      %s2138 = scalar_lea.vmem %s11, 1
      %v2139 = vld [vmem:[%s2138] sm:$0x1]
      %v2141 = vperm.slane %v2139, 0
      %v2147 = vunpack.c.l.b16 %v2134
      %v2148 = vunpack.c.l.b16 %v2135
      %v2149 = vunpack.c.l.b16 %v2136
      %v2150 = vunpack.c.l.b16 %v2137
      %v2151 = vpack.c.b16 %v2148, %v2147
      %v2152 = vpack.c.b16 %v2150, %v2149
      %v2156 = vsel %vm634, %v2131, 0
      %v2159 = vsel %vm634, %v2132, 0
      %2161 = vmatpush.bf16.msra.mxu0 0
      %2162 = vmatpush.bf16.msra.mxu0 0
      %2163 = vmatpush.bf16.msra.mxu0 0
      %2164 = vmatpush.bf16.msra.mxu0 0
      %2165 = vmatpush.bf16.msra.mxu0 0
      %2166 = vmatpush.bf16.msra.mxu0 0
      %2167 = vmatpush.bf16.msra.mxu0 %v2152
      %2168 = vmatpush.bf16.msra.mxu0 %v2151
      %2169 = vmatmul.bf16.gmra.mxu0 %v2156
      %v2170 = vpop.f32.mrf.mxu0
      %v2171 = vadd.f32 %v2141, %v2170
      %v2172 = vpop.f32.mrf.mxu0
      %v2173 = vadd.f32 %v2141, %v2172
      %2174 = vmatmul.bf16.gmra.mxu0 %v2159
      %v2175 = vpop.f32.mrf.mxu0
      %v2176 = vadd.f32 %v2141, %v2175
      %v2177 = vpop.f32.mrf.mxu0
      %v2178 = vadd.f32 %v2141, %v2177
      %2179 = vdwg.mxu0
      %v2180 = vmul.f32 %v2171, 0.5
      %v2181 = vmul.f32 %v2173, 0.5
      %v2182 = vmul.f32 %v2176, 0.5
      %v2183 = vmul.f32 %v2178, 0.5
      %v2184 = vmul.f32 %v2171, 0.044715
      %v2185 = vmul.f32 %v2173, 0.044715
      %v2186 = vmul.f32 %v2176, 0.044715
      %v2187 = vmul.f32 %v2178, 0.044715
      %v2188 = vmul.f32 %v2184, %v2171
      %v2189 = vmul.f32 %v2185, %v2173
      %v2190 = vmul.f32 %v2186, %v2176
      %v2191 = vmul.f32 %v2187, %v2178
      %v2192 = vmul.f32 %v2188, %v2171
      %v2193 = vmul.f32 %v2189, %v2173
      %v2194 = vmul.f32 %v2190, %v2176
      %v2195 = vmul.f32 %v2191, %v2178
      %v2196 = vadd.f32 %v2171, %v2192
      %v2197 = vadd.f32 %v2173, %v2193
      %v2198 = vadd.f32 %v2176, %v2194
      %v2199 = vadd.f32 %v2178, %v2195
      %v2200 = vmul.f32 %v2196, 0.7978846
      %v2201 = vmul.f32 %v2197, 0.7978846
      %v2202 = vmul.f32 %v2198, 0.7978846
      %v2203 = vmul.f32 %v2199, 0.7978846
      %v2204 = vtanh.pop %v2200
      %v2205 = vtanh.pop %v2201
      %v2206 = vtanh.pop %v2202
      %v2207 = vtanh.pop %v2203
      %v2208 = vadd.f32 %v2204, 1.0
      %v2209 = vadd.f32 %v2205, 1.0
      %v2210 = vadd.f32 %v2206, 1.0
      %v2211 = vadd.f32 %v2207, 1.0
      %v2212 = vmul.f32 %v2180, %v2208
      %v2213 = vmul.f32 %v2181, %v2209
      %v2214 = vmul.f32 %v2182, %v2210
      %v2215 = vmul.f32 %v2183, %v2211
      %v2216 = vpack.c.bf16 %v2213, %v2212
      %v2217 = vpack.c.bf16 %v2215, %v2214
      %s2218 = scalar_lea.vmem %s12, 32
      %v2219 = vld [vmem:[%s2218] sm:$0xf]
      %v2220 = vld [vmem:[%s2218 + $0x4] sm:$0xf]
      %v2221 = vld [vmem:[%s2218 + $0x8] sm:$0xf]
      %v2222 = vld [vmem:[%s2218 + $0xc] sm:$0xf]
      %v2223 = vld [vmem:[%s2218 + $0x10] sm:$0xf]
      %v2224 = vld [vmem:[%s2218 + $0x14] sm:$0xf]
      %v2225 = vld [vmem:[%s2218 + $0x18] sm:$0xf]
      %v2226 = vld [vmem:[%s2218 + $0x1c] sm:$0xf]
      %s2227 = scalar_lea.vmem %s13, 1
      %v2228 = vld [vmem:[%s2227] sm:$0x1]
      %v2230 = vperm.slane %v2228, 0
      %v2240 = vunpack.c.l.b16 %v2219
      %v2241 = vunpack.c.l.b16 %v2220
      %v2242 = vunpack.c.l.b16 %v2221
      %v2243 = vunpack.c.l.b16 %v2222
      %v2244 = vunpack.c.l.b16 %v2223
      %v2245 = vunpack.c.l.b16 %v2224
      %v2246 = vunpack.c.l.b16 %v2225
      %v2247 = vunpack.c.l.b16 %v2226
      %v2248 = vpack.c.b16 %v2241, %v2240
      %v2249 = vpack.c.b16 %v2243, %v2242
      %v2250 = vpack.c.b16 %v2245, %v2244
      %v2251 = vpack.c.b16 %v2247, %v2246
      %v2257 = vsel %vm1430, %v2216, 0
      %v2260 = vsel %vm1430, %v2217, 0
      %2262 = vmatpush.bf16.msra.mxu0 0
      %2263 = vmatpush.bf16.msra.mxu0 0
      %2264 = vmatpush.bf16.msra.mxu0 0
      %2265 = vmatpush.bf16.msra.mxu0 0
      %2266 = vmatpush.bf16.msra.mxu0 %v2251
      %2267 = vmatpush.bf16.msra.mxu0 %v2250
      %2268 = vmatpush.bf16.msra.mxu0 %v2249
      %2269 = vmatpush.bf16.msra.mxu0 %v2248
      %2270 = vmatmul.bf16.gmra.mxu0 %v2257
      %v2271 = vpop.f32.mrf.mxu0
      %v2272 = vadd.f32 %v2230, %v2271
      %v2273 = vpop.f32.mrf.mxu0
      %v2274 = vadd.f32 %v2230, %v2273
      %2275 = vmatmul.bf16.gmra.mxu0 %v2260
      %v2276 = vpop.f32.mrf.mxu0
      %v2277 = vadd.f32 %v2230, %v2276
      %v2278 = vpop.f32.mrf.mxu0
      %v2279 = vadd.f32 %v2230, %v2278
      %2280 = vdwg.mxu0
      %v2281 = vadd.f32 %v2127, %v2272
      %v2282 = vadd.f32 %v2128, %v2274
      %v2283 = vadd.f32 %v2129, %v2277
      %v2284 = vadd.f32 %v2130, %v2279
      %s2285 = scalar_lea.vmem %s14, 1
      %v2286 = vld [vmem:[%s2285] sm:$0x1]
      %s2287 = scalar_lea.vmem %s15, 1
      %v2288 = vld [vmem:[%s2287] sm:$0x1]
      %v2289 = vsel %vm634, %v2281, 0.0
      %2290 = vadd.xlane.f32.xlu0 %v2289
      %v2291 = vpop.xlane.xlu0 %2290
      %v2292 = vsel %vm634, %v2282, 0.0
      %2293 = vadd.xlane.f32.xlu0 %v2292
      %v2294 = vpop.xlane.xlu0 %2293
      %v2295 = vsel %vm634, %v2283, 0.0
      %2296 = vadd.xlane.f32.xlu0 %v2295
      %v2297 = vpop.xlane.xlu0 %2296
      %v2298 = vsel %vm634, %v2284, 0.0
      %2299 = vadd.xlane.f32.xlu0 %v2298
      %v2300 = vpop.xlane.xlu0 %2299
      %v2301 = vmul.f32 %v2291, %v653
      %v2302 = vmul.f32 %v2294, %v653
      %v2303 = vmul.f32 %v2297, %v653
      %v2304 = vmul.f32 %v2300, %v653
      %v2305 = vsub.f32 %v2281, %v2301
      %v2306 = vsub.f32 %v2282, %v2302
      %v2307 = vsub.f32 %v2283, %v2303
      %v2308 = vsub.f32 %v2284, %v2304
      %v2309 = vmul.f32 %v2305, %v2305
      %v2310 = vmul.f32 %v2306, %v2306
      %v2311 = vmul.f32 %v2307, %v2307
      %v2312 = vmul.f32 %v2308, %v2308
      %v2313 = vsel %vm634, %v2309, 0.0
      %2314 = vadd.xlane.f32.xlu0 %v2313
      %v2315 = vpop.xlane.xlu0 %2314
      %v2316 = vsel %vm634, %v2310, 0.0
      %2317 = vadd.xlane.f32.xlu0 %v2316
      %v2318 = vpop.xlane.xlu0 %2317
      %v2319 = vsel %vm634, %v2311, 0.0
      %2320 = vadd.xlane.f32.xlu0 %v2319
      %v2321 = vpop.xlane.xlu0 %2320
      %v2322 = vsel %vm634, %v2312, 0.0
      %2323 = vadd.xlane.f32.xlu0 %v2322
      %v2324 = vpop.xlane.xlu0 %2323
      %v2325 = vmul.f32 %v2315, %v653
      %v2326 = vmul.f32 %v2318, %v653
      %v2327 = vmul.f32 %v2321, %v653
      %v2328 = vmul.f32 %v2324, %v653
      %v2329 = vadd.f32 %v2325, 1e-12
      %v2330 = vadd.f32 %v2326, 1e-12
      %v2331 = vadd.f32 %v2327, 1e-12
      %v2332 = vadd.f32 %v2328, 1e-12
      %v2333 = vrsqrt.pop %v2329
      %v2334 = vmul.f32 %v2333, %v2329
      %v2335 = vmul.f32 %v2334, %v2333
      %v2336 = vmul.f32 0.5, %v2335
      %v2337 = vsub.f32 1.5, %v2336
      %v2338 = vmul.f32 %v2333, %v2337
      %vm2339 = vweird.f32 %v2329
      %vm2340 = vweird.f32 %v2333
      %vm2341 = vmor %vm2339, %vm2340
      %v2342 = vsel %vm2341, %v2333, %v2338
      %v2343 = vrsqrt.pop %v2330
      %v2344 = vmul.f32 %v2343, %v2330
      %v2345 = vmul.f32 %v2344, %v2343
      %v2346 = vmul.f32 0.5, %v2345
      %v2347 = vsub.f32 1.5, %v2346
      %v2348 = vmul.f32 %v2343, %v2347
      %vm2349 = vweird.f32 %v2330
      %vm2350 = vweird.f32 %v2343
      %vm2351 = vmor %vm2349, %vm2350
      %v2352 = vsel %vm2351, %v2343, %v2348
      %v2353 = vrsqrt.pop %v2331
      %v2354 = vmul.f32 %v2353, %v2331
      %v2355 = vmul.f32 %v2354, %v2353
      %v2356 = vmul.f32 0.5, %v2355
      %v2357 = vsub.f32 1.5, %v2356
      %v2358 = vmul.f32 %v2353, %v2357
      %vm2359 = vweird.f32 %v2331
      %vm2360 = vweird.f32 %v2353
      %vm2361 = vmor %vm2359, %vm2360
      %v2362 = vsel %vm2361, %v2353, %v2358
      %v2363 = vrsqrt.pop %v2332
      %v2364 = vmul.f32 %v2363, %v2332
      %v2365 = vmul.f32 %v2364, %v2363
      %v2366 = vmul.f32 0.5, %v2365
      %v2367 = vsub.f32 1.5, %v2366
      %v2368 = vmul.f32 %v2363, %v2367
      %vm2369 = vweird.f32 %v2332
      %vm2370 = vweird.f32 %v2363
      %vm2371 = vmor %vm2369, %vm2370
      %v2372 = vsel %vm2371, %v2363, %v2368
      %v2373 = vmul.f32 %v2305, %v2342
      %v2374 = vmul.f32 %v2306, %v2352
      %v2375 = vmul.f32 %v2307, %v2362
      %v2376 = vmul.f32 %v2308, %v2372
      %v2378 = vperm.slane %v2286, 0
      %v2380 = vmul.f32 %v2373, %v2378
      %v2381 = vmul.f32 %v2374, %v2378
      %v2382 = vmul.f32 %v2375, %v2378
      %v2383 = vmul.f32 %v2376, %v2378
      %v2385 = vperm.slane %v2288, 0
      %v2387 = vadd.f32 %v2380, %v2385
      %v2388 = vadd.f32 %v2381, %v2385
      %v2389 = vadd.f32 %v2382, %v2385
      %v2390 = vadd.f32 %v2383, %v2385
      %2391 = vst.msk [vmem:[%s622] sm:$0xff] %vm634, %v2387
      %2392 = vst.msk [vmem:[%s622 + $0x8] sm:$0xff] %vm634, %v2388
      %2393 = vst.msk [vmem:[%s622 + $0x10] sm:$0xff] %vm634, %v2389
      %2394 = vst.msk [vmem:[%s622 + $0x18] sm:$0xff] %vm634, %v2390
      %v2395 = vpack.c.bf16 %v2387, %v2387
      %v2396 = vld [vmem:[%s16] sm:$0xf]
      %v2397 = vld [vmem:[%s16 + $0x4] sm:$0xf]
      %v2398 = vld [vmem:[%s16 + $0x8] sm:$0xf]
      %v2399 = vld [vmem:[%s16 + $0xc] sm:$0xf]
      %v2400 = vld [vmem:[%s17] sm:$0x1]
      %v2405 = vunpack.c.l.b16 %v2396
      %v2406 = vunpack.c.l.b16 %v2397
      %v2407 = vunpack.c.l.b16 %v2398
      %v2408 = vunpack.c.l.b16 %v2399
      %v2409 = vpack.c.b16 %v2406, %v2405
      %v2410 = vpack.c.b16 %v2408, %v2407
      %v2414 = vsel %vm634, %v2395, 0
      %2416 = vmatpush.bf16.msra.mxu0 0
      %2417 = vmatpush.bf16.msra.mxu0 0
      %2418 = vmatpush.bf16.msra.mxu0 0
      %2419 = vmatpush.bf16.msra.mxu0 0
      %2420 = vmatpush.bf16.msra.mxu0 0
      %2421 = vmatpush.bf16.msra.mxu0 0
      %2422 = vmatpush.bf16.msra.mxu0 %v2410
      %2423 = vmatpush.bf16.msra.mxu0 %v2409
      %2424 = vmatmul.bf16.gmra.mxu0 %v2414
      %v2425 = vpop.f32.mrf.mxu0
      %v2426 = vadd.f32 %v2400, %v2425
      %v2427 = vpop.f32.mrf.mxu0
      %2428 = vdwg.mxu0
      %v2429 = vtanh.pop %v2426
      %vm2430 = vcmask 253952
      %2431 = vst.msk [vmem:[%s625] sm:$0x1] %vm2430, %v2429
      %p2432 = scmp.lt.s32.totalorder %s31, 1
      %s2433 = scalar_select %p2432, %s31, 1
      %s2434 = smul.addr %s2433, 4
      %s2435 = smul.addr %s2434, 8
      %s2436 = scalar_lea.vmem %s18, %s2435
      %p2437 = scmp.lt.s32.totalorder %s31, 1
      %s2438 = scalar_select %p2437, %s31, 1
      %s2439 = scalar_lea.vmem %s19, %s2438
      // Predicated region
      $region93: #{_lambda_.2} parent=91 // pred_check
        %p2440 = pneg %p437
      $region94: #{_lambda_.2} parent=91 // pred_check_branch
        %2442 = sbr.rel (%p2440) target = $region96
      $region95: #{_lambda_.2} parent=91 // pred_region
        _
      $region96: #{_lambda_.2} parent=91 // pred_fallthru
        _
      // Predicated region
      $region97: #{_lambda_.2} parent=91 // pred_check
        %p2443 = pneg %p463
      $region98: #{_lambda_.2} parent=91 // pred_check_branch
        %2445 = sbr.rel (%p2443) target = $region100
      $region99: #{_lambda_.2} parent=91 // pred_region
        _
      $region100: #{_lambda_.2} parent=91 // pred_fallthru
        _
    $region92: #{_lambda_.2} parent=5 // pred_fallthru
      _
    %p2446 = scmp.le.s32.totalorder 2, %s26
    // Predicated region
    $region101: #{_lambda_.2} parent=5 // pred_check
      %p2447 = pneg %p2446
    $region102: #{_lambda_.2} parent=5 // pred_check_branch
      %2449 = sbr.rel (%p2447) target = $region104
    $region103: #{_lambda_.2} parent=5 // pred_region
      %s2450 = ssub.s32 %s26, 2
      // Predicated region
      $region105: #{_lambda_.2} parent=103 // pred_check
        %p2451 = pneg %p443
      $region106: #{_lambda_.2} parent=103 // pred_check_branch
        %2453 = sbr.rel (%p2451) target = $region108
      $region107: #{_lambda_.2} parent=103 // pred_region
        %p2454 = scmp.lt.s32.totalorder %s32, 1
        %s2455 = scalar_select %p2454, %s32, 1
        %s2456 = smul.addr %s2455, 4
        %s2457 = smul.addr %s2456, 8
        %s2458 = scalar_lea.vmem %s18, %s2457
      $region108: #{_lambda_.2} parent=103 // pred_fallthru
        _
      // Predicated region
      $region109: #{_lambda_.2} parent=103 // pred_check
        %p2459 = pneg %p469
      $region110: #{_lambda_.2} parent=103 // pred_check_branch
        %2461 = sbr.rel (%p2459) target = $region112
      $region111: #{_lambda_.2} parent=103 // pred_region
        %p2462 = scmp.lt.s32.totalorder %s32, 1
        %s2463 = scalar_select %p2462, %s32, 1
        %s2464 = scalar_lea.vmem %s19, %s2463
      $region112: #{_lambda_.2} parent=103 // pred_fallthru
        _
    $region104: #{_lambda_.2} parent=5 // pred_fallthru
      _
  $region6: #{_lambda_.2} parent=0 // loop_footer
    %s30 = sadd.s32 1, %s26
  $region7: #{_lambda_.2} parent=0 // loop_footer_branch
    %25 = sbr.rel target = $region3
  $region8: #{_lambda_.2} parent=0 // loop_exit
    _

</llo_original>
